<compile_context>
chip_gen: v5e
topology: v5e:2x2
jax: 0.10.0
libtpu: 0.0.40
codegen_flags: <defaults>
</compile_context>

<pallas_src>
import jax
import jax.numpy as jnp
import numpy as np
from jax.experimental import pallas as pl
from jax.experimental.pallas import tpu as pltpu

# ----------------------------- hyper-parameters ------------------------------
TX = 8          # source length
TY = 8          # target length
BN = 8          # batch
DIM_WEMB = 32   # word embedding dim
DIM_ENC = 32    # encoder hidden dim (per direction)
DIM_DEC = 32    # decoder hidden dim
DIM_ATT = 32    # attention dim
SRC_WORDS = 64
TRG_WORDS = 64
EC = 2 * DIM_ENC  # bidirectional context dim


# ------------------------------- fused kernel --------------------------------
def att_nmt_kernel(x_ids_ref, xm3_ref, xmf_ref, y_ids_ref, ymf_ref,
                   src_emb_ref, dec_emb_ref,
                   wenc_x_ref, wenc_h_ref, benc_ref,
                   winit_ref, binit_ref,
                   w1c_ref, w1y_ref, w1h_ref, b1_ref, w2_ref,
                   wcell_y_ref, wcell_ch_ref, bcell_ref,
                   wro_ref, bro_ref, wlo_ref, blo_ref,
                   loss_ref):
    f32 = jnp.float32
    Tx, Bn, _ = xm3_ref.shape
    TyBn = y_ids_ref.shape[0]
    Ty = TyBn // Bn
    Vs, We = src_emb_ref.shape
    Vt = dec_emb_ref.shape[0]
    He = wenc_h_ref.shape[0] // 2          # per-direction hidden
    Ec = 2 * He
    G2 = 8 * He                            # fused both-direction gate width (256)
    Hd = bcell_ref.shape[1] // 4
    A = b1_ref.shape[1]
    V = blo_ref.shape[1]

    xm3 = xm3_ref[...]                     # (Tx, Bn, 1)
    xmf = xmf_ref[...]                     # (Tx*Bn, 1)
    ymf = ymf_ref[...]                     # (Ty*Bn, 1)

    # ------- in-kernel embedding lookups via one-hot matmuls (no host gather) -
    x_ids = x_ids_ref[...]                                          # (Tx*Bn, 1) i32
    lane_s = jax.lax.broadcasted_iota(jnp.int32, (Tx * Bn, Vs), 1)
    oh_x = (lane_s == x_ids).astype(f32)
    x_in = jnp.dot(oh_x, src_emb_ref[...],
                   preferred_element_type=f32) * xmf                # (Tx*Bn, We) masked

    y_ids = y_ids_ref[...]                                          # (Ty*Bn, 1) i32
    lane_t = jax.lax.broadcasted_iota(jnp.int32, (TyBn, Vt), 1)
    oh_y = (lane_t == y_ids).astype(f32)                            # NLL targets
    # teacher-forcing shift: first Bn rows use token 0, then y_data[t-1]
    oh_bos = (jax.lax.broadcasted_iota(jnp.int32, (Bn, Vt), 1) == 0).astype(f32)
    oh_prev = jnp.concatenate([oh_bos, oh_y[:TyBn - Bn]], axis=0)
    y_embs = jnp.dot(oh_prev, dec_emb_ref[...],
                     preferred_element_type=f32)                    # (Ty*Bn, We)

    # ------- encoder: batched input-dependent gate precompute (M = Tx*Bn) -----
    x_pre = jnp.dot(x_in, wenc_x_ref[...],
                    preferred_element_type=f32)                     # (Tx*Bn, 2*G2)
    wenc_h = wenc_h_ref[...]                                        # (Ec, G2)
    benc = benc_ref[...]                                            # (1, G2)

    # ------- bidirectional encoder: ONE fused 256-wide dot per step ----------
    hb = jnp.zeros((Bn, Ec), f32)          # [h_fwd | h_rev]
    cb = jnp.zeros((Bn, Ec), f32)
    outs_f = [None] * Tx
    outs_r = [None] * Tx
    for t in range(Tx):
        tr = Tx - 1 - t
        g = jnp.dot(hb, wenc_h, preferred_element_type=f32)
        g = (g + x_pre[t * Bn:(t + 1) * Bn, :G2]
               + x_pre[tr * Bn:(tr + 1) * Bn, G2:]
               + benc)                                              # (Bn, 256)
        # interleaved gate layout: [i_f i_r | f_f f_r | g_f g_r | o_f o_r]
        i = jax.nn.sigmoid(g[:, 0 * Ec:1 * Ec])
        f = jax.nn.sigmoid(g[:, 1 * Ec:2 * Ec])
        gg = jnp.tanh(g[:, 2 * Ec:3 * Ec])
        o = jax.nn.sigmoid(g[:, 3 * Ec:4 * Ec])
        cb = f * cb + i * gg
        hb = o * jnp.tanh(cb)
        outs_f[t] = hb[:, :He]
        outs_r[tr] = hb[:, He:]

    ctx_f = jnp.stack(outs_f, axis=0)                               # (Tx, Bn, He)
    ctx_r = jnp.stack(outs_r, axis=0)                               # (Tx, Bn, He)
    ctx3 = jnp.concatenate([ctx_f, ctx_r], axis=2) * xm3            # (Tx, Bn, Ec)

    # ------- decoder init: masked mean of ctx (approx reciprocal) ------------
    denom = jnp.sum(xm3, axis=0)                                    # (Bn, 1)
    ctx_mean = jnp.sum(ctx3, axis=0) * pl.reciprocal(denom, approx=True)
    init = jnp.tanh(jnp.dot(ctx_mean, winit_ref[...],
                            preferred_element_type=f32) + binit_ref[...])
    ht = init[:, :Hd]
    ct = init[:, Hd:2 * Hd]

    # ------- hoisted / batched decoder precomputes (M = Ty*Bn) ---------------
    ctx_flat = ctx3.reshape(Tx * Bn, Ec)
    att_ctx3 = jnp.dot(ctx_flat, w1c_ref[...],
                       preferred_element_type=f32).reshape(Tx, Bn, A)
    y_att_pre = jnp.dot(y_embs, w1y_ref[...],
                        preferred_element_type=f32) + b1_ref[...]   # (Ty*Bn, A)
    y_cell_pre = jnp.dot(y_embs, wcell_y_ref[...],
                         preferred_element_type=f32) + bcell_ref[...]  # (Ty*Bn, 4Hd)

    w1h = w1h_ref[...]
    w2b = w2_ref[...].reshape(1, 1, A)
    wcell_ch = wcell_ch_ref[...]

    # ------- teacher-forced decode: only the ht/ct recurrence stays serial ----
    ctx_ts = [None] * Ty
    hts = [None] * Ty
    for t in range(Ty):
        sl = slice(t * Bn, (t + 1) * Bn)

        # attention (per-column max; att2 bias cancels in softmax -> omitted)
        att_h = jnp.dot(ht, w1h, preferred_element_type=f32) + y_att_pre[sl]
        att1 = jnp.tanh(att_ctx3 + att_h[None, :, :])               # (Tx, Bn, A)
        att2 = jnp.sum(att1 * w2b, axis=2, keepdims=True)           # (Tx, Bn, 1)
        att2 = att2 - jnp.max(att2, axis=0, keepdims=True)
        e = jnp.exp(att2) * xm3
        s = jnp.sum(e, axis=0)                                      # (Bn, 1)
        ctx_t = jnp.sum(e * ctx3, axis=0) * pl.reciprocal(s + 1e-15, approx=True)

        # LSTMCell: y-dependent half precomputed; per-step only K=96 dot
        gates = (jnp.dot(jnp.concatenate([ctx_t, ht], axis=1), wcell_ch,
                         preferred_element_type=f32) + y_cell_pre[sl])
        i = jax.nn.sigmoid(gates[:, 0 * Hd:1 * Hd])
        f = jax.nn.sigmoid(gates[:, 1 * Hd:2 * Hd])
        gg = jnp.tanh(gates[:, 2 * Hd:3 * Hd])
        o = jax.nn.sigmoid(gates[:, 3 * Hd:4 * Hd])
        ct = f * ct + i * gg
        ht = o * jnp.tanh(ct)

        ctx_ts[t] = ctx_t
        hts[t] = ht

    # ------- batched readout / logits / log-softmax / masked NLL (M = 64) ----
    ctx_all = jnp.stack(ctx_ts, axis=0).reshape(TyBn, Ec)
    ht_all = jnp.stack(hts, axis=0).reshape(TyBn, Hd)
    readin = jnp.concatenate([ctx_all, ht_all, y_embs], axis=1)     # (Ty*Bn, 128)
    ro = jnp.dot(readin, wro_ref[...], preferred_element_type=f32) + bro_ref[...]
    read_max = jnp.maximum(ro[:, :We], ro[:, We:2 * We])            # (Ty*Bn, We)
    logit = jnp.dot(read_max, wlo_ref[...], preferred_element_type=f32) + blo_ref[...]
    m = jnp.max(logit, axis=1, keepdims=True)
    lse = m + jnp.log(jnp.sum(jnp.exp(logit - m), axis=1, keepdims=True))
    nll = jnp.sum(oh_y * (lse - logit), axis=1, keepdims=True)      # (Ty*Bn, 1)
    loss_ref[...] = jnp.sum(nll * ymf, axis=0, keepdims=True) * (1.0 / Bn)


def run_att_nmt(inputs):
    vmem = pltpu.MemorySpace.VMEM
    return pl.pallas_call(
        att_nmt_kernel,
        out_shape=jax.ShapeDtypeStruct((1, 1), jnp.float32),
        in_specs=[pl.BlockSpec(memory_space=vmem) for _ in inputs],
        out_specs=pl.BlockSpec(memory_space=vmem),
    )(*inputs)


# --------------------------- parameters (deterministic) ----------------------
def init_params(key):
    keys = iter(jax.random.split(key, 32))

    def nrm(shape, scale=0.1):
        return jax.random.normal(next(keys), shape, jnp.float32) * scale

    p = {}
    p['src_emb'] = nrm((SRC_WORDS, DIM_WEMB))
    p['dec_emb'] = nrm((TRG_WORDS, DIM_WEMB))
    # bidirectional encoder LSTM (PyTorch gate order i,f,g,o)
    p['enc_f_wih'] = nrm((4 * DIM_ENC, DIM_WEMB))
    p['enc_f_whh'] = nrm((4 * DIM_ENC, DIM_ENC))
    p['enc_f_bih'] = nrm((4 * DIM_ENC,))
    p['enc_f_bhh'] = nrm((4 * DIM_ENC,))
    p['enc_r_wih'] = nrm((4 * DIM_ENC, DIM_WEMB))
    p['enc_r_whh'] = nrm((4 * DIM_ENC, DIM_ENC))
    p['enc_r_bih'] = nrm((4 * DIM_ENC,))
    p['enc_r_bhh'] = nrm((4 * DIM_ENC,))
    p['dec_h0_w'] = nrm((DIM_DEC, EC))
    p['dec_h0_b'] = nrm((DIM_DEC,))
    p['dec_c0_w'] = nrm((DIM_DEC, EC))
    p['dec_c0_b'] = nrm((DIM_DEC,))
    p['att1_w'] = nrm((DIM_ATT, EC + DIM_WEMB + DIM_DEC))
    p['att1_b'] = nrm((DIM_ATT,))
    p['att2_w'] = nrm((1, DIM_ATT))
    p['att2_b'] = nrm((1,))
    p['cell_wih'] = nrm((4 * DIM_DEC, DIM_WEMB + EC))
    p['cell_whh'] = nrm((4 * DIM_DEC, DIM_DEC))
    p['cell_bih'] = nrm((4 * DIM_DEC,))
    p['cell_bhh'] = nrm((4 * DIM_DEC,))
    p['ro_w'] = nrm((2 * DIM_WEMB, EC + DIM_DEC + DIM_WEMB))
    p['ro_b'] = nrm((2 * DIM_WEMB,))
    p['lo_w'] = nrm((TRG_WORDS, DIM_WEMB))
    p['lo_b'] = nrm((TRG_WORDS,))
    return p


def _embed_gates(w_t, direction, He):
    """Place a (K, 4*He) gate matrix (gate order i,f,g,o) into the interleaved
    both-direction layout [i_f i_r | f_f f_r | g_f g_r | o_f o_r] -> (K, 8*He),
    zeros in the other direction's slots."""
    K = w_t.shape[0]
    out = jnp.zeros((K, 8 * He), w_t.dtype)
    off = 0 if direction == 'f' else He
    for gi in range(4):
        out = out.at[:, gi * 2 * He + off: gi * 2 * He + off + He].set(
            w_t[:, gi * He:(gi + 1) * He])
    return out


def pack_params(p):
    """Pack / fuse weights (done ONCE, hoisted out of the per-call path)."""
    He, Hd, A, We, V = DIM_ENC, DIM_DEC, DIM_ATT, DIM_WEMB, TRG_WORDS
    Ec = 2 * He
    w = {}
    w['src_emb'] = p['src_emb']
    w['dec_emb'] = p['dec_emb']

    # encoder, both directions fused into one 256-wide gate space
    wx_f = _embed_gates(p['enc_f_wih'].T, 'f', He)       # (We, 256)
    wx_r = _embed_gates(p['enc_r_wih'].T, 'r', He)
    w['wenc_x'] = jnp.concatenate([wx_f, wx_r], axis=1)  # (We, 512)
    wh_f = _embed_gates(p['enc_f_whh'].T, 'f', He)       # (He, 256)
    wh_r = _embed_gates(p['enc_r_whh'].T, 'r', He)
    w['wenc_h'] = jnp.concatenate([wh_f, wh_r], axis=0)  # (Ec, 256), block structured
    b_f = (p['enc_f_bih'] + p['enc_f_bhh']).reshape(1, 4 * He)
    b_r = (p['enc_r_bih'] + p['enc_r_bhh']).reshape(1, 4 * He)
    w['benc'] = _embed_gates(b_f, 'f', He) + _embed_gates(b_r, 'r', He)

    # decoder h0/c0 init fused: ctx_mean @ [wh0.T | wc0.T]
    w['winit'] = jnp.concatenate([p['dec_h0_w'].T, p['dec_c0_w'].T], axis=1)
    w['binit'] = jnp.concatenate([p['dec_h0_b'], p['dec_c0_b']]).reshape(1, 2 * Hd)

    # attention: att_in = [ctx | y_emb | htm] split into three projections
    w1 = p['att1_w']
    w['w1c'] = w1[:, :Ec].T                      # (Ec, A) hoisted ctx projection
    w['w1y'] = w1[:, Ec:Ec + We].T               # (We, A) batched y_emb projection
    w['w1h'] = w1[:, Ec + We:].T                 # (Hd, A) per-step ht projection
    w['b1'] = p['att1_b'].reshape(1, A)
    w['w2'] = p['att2_w'].reshape(1, A)          # row vector (VPU reduce, no MXU)
    # att2 bias is a per-score constant and cancels in the softmax -> omitted

    # LSTMCell: dec_in = [y_emb | ctx_t]; split y_emb half out for precompute
    wih = p['cell_wih'].T                        # (We+Ec, 4*Hd)
    w['wcell_y'] = wih[:We]                      # (We, 4*Hd)   batched precompute
    w['wcell_ch'] = jnp.concatenate([wih[We:], p['cell_whh'].T], axis=0)  # (Ec+Hd, 4*Hd)
    w['bcell'] = (p['cell_bih'] + p['cell_bhh']).reshape(1, 4 * Hd)

    # maxout readout: readin = [ctx_t | ht | y_emb]; pairs -> [even | odd] cols
    ro_w, ro_b = p['ro_w'], p['ro_b']
    w['wro'] = jnp.concatenate([ro_w[0::2], ro_w[1::2]], axis=0).T   # (128, 2*We)
    w['bro'] = jnp.concatenate([ro_b[0::2], ro_b[1::2]]).reshape(1, 2 * We)
    w['wlo'] = p['lo_w'].T                       # (We, V)
    w['blo'] = p['lo_b'].reshape(1, V)
    return w


# ------------------------------- full forward --------------------------------
def att_nmt_forward(w, x_data, x_mask, y_data, y_mask):
    Tx, Bn = x_data.shape
    Ty = y_data.shape[0]
    inputs = [
        x_data.reshape(Tx * Bn, 1).astype(jnp.int32),
        x_mask.reshape(Tx, Bn, 1).astype(jnp.float32),
        x_mask.reshape(Tx * Bn, 1).astype(jnp.float32),
        y_data.reshape(Ty * Bn, 1).astype(jnp.int32),
        y_mask.reshape(Ty * Bn, 1).astype(jnp.float32),
        w['src_emb'], w['dec_emb'],
        w['wenc_x'], w['wenc_h'], w['benc'],
        w['winit'], w['binit'],
        w['w1c'], w['w1y'], w['w1h'], w['b1'], w['w2'],
        w['wcell_y'], w['wcell_ch'], w['bcell'],
        w['wro'], w['bro'], w['wlo'], w['blo'],
    ]
    return run_att_nmt(inputs)[0, 0]


# --------------------------- pure-JAX reference -------------------------------
def _lstm_seq_ref(x_seq, wih, whh, bih, bhh, reverse):
    T, B, _ = x_seq.shape
    H = whh.shape[1]
    h = jnp.zeros((B, H), jnp.float32)
    c = jnp.zeros((B, H), jnp.float32)
    out = jnp.zeros((T, B, H), jnp.float32)
    order = range(T - 1, -1, -1) if reverse else range(T)
    for t in order:
        g = x_seq[t] @ wih.T + h @ whh.T + bih + bhh
        i = jax.nn.sigmoid(g[:, :H])
        f = jax.nn.sigmoid(g[:, H:2 * H])
        gg = jnp.tanh(g[:, 2 * H:3 * H])
        o = jax.nn.sigmoid(g[:, 3 * H:])
        c = f * c + i * gg
        h = o * jnp.tanh(c)
        out = out.at[t].set(h)
    return out


def reference_loss(p, x_data, x_mask, y_data, y_mask):
    Tx, Bn = x_data.shape
    Ty = y_data.shape[0]
    We, Hd = DIM_WEMB, DIM_DEC

    x_emb = p['src_emb'][x_data] * x_mask[:, :, None]
    of = _lstm_seq_ref(x_emb, p['enc_f_wih'], p['enc_f_whh'],
                       p['enc_f_bih'], p['enc_f_bhh'], False)
    orr = _lstm_seq_ref(x_emb, p['enc_r_wih'], p['enc_r_whh'],
                        p['enc_r_bih'], p['enc_r_bhh'], True)
    ctx = jnp.concatenate([of, orr], axis=2) * x_mask[:, :, None]

    ctx_sum = jnp.sum(ctx * x_mask[:, :, None], axis=0)
    ctx_mean = ctx_sum / jnp.sum(x_mask, axis=0)[:, None]
    ht = jnp.tanh(ctx_mean @ p['dec_h0_w'].T + p['dec_h0_b'])
    ct = jnp.tanh(ctx_mean @ p['dec_c0_w'].T + p['dec_c0_b'])

    yt = jnp.zeros((Bn,), jnp.int32)
    loss = jnp.float32(0.0)
    for yi in range(Ty):
        y_emb = p['dec_emb'][yt]
        att_in = jnp.concatenate(
            [ctx,
             jnp.broadcast_to(y_emb, (Tx, Bn, We)),
             jnp.broadcast_to(ht, (Tx, Bn, Hd))], axis=2)
        a1 = jnp.tanh(att_in @ p['att1_w'].T + p['att1_b'])
        a2 = (a1 @ p['att2_w'].T + p['att2_b'])[:, :, 0]
        a2 = a2 - jnp.max(a2)
        alpha = jnp.exp(a2) * x_mask
        alpha = alpha / (jnp.sum(alpha, axis=0, keepdims=True) + 1e-15)
        ctx_t = jnp.sum(alpha[:, :, None] * ctx, axis=0)

        dec_in = jnp.concatenate([y_emb, ctx_t], axis=1)
        g = (dec_in @ p['cell_wih'].T + ht @ p['cell_whh'].T
             + p['cell_bih'] + p['cell_bhh'])
        i = jax.nn.sigmoid(g[:, :Hd])
        f = jax.nn.sigmoid(g[:, Hd:2 * Hd])
        gg = jnp.tanh(g[:, 2 * Hd:3 * Hd])
        o = jax.nn.sigmoid(g[:, 3 * Hd:])
        ct = f * ct + i * gg
        ht = o * jnp.tanh(ct)

        readin = jnp.concatenate([ctx_t, ht, y_emb], axis=1)
        ro = (readin @ p['ro_w'].T + p['ro_b']).reshape(Bn, We, 2)
        rmax = jnp.max(ro, axis=2)
        logit = rmax @ p['lo_w'].T + p['lo_b']
        logp = jax.nn.log_softmax(logit, axis=1)
        loss_t = -logp[jnp.arange(Bn), y_data[yi]]
        loss = loss + jnp.sum(loss_t * y_mask[yi]) / Bn
        yt = y_data[yi]
    return loss


# ------------------------------------ main ------------------------------------
if __name__ == "__main__":
    key = jax.random.PRNGKey(0)
    pkey, dkey = jax.random.split(key)
    raw = init_params(pkey)
    packed = pack_params(raw)   # packing hoisted out of the per-call path

    k1, k2 = jax.random.split(dkey)
    x_data = jax.random.randint(k1, (TX, BN), 1, SRC_WORDS, dtype=jnp.int32)
    y_data = jax.random.randint(k2, (TY, BN), 1, TRG_WORDS, dtype=jnp.int32)
    x_lens = (jnp.arange(BN) % 4) + (TX - 3)
    y_lens = (jnp.arange(BN) % 4) + (TY - 3)
    x_mask = (jnp.arange(TX)[:, None] < x_lens[None, :]).astype(jnp.float32)
    y_mask = (jnp.arange(TY)[:, None] < y_lens[None, :]).astype(jnp.float32)

    fwd = jax.jit(att_nmt_forward)
    loss = jax.block_until_ready(fwd(packed, x_data, x_mask, y_data, y_mask))

    ref = reference_loss(raw, x_data, x_mask, y_data, y_mask)
    np.testing.assert_allclose(float(loss), float(ref), rtol=2e-3, atol=2e-3)
    print("KERNEL_OK")
</pallas_src>

<mosaic_0001>
module attributes {stable_mosaic.version = 11 : i64} {
  func.func @att_nmt_kernel(%arg0: memref<64x1xi32, #tpu.memory_space<vmem>>, %arg1: memref<8x8x1xf32, #tpu.memory_space<vmem>>, %arg2: memref<64x1xf32, #tpu.memory_space<vmem>>, %arg3: memref<64x1xi32, #tpu.memory_space<vmem>>, %arg4: memref<64x1xf32, #tpu.memory_space<vmem>>, %arg5: memref<64x32xf32, #tpu.memory_space<vmem>>, %arg6: memref<64x32xf32, #tpu.memory_space<vmem>>, %arg7: memref<32x512xf32, #tpu.memory_space<vmem>>, %arg8: memref<64x256xf32, #tpu.memory_space<vmem>>, %arg9: memref<1x256xf32, #tpu.memory_space<vmem>>, %arg10: memref<64x64xf32, #tpu.memory_space<vmem>>, %arg11: memref<1x64xf32, #tpu.memory_space<vmem>>, %arg12: memref<64x32xf32, #tpu.memory_space<vmem>>, %arg13: memref<32x32xf32, #tpu.memory_space<vmem>>, %arg14: memref<32x32xf32, #tpu.memory_space<vmem>>, %arg15: memref<1x32xf32, #tpu.memory_space<vmem>>, %arg16: memref<1x32xf32, #tpu.memory_space<vmem>>, %arg17: memref<32x128xf32, #tpu.memory_space<vmem>>, %arg18: memref<96x128xf32, #tpu.memory_space<vmem>>, %arg19: memref<1x128xf32, #tpu.memory_space<vmem>>, %arg20: memref<128x64xf32, #tpu.memory_space<vmem>>, %arg21: memref<1x64xf32, #tpu.memory_space<vmem>>, %arg22: memref<32x64xf32, #tpu.memory_space<vmem>>, %arg23: memref<1x64xf32, #tpu.memory_space<vmem>>, %arg24: memref<1x1xf32, #tpu.memory_space<vmem>>) attributes {dimension_semantics = [], scalar_prefetch = 0 : i64, scratch_operands = 0 : i64, tpu.core_type = #tpu.core_type<tc>} {
    %c0 = arith.constant 0 : index
    %c0_0 = arith.constant 0 : index
    %c0_1 = arith.constant 0 : index
    %0 = vector.load %arg1[%c0, %c0_0, %c0_1] : memref<8x8x1xf32, #tpu.memory_space<vmem>>, vector<8x8x1xf32>
    %c0_2 = arith.constant 0 : index
    %c0_3 = arith.constant 0 : index
    %1 = vector.load %arg2[%c0_2, %c0_3] : memref<64x1xf32, #tpu.memory_space<vmem>>, vector<64x1xf32>
    %c0_4 = arith.constant 0 : index
    %c0_5 = arith.constant 0 : index
    %2 = vector.load %arg4[%c0_4, %c0_5] : memref<64x1xf32, #tpu.memory_space<vmem>>, vector<64x1xf32>
    %c0_6 = arith.constant 0 : index
    %c0_7 = arith.constant 0 : index
    %3 = vector.load %arg0[%c0_6, %c0_7] : memref<64x1xi32, #tpu.memory_space<vmem>>, vector<64x1xi32>
    %4 = tpu.iota {dimensions = array<i32: 1>} : vector<64x64xi32>
    %5 = vector.broadcast %3 : vector<64x1xi32> to vector<64x64xi32>
    %6 = arith.cmpi eq, %4, %5 : vector<64x64xi32>
    %7 = arith.extui %6 : vector<64x64xi1> to vector<64x64xi32>
    %8 = arith.sitofp %7 : vector<64x64xi32> to vector<64x64xf32>
    %c0_8 = arith.constant 0 : index
    %c0_9 = arith.constant 0 : index
    %9 = vector.load %arg5[%c0_8, %c0_9] : memref<64x32xf32, #tpu.memory_space<vmem>>, vector<64x32xf32>
    %cst = arith.constant dense<0.000000e+00> : vector<64x32xf32>
    %10 = tpu.matmul %8, %9, %cst {dimension_numbers = #tpu.dot_dimension_numbers<[1], [0], [0], [1], [0, 0, 1, 1], [], []>} : vector<64x64xf32>, vector<64x32xf32>, vector<64x32xf32> -> vector<64x32xf32>
    %11 = vector.broadcast %1 : vector<64x1xf32> to vector<64x32xf32>
    %12 = arith.mulf %10, %11 : vector<64x32xf32>
    %c0_10 = arith.constant 0 : index
    %c0_11 = arith.constant 0 : index
    %13 = vector.load %arg3[%c0_10, %c0_11] : memref<64x1xi32, #tpu.memory_space<vmem>>, vector<64x1xi32>
    %14 = tpu.iota {dimensions = array<i32: 1>} : vector<64x64xi32>
    %15 = vector.broadcast %13 : vector<64x1xi32> to vector<64x64xi32>
    %16 = arith.cmpi eq, %14, %15 : vector<64x64xi32>
    %17 = arith.extui %16 : vector<64x64xi1> to vector<64x64xi32>
    %18 = arith.sitofp %17 : vector<64x64xi32> to vector<64x64xf32>
    %19 = tpu.iota {dimensions = array<i32: 1>} : vector<8x64xi32>
    %c0_i32 = arith.constant 0 : i32
    %20 = vector.broadcast %c0_i32 : i32 to vector<8x64xi32>
    %21 = arith.cmpi eq, %19, %20 : vector<8x64xi32>
    %22 = arith.extui %21 : vector<8x64xi1> to vector<8x64xi32>
    %23 = arith.sitofp %22 : vector<8x64xi32> to vector<8x64xf32>
    %24 = vector.extract_strided_slice %18 {offsets = [0, 0], sizes = [56, 64], strides = [1, 1]} : vector<64x64xf32> to vector<56x64xf32>
    %25 = tpu.concatenate %23, %24 in 0 : vector<8x64xf32>, vector<56x64xf32> -> vector<64x64xf32>
    %c0_12 = arith.constant 0 : index
    %c0_13 = arith.constant 0 : index
    %26 = vector.load %arg6[%c0_12, %c0_13] : memref<64x32xf32, #tpu.memory_space<vmem>>, vector<64x32xf32>
    %cst_14 = arith.constant dense<0.000000e+00> : vector<64x32xf32>
    %27 = tpu.matmul %25, %26, %cst_14 {dimension_numbers = #tpu.dot_dimension_numbers<[1], [0], [0], [1], [0, 0, 1, 1], [], []>} : vector<64x64xf32>, vector<64x32xf32>, vector<64x32xf32> -> vector<64x32xf32>
    %c0_15 = arith.constant 0 : index
    %c0_16 = arith.constant 0 : index
    %28 = vector.load %arg7[%c0_15, %c0_16] : memref<32x512xf32, #tpu.memory_space<vmem>>, vector<32x512xf32>
    %cst_17 = arith.constant dense<0.000000e+00> : vector<64x512xf32>
    %29 = tpu.matmul %12, %28, %cst_17 {dimension_numbers = #tpu.dot_dimension_numbers<[1], [0], [0], [1], [0, 0, 1, 1], [], []>} : vector<64x32xf32>, vector<32x512xf32>, vector<64x512xf32> -> vector<64x512xf32>
    %c0_18 = arith.constant 0 : index
    %c0_19 = arith.constant 0 : index
    %30 = vector.load %arg8[%c0_18, %c0_19] : memref<64x256xf32, #tpu.memory_space<vmem>>, vector<64x256xf32>
    %c0_20 = arith.constant 0 : index
    %c0_21 = arith.constant 0 : index
    %31 = vector.load %arg9[%c0_20, %c0_21] : memref<1x256xf32, #tpu.memory_space<vmem>>, vector<1x256xf32>
    %cst_22 = arith.constant 0.000000e+00 : f32
    %32 = vector.broadcast %cst_22 : f32 to vector<8x64xf32>
    %cst_23 = arith.constant 0.000000e+00 : f32
    %33 = vector.broadcast %cst_23 : f32 to vector<8x64xf32>
    %cst_24 = arith.constant dense<0.000000e+00> : vector<8x256xf32>
    %34 = tpu.matmul %32, %30, %cst_24 {dimension_numbers = #tpu.dot_dimension_numbers<[1], [0], [0], [1], [0, 0, 1, 1], [], []>} : vector<8x64xf32>, vector<64x256xf32>, vector<8x256xf32> -> vector<8x256xf32>
    %35 = vector.extract_strided_slice %29 {offsets = [0, 0], sizes = [8, 256], strides = [1, 1]} : vector<64x512xf32> to vector<8x256xf32>
    %36 = arith.addf %34, %35 : vector<8x256xf32>
    %37 = vector.extract_strided_slice %29 {offsets = [56, 256], sizes = [8, 256], strides = [1, 1]} : vector<64x512xf32> to vector<8x256xf32>
    %38 = arith.addf %36, %37 : vector<8x256xf32>
    %39 = vector.broadcast %31 : vector<1x256xf32> to vector<8x256xf32>
    %40 = arith.addf %38, %39 : vector<8x256xf32>
    %41 = vector.extract_strided_slice %40 {offsets = [0, 0], sizes = [8, 64], strides = [1, 1]} : vector<8x256xf32> to vector<8x64xf32>
    %42 = arith.negf %41 : vector<8x64xf32>
    %43 = math.exp %42 : vector<8x64xf32>
    %cst_25 = arith.constant 1.000000e+00 : f32
    %44 = vector.broadcast %cst_25 : f32 to vector<8x64xf32>
    %45 = arith.addf %44, %43 : vector<8x64xf32>
    %46 = arith.divf %44, %45 : vector<8x64xf32>
    %47 = vector.extract_strided_slice %40 {offsets = [0, 64], sizes = [8, 64], strides = [1, 1]} : vector<8x256xf32> to vector<8x64xf32>
    %48 = arith.negf %47 : vector<8x64xf32>
    %49 = math.exp %48 : vector<8x64xf32>
    %cst_26 = arith.constant 1.000000e+00 : f32
    %50 = vector.broadcast %cst_26 : f32 to vector<8x64xf32>
    %51 = arith.addf %50, %49 : vector<8x64xf32>
    %52 = arith.divf %50, %51 : vector<8x64xf32>
    %53 = vector.extract_strided_slice %40 {offsets = [0, 128], sizes = [8, 64], strides = [1, 1]} : vector<8x256xf32> to vector<8x64xf32>
    %54 = math.tanh %53 : vector<8x64xf32>
    %55 = vector.extract_strided_slice %40 {offsets = [0, 192], sizes = [8, 64], strides = [1, 1]} : vector<8x256xf32> to vector<8x64xf32>
    %56 = arith.negf %55 : vector<8x64xf32>
    %57 = math.exp %56 : vector<8x64xf32>
    %cst_27 = arith.constant 1.000000e+00 : f32
    %58 = vector.broadcast %cst_27 : f32 to vector<8x64xf32>
    %59 = arith.addf %58, %57 : vector<8x64xf32>
    %60 = arith.divf %58, %59 : vector<8x64xf32>
    %61 = arith.mulf %52, %33 : vector<8x64xf32>
    %62 = arith.mulf %46, %54 : vector<8x64xf32>
    %63 = arith.addf %61, %62 : vector<8x64xf32>
    %64 = math.tanh %63 : vector<8x64xf32>
    %65 = arith.mulf %60, %64 : vector<8x64xf32>
    %66 = vector.extract_strided_slice %65 {offsets = [0, 0], sizes = [8, 32], strides = [1, 1]} : vector<8x64xf32> to vector<8x32xf32>
    %67 = vector.extract_strided_slice %65 {offsets = [0, 32], sizes = [8, 32], strides = [1, 1]} : vector<8x64xf32> to vector<8x32xf32>
    %cst_28 = arith.constant dense<0.000000e+00> : vector<8x256xf32>
    %68 = tpu.matmul %65, %30, %cst_28 {dimension_numbers = #tpu.dot_dimension_numbers<[1], [0], [0], [1], [0, 0, 1, 1], [], []>} : vector<8x64xf32>, vector<64x256xf32>, vector<8x256xf32> -> vector<8x256xf32>
    %69 = vector.extract_strided_slice %29 {offsets = [8, 0], sizes = [8, 256], strides = [1, 1]} : vector<64x512xf32> to vector<8x256xf32>
    %70 = arith.addf %68, %69 : vector<8x256xf32>
    %71 = vector.extract_strided_slice %29 {offsets = [48, 256], sizes = [8, 256], strides = [1, 1]} : vector<64x512xf32> to vector<8x256xf32>
    %72 = arith.addf %70, %71 : vector<8x256xf32>
    %73 = vector.broadcast %31 : vector<1x256xf32> to vector<8x256xf32>
    %74 = arith.addf %72, %73 : vector<8x256xf32>
    %75 = vector.extract_strided_slice %74 {offsets = [0, 0], sizes = [8, 64], strides = [1, 1]} : vector<8x256xf32> to vector<8x64xf32>
    %76 = arith.negf %75 : vector<8x64xf32>
    %77 = math.exp %76 : vector<8x64xf32>
    %cst_29 = arith.constant 1.000000e+00 : f32
    %78 = vector.broadcast %cst_29 : f32 to vector<8x64xf32>
    %79 = arith.addf %78, %77 : vector<8x64xf32>
    %80 = arith.divf %78, %79 : vector<8x64xf32>
    %81 = vector.extract_strided_slice %74 {offsets = [0, 64], sizes = [8, 64], strides = [1, 1]} : vector<8x256xf32> to vector<8x64xf32>
    %82 = arith.negf %81 : vector<8x64xf32>
    %83 = math.exp %82 : vector<8x64xf32>
    %cst_30 = arith.constant 1.000000e+00 : f32
    %84 = vector.broadcast %cst_30 : f32 to vector<8x64xf32>
    %85 = arith.addf %84, %83 : vector<8x64xf32>
    %86 = arith.divf %84, %85 : vector<8x64xf32>
    %87 = vector.extract_strided_slice %74 {offsets = [0, 128], sizes = [8, 64], strides = [1, 1]} : vector<8x256xf32> to vector<8x64xf32>
    %88 = math.tanh %87 : vector<8x64xf32>
    %89 = vector.extract_strided_slice %74 {offsets = [0, 192], sizes = [8, 64], strides = [1, 1]} : vector<8x256xf32> to vector<8x64xf32>
    %90 = arith.negf %89 : vector<8x64xf32>
    %91 = math.exp %90 : vector<8x64xf32>
    %cst_31 = arith.constant 1.000000e+00 : f32
    %92 = vector.broadcast %cst_31 : f32 to vector<8x64xf32>
    %93 = arith.addf %92, %91 : vector<8x64xf32>
    %94 = arith.divf %92, %93 : vector<8x64xf32>
    %95 = arith.mulf %86, %63 : vector<8x64xf32>
    %96 = arith.mulf %80, %88 : vector<8x64xf32>
    %97 = arith.addf %95, %96 : vector<8x64xf32>
    %98 = math.tanh %97 : vector<8x64xf32>
    %99 = arith.mulf %94, %98 : vector<8x64xf32>
    %100 = vector.extract_strided_slice %99 {offsets = [0, 0], sizes = [8, 32], strides = [1, 1]} : vector<8x64xf32> to vector<8x32xf32>
    %101 = vector.extract_strided_slice %99 {offsets = [0, 32], sizes = [8, 32], strides = [1, 1]} : vector<8x64xf32> to vector<8x32xf32>
    %cst_32 = arith.constant dense<0.000000e+00> : vector<8x256xf32>
    %102 = tpu.matmul %99, %30, %cst_32 {dimension_numbers = #tpu.dot_dimension_numbers<[1], [0], [0], [1], [0, 0, 1, 1], [], []>} : vector<8x64xf32>, vector<64x256xf32>, vector<8x256xf32> -> vector<8x256xf32>
    %103 = vector.extract_strided_slice %29 {offsets = [16, 0], sizes = [8, 256], strides = [1, 1]} : vector<64x512xf32> to vector<8x256xf32>
    %104 = arith.addf %102, %103 : vector<8x256xf32>
    %105 = vector.extract_strided_slice %29 {offsets = [40, 256], sizes = [8, 256], strides = [1, 1]} : vector<64x512xf32> to vector<8x256xf32>
    %106 = arith.addf %104, %105 : vector<8x256xf32>
    %107 = vector.broadcast %31 : vector<1x256xf32> to vector<8x256xf32>
    %108 = arith.addf %106, %107 : vector<8x256xf32>
    %109 = vector.extract_strided_slice %108 {offsets = [0, 0], sizes = [8, 64], strides = [1, 1]} : vector<8x256xf32> to vector<8x64xf32>
    %110 = arith.negf %109 : vector<8x64xf32>
    %111 = math.exp %110 : vector<8x64xf32>
    %cst_33 = arith.constant 1.000000e+00 : f32
    %112 = vector.broadcast %cst_33 : f32 to vector<8x64xf32>
    %113 = arith.addf %112, %111 : vector<8x64xf32>
    %114 = arith.divf %112, %113 : vector<8x64xf32>
    %115 = vector.extract_strided_slice %108 {offsets = [0, 64], sizes = [8, 64], strides = [1, 1]} : vector<8x256xf32> to vector<8x64xf32>
    %116 = arith.negf %115 : vector<8x64xf32>
    %117 = math.exp %116 : vector<8x64xf32>
    %cst_34 = arith.constant 1.000000e+00 : f32
    %118 = vector.broadcast %cst_34 : f32 to vector<8x64xf32>
    %119 = arith.addf %118, %117 : vector<8x64xf32>
    %120 = arith.divf %118, %119 : vector<8x64xf32>
    %121 = vector.extract_strided_slice %108 {offsets = [0, 128], sizes = [8, 64], strides = [1, 1]} : vector<8x256xf32> to vector<8x64xf32>
    %122 = math.tanh %121 : vector<8x64xf32>
    %123 = vector.extract_strided_slice %108 {offsets = [0, 192], sizes = [8, 64], strides = [1, 1]} : vector<8x256xf32> to vector<8x64xf32>
    %124 = arith.negf %123 : vector<8x64xf32>
    %125 = math.exp %124 : vector<8x64xf32>
    %cst_35 = arith.constant 1.000000e+00 : f32
    %126 = vector.broadcast %cst_35 : f32 to vector<8x64xf32>
    %127 = arith.addf %126, %125 : vector<8x64xf32>
    %128 = arith.divf %126, %127 : vector<8x64xf32>
    %129 = arith.mulf %120, %97 : vector<8x64xf32>
    %130 = arith.mulf %114, %122 : vector<8x64xf32>
    %131 = arith.addf %129, %130 : vector<8x64xf32>
    %132 = math.tanh %131 : vector<8x64xf32>
    %133 = arith.mulf %128, %132 : vector<8x64xf32>
    %134 = vector.extract_strided_slice %133 {offsets = [0, 0], sizes = [8, 32], strides = [1, 1]} : vector<8x64xf32> to vector<8x32xf32>
    %135 = vector.extract_strided_slice %133 {offsets = [0, 32], sizes = [8, 32], strides = [1, 1]} : vector<8x64xf32> to vector<8x32xf32>
    %cst_36 = arith.constant dense<0.000000e+00> : vector<8x256xf32>
    %136 = tpu.matmul %133, %30, %cst_36 {dimension_numbers = #tpu.dot_dimension_numbers<[1], [0], [0], [1], [0, 0, 1, 1], [], []>} : vector<8x64xf32>, vector<64x256xf32>, vector<8x256xf32> -> vector<8x256xf32>
    %137 = vector.extract_strided_slice %29 {offsets = [24, 0], sizes = [8, 256], strides = [1, 1]} : vector<64x512xf32> to vector<8x256xf32>
    %138 = arith.addf %136, %137 : vector<8x256xf32>
    %139 = vector.extract_strided_slice %29 {offsets = [32, 256], sizes = [8, 256], strides = [1, 1]} : vector<64x512xf32> to vector<8x256xf32>
    %140 = arith.addf %138, %139 : vector<8x256xf32>
    %141 = vector.broadcast %31 : vector<1x256xf32> to vector<8x256xf32>
    %142 = arith.addf %140, %141 : vector<8x256xf32>
    %143 = vector.extract_strided_slice %142 {offsets = [0, 0], sizes = [8, 64], strides = [1, 1]} : vector<8x256xf32> to vector<8x64xf32>
    %144 = arith.negf %143 : vector<8x64xf32>
    %145 = math.exp %144 : vector<8x64xf32>
    %cst_37 = arith.constant 1.000000e+00 : f32
    %146 = vector.broadcast %cst_37 : f32 to vector<8x64xf32>
    %147 = arith.addf %146, %145 : vector<8x64xf32>
    %148 = arith.divf %146, %147 : vector<8x64xf32>
    %149 = vector.extract_strided_slice %142 {offsets = [0, 64], sizes = [8, 64], strides = [1, 1]} : vector<8x256xf32> to vector<8x64xf32>
    %150 = arith.negf %149 : vector<8x64xf32>
    %151 = math.exp %150 : vector<8x64xf32>
    %cst_38 = arith.constant 1.000000e+00 : f32
    %152 = vector.broadcast %cst_38 : f32 to vector<8x64xf32>
    %153 = arith.addf %152, %151 : vector<8x64xf32>
    %154 = arith.divf %152, %153 : vector<8x64xf32>
    %155 = vector.extract_strided_slice %142 {offsets = [0, 128], sizes = [8, 64], strides = [1, 1]} : vector<8x256xf32> to vector<8x64xf32>
    %156 = math.tanh %155 : vector<8x64xf32>
    %157 = vector.extract_strided_slice %142 {offsets = [0, 192], sizes = [8, 64], strides = [1, 1]} : vector<8x256xf32> to vector<8x64xf32>
    %158 = arith.negf %157 : vector<8x64xf32>
    %159 = math.exp %158 : vector<8x64xf32>
    %cst_39 = arith.constant 1.000000e+00 : f32
    %160 = vector.broadcast %cst_39 : f32 to vector<8x64xf32>
    %161 = arith.addf %160, %159 : vector<8x64xf32>
    %162 = arith.divf %160, %161 : vector<8x64xf32>
    %163 = arith.mulf %154, %131 : vector<8x64xf32>
    %164 = arith.mulf %148, %156 : vector<8x64xf32>
    %165 = arith.addf %163, %164 : vector<8x64xf32>
    %166 = math.tanh %165 : vector<8x64xf32>
    %167 = arith.mulf %162, %166 : vector<8x64xf32>
    %168 = vector.extract_strided_slice %167 {offsets = [0, 0], sizes = [8, 32], strides = [1, 1]} : vector<8x64xf32> to vector<8x32xf32>
    %169 = vector.extract_strided_slice %167 {offsets = [0, 32], sizes = [8, 32], strides = [1, 1]} : vector<8x64xf32> to vector<8x32xf32>
    %cst_40 = arith.constant dense<0.000000e+00> : vector<8x256xf32>
    %170 = tpu.matmul %167, %30, %cst_40 {dimension_numbers = #tpu.dot_dimension_numbers<[1], [0], [0], [1], [0, 0, 1, 1], [], []>} : vector<8x64xf32>, vector<64x256xf32>, vector<8x256xf32> -> vector<8x256xf32>
    %171 = vector.extract_strided_slice %29 {offsets = [32, 0], sizes = [8, 256], strides = [1, 1]} : vector<64x512xf32> to vector<8x256xf32>
    %172 = arith.addf %170, %171 : vector<8x256xf32>
    %173 = vector.extract_strided_slice %29 {offsets = [24, 256], sizes = [8, 256], strides = [1, 1]} : vector<64x512xf32> to vector<8x256xf32>
    %174 = arith.addf %172, %173 : vector<8x256xf32>
    %175 = vector.broadcast %31 : vector<1x256xf32> to vector<8x256xf32>
    %176 = arith.addf %174, %175 : vector<8x256xf32>
    %177 = vector.extract_strided_slice %176 {offsets = [0, 0], sizes = [8, 64], strides = [1, 1]} : vector<8x256xf32> to vector<8x64xf32>
    %178 = arith.negf %177 : vector<8x64xf32>
    %179 = math.exp %178 : vector<8x64xf32>
    %cst_41 = arith.constant 1.000000e+00 : f32
    %180 = vector.broadcast %cst_41 : f32 to vector<8x64xf32>
    %181 = arith.addf %180, %179 : vector<8x64xf32>
    %182 = arith.divf %180, %181 : vector<8x64xf32>
    %183 = vector.extract_strided_slice %176 {offsets = [0, 64], sizes = [8, 64], strides = [1, 1]} : vector<8x256xf32> to vector<8x64xf32>
    %184 = arith.negf %183 : vector<8x64xf32>
    %185 = math.exp %184 : vector<8x64xf32>
    %cst_42 = arith.constant 1.000000e+00 : f32
    %186 = vector.broadcast %cst_42 : f32 to vector<8x64xf32>
    %187 = arith.addf %186, %185 : vector<8x64xf32>
    %188 = arith.divf %186, %187 : vector<8x64xf32>
    %189 = vector.extract_strided_slice %176 {offsets = [0, 128], sizes = [8, 64], strides = [1, 1]} : vector<8x256xf32> to vector<8x64xf32>
    %190 = math.tanh %189 : vector<8x64xf32>
    %191 = vector.extract_strided_slice %176 {offsets = [0, 192], sizes = [8, 64], strides = [1, 1]} : vector<8x256xf32> to vector<8x64xf32>
    %192 = arith.negf %191 : vector<8x64xf32>
    %193 = math.exp %192 : vector<8x64xf32>
    %cst_43 = arith.constant 1.000000e+00 : f32
    %194 = vector.broadcast %cst_43 : f32 to vector<8x64xf32>
    %195 = arith.addf %194, %193 : vector<8x64xf32>
    %196 = arith.divf %194, %195 : vector<8x64xf32>
    %197 = arith.mulf %188, %165 : vector<8x64xf32>
    %198 = arith.mulf %182, %190 : vector<8x64xf32>
    %199 = arith.addf %197, %198 : vector<8x64xf32>
    %200 = math.tanh %199 : vector<8x64xf32>
    %201 = arith.mulf %196, %200 : vector<8x64xf32>
    %202 = vector.extract_strided_slice %201 {offsets = [0, 0], sizes = [8, 32], strides = [1, 1]} : vector<8x64xf32> to vector<8x32xf32>
    %203 = vector.extract_strided_slice %201 {offsets = [0, 32], sizes = [8, 32], strides = [1, 1]} : vector<8x64xf32> to vector<8x32xf32>
    %cst_44 = arith.constant dense<0.000000e+00> : vector<8x256xf32>
    %204 = tpu.matmul %201, %30, %cst_44 {dimension_numbers = #tpu.dot_dimension_numbers<[1], [0], [0], [1], [0, 0, 1, 1], [], []>} : vector<8x64xf32>, vector<64x256xf32>, vector<8x256xf32> -> vector<8x256xf32>
    %205 = vector.extract_strided_slice %29 {offsets = [40, 0], sizes = [8, 256], strides = [1, 1]} : vector<64x512xf32> to vector<8x256xf32>
    %206 = arith.addf %204, %205 : vector<8x256xf32>
    %207 = vector.extract_strided_slice %29 {offsets = [16, 256], sizes = [8, 256], strides = [1, 1]} : vector<64x512xf32> to vector<8x256xf32>
    %208 = arith.addf %206, %207 : vector<8x256xf32>
    %209 = vector.broadcast %31 : vector<1x256xf32> to vector<8x256xf32>
    %210 = arith.addf %208, %209 : vector<8x256xf32>
    %211 = vector.extract_strided_slice %210 {offsets = [0, 0], sizes = [8, 64], strides = [1, 1]} : vector<8x256xf32> to vector<8x64xf32>
    %212 = arith.negf %211 : vector<8x64xf32>
    %213 = math.exp %212 : vector<8x64xf32>
    %cst_45 = arith.constant 1.000000e+00 : f32
    %214 = vector.broadcast %cst_45 : f32 to vector<8x64xf32>
    %215 = arith.addf %214, %213 : vector<8x64xf32>
    %216 = arith.divf %214, %215 : vector<8x64xf32>
    %217 = vector.extract_strided_slice %210 {offsets = [0, 64], sizes = [8, 64], strides = [1, 1]} : vector<8x256xf32> to vector<8x64xf32>
    %218 = arith.negf %217 : vector<8x64xf32>
    %219 = math.exp %218 : vector<8x64xf32>
    %cst_46 = arith.constant 1.000000e+00 : f32
    %220 = vector.broadcast %cst_46 : f32 to vector<8x64xf32>
    %221 = arith.addf %220, %219 : vector<8x64xf32>
    %222 = arith.divf %220, %221 : vector<8x64xf32>
    %223 = vector.extract_strided_slice %210 {offsets = [0, 128], sizes = [8, 64], strides = [1, 1]} : vector<8x256xf32> to vector<8x64xf32>
    %224 = math.tanh %223 : vector<8x64xf32>
    %225 = vector.extract_strided_slice %210 {offsets = [0, 192], sizes = [8, 64], strides = [1, 1]} : vector<8x256xf32> to vector<8x64xf32>
    %226 = arith.negf %225 : vector<8x64xf32>
    %227 = math.exp %226 : vector<8x64xf32>
    %cst_47 = arith.constant 1.000000e+00 : f32
    %228 = vector.broadcast %cst_47 : f32 to vector<8x64xf32>
    %229 = arith.addf %228, %227 : vector<8x64xf32>
    %230 = arith.divf %228, %229 : vector<8x64xf32>
    %231 = arith.mulf %222, %199 : vector<8x64xf32>
    %232 = arith.mulf %216, %224 : vector<8x64xf32>
    %233 = arith.addf %231, %232 : vector<8x64xf32>
    %234 = math.tanh %233 : vector<8x64xf32>
    %235 = arith.mulf %230, %234 : vector<8x64xf32>
    %236 = vector.extract_strided_slice %235 {offsets = [0, 0], sizes = [8, 32], strides = [1, 1]} : vector<8x64xf32> to vector<8x32xf32>
    %237 = vector.extract_strided_slice %235 {offsets = [0, 32], sizes = [8, 32], strides = [1, 1]} : vector<8x64xf32> to vector<8x32xf32>
    %cst_48 = arith.constant dense<0.000000e+00> : vector<8x256xf32>
    %238 = tpu.matmul %235, %30, %cst_48 {dimension_numbers = #tpu.dot_dimension_numbers<[1], [0], [0], [1], [0, 0, 1, 1], [], []>} : vector<8x64xf32>, vector<64x256xf32>, vector<8x256xf32> -> vector<8x256xf32>
    %239 = vector.extract_strided_slice %29 {offsets = [48, 0], sizes = [8, 256], strides = [1, 1]} : vector<64x512xf32> to vector<8x256xf32>
    %240 = arith.addf %238, %239 : vector<8x256xf32>
    %241 = vector.extract_strided_slice %29 {offsets = [8, 256], sizes = [8, 256], strides = [1, 1]} : vector<64x512xf32> to vector<8x256xf32>
    %242 = arith.addf %240, %241 : vector<8x256xf32>
    %243 = vector.broadcast %31 : vector<1x256xf32> to vector<8x256xf32>
    %244 = arith.addf %242, %243 : vector<8x256xf32>
    %245 = vector.extract_strided_slice %244 {offsets = [0, 0], sizes = [8, 64], strides = [1, 1]} : vector<8x256xf32> to vector<8x64xf32>
    %246 = arith.negf %245 : vector<8x64xf32>
    %247 = math.exp %246 : vector<8x64xf32>
    %cst_49 = arith.constant 1.000000e+00 : f32
    %248 = vector.broadcast %cst_49 : f32 to vector<8x64xf32>
    %249 = arith.addf %248, %247 : vector<8x64xf32>
    %250 = arith.divf %248, %249 : vector<8x64xf32>
    %251 = vector.extract_strided_slice %244 {offsets = [0, 64], sizes = [8, 64], strides = [1, 1]} : vector<8x256xf32> to vector<8x64xf32>
    %252 = arith.negf %251 : vector<8x64xf32>
    %253 = math.exp %252 : vector<8x64xf32>
    %cst_50 = arith.constant 1.000000e+00 : f32
    %254 = vector.broadcast %cst_50 : f32 to vector<8x64xf32>
    %255 = arith.addf %254, %253 : vector<8x64xf32>
    %256 = arith.divf %254, %255 : vector<8x64xf32>
    %257 = vector.extract_strided_slice %244 {offsets = [0, 128], sizes = [8, 64], strides = [1, 1]} : vector<8x256xf32> to vector<8x64xf32>
    %258 = math.tanh %257 : vector<8x64xf32>
    %259 = vector.extract_strided_slice %244 {offsets = [0, 192], sizes = [8, 64], strides = [1, 1]} : vector<8x256xf32> to vector<8x64xf32>
    %260 = arith.negf %259 : vector<8x64xf32>
    %261 = math.exp %260 : vector<8x64xf32>
    %cst_51 = arith.constant 1.000000e+00 : f32
    %262 = vector.broadcast %cst_51 : f32 to vector<8x64xf32>
    %263 = arith.addf %262, %261 : vector<8x64xf32>
    %264 = arith.divf %262, %263 : vector<8x64xf32>
    %265 = arith.mulf %256, %233 : vector<8x64xf32>
    %266 = arith.mulf %250, %258 : vector<8x64xf32>
    %267 = arith.addf %265, %266 : vector<8x64xf32>
    %268 = math.tanh %267 : vector<8x64xf32>
    %269 = arith.mulf %264, %268 : vector<8x64xf32>
    %270 = vector.extract_strided_slice %269 {offsets = [0, 0], sizes = [8, 32], strides = [1, 1]} : vector<8x64xf32> to vector<8x32xf32>
    %271 = vector.extract_strided_slice %269 {offsets = [0, 32], sizes = [8, 32], strides = [1, 1]} : vector<8x64xf32> to vector<8x32xf32>
    %cst_52 = arith.constant dense<0.000000e+00> : vector<8x256xf32>
    %272 = tpu.matmul %269, %30, %cst_52 {dimension_numbers = #tpu.dot_dimension_numbers<[1], [0], [0], [1], [0, 0, 1, 1], [], []>} : vector<8x64xf32>, vector<64x256xf32>, vector<8x256xf32> -> vector<8x256xf32>
    %273 = vector.extract_strided_slice %29 {offsets = [56, 0], sizes = [8, 256], strides = [1, 1]} : vector<64x512xf32> to vector<8x256xf32>
    %274 = arith.addf %272, %273 : vector<8x256xf32>
    %275 = vector.extract_strided_slice %29 {offsets = [0, 256], sizes = [8, 256], strides = [1, 1]} : vector<64x512xf32> to vector<8x256xf32>
    %276 = arith.addf %274, %275 : vector<8x256xf32>
    %277 = vector.broadcast %31 : vector<1x256xf32> to vector<8x256xf32>
    %278 = arith.addf %276, %277 : vector<8x256xf32>
    %279 = vector.extract_strided_slice %278 {offsets = [0, 0], sizes = [8, 64], strides = [1, 1]} : vector<8x256xf32> to vector<8x64xf32>
    %280 = arith.negf %279 : vector<8x64xf32>
    %281 = math.exp %280 : vector<8x64xf32>
    %cst_53 = arith.constant 1.000000e+00 : f32
    %282 = vector.broadcast %cst_53 : f32 to vector<8x64xf32>
    %283 = arith.addf %282, %281 : vector<8x64xf32>
    %284 = arith.divf %282, %283 : vector<8x64xf32>
    %285 = vector.extract_strided_slice %278 {offsets = [0, 64], sizes = [8, 64], strides = [1, 1]} : vector<8x256xf32> to vector<8x64xf32>
    %286 = arith.negf %285 : vector<8x64xf32>
    %287 = math.exp %286 : vector<8x64xf32>
    %cst_54 = arith.constant 1.000000e+00 : f32
    %288 = vector.broadcast %cst_54 : f32 to vector<8x64xf32>
    %289 = arith.addf %288, %287 : vector<8x64xf32>
    %290 = arith.divf %288, %289 : vector<8x64xf32>
    %291 = vector.extract_strided_slice %278 {offsets = [0, 128], sizes = [8, 64], strides = [1, 1]} : vector<8x256xf32> to vector<8x64xf32>
    %292 = math.tanh %291 : vector<8x64xf32>
    %293 = vector.extract_strided_slice %278 {offsets = [0, 192], sizes = [8, 64], strides = [1, 1]} : vector<8x256xf32> to vector<8x64xf32>
    %294 = arith.negf %293 : vector<8x64xf32>
    %295 = math.exp %294 : vector<8x64xf32>
    %cst_55 = arith.constant 1.000000e+00 : f32
    %296 = vector.broadcast %cst_55 : f32 to vector<8x64xf32>
    %297 = arith.addf %296, %295 : vector<8x64xf32>
    %298 = arith.divf %296, %297 : vector<8x64xf32>
    %299 = arith.mulf %290, %267 : vector<8x64xf32>
    %300 = arith.mulf %284, %292 : vector<8x64xf32>
    %301 = arith.addf %299, %300 : vector<8x64xf32>
    %302 = math.tanh %301 : vector<8x64xf32>
    %303 = arith.mulf %298, %302 : vector<8x64xf32>
    %304 = vector.extract_strided_slice %303 {offsets = [0, 0], sizes = [8, 32], strides = [1, 1]} : vector<8x64xf32> to vector<8x32xf32>
    %305 = vector.extract_strided_slice %303 {offsets = [0, 32], sizes = [8, 32], strides = [1, 1]} : vector<8x64xf32> to vector<8x32xf32>
    %306 = vector.shape_cast %66 : vector<8x32xf32> to vector<1x8x32xf32>
    %307 = vector.shape_cast %100 : vector<8x32xf32> to vector<1x8x32xf32>
    %308 = vector.shape_cast %134 : vector<8x32xf32> to vector<1x8x32xf32>
    %309 = vector.shape_cast %168 : vector<8x32xf32> to vector<1x8x32xf32>
    %310 = vector.shape_cast %202 : vector<8x32xf32> to vector<1x8x32xf32>
    %311 = vector.shape_cast %236 : vector<8x32xf32> to vector<1x8x32xf32>
    %312 = vector.shape_cast %270 : vector<8x32xf32> to vector<1x8x32xf32>
    %313 = vector.shape_cast %304 : vector<8x32xf32> to vector<1x8x32xf32>
    %314 = tpu.concatenate %306, %307, %308, %309, %310, %311, %312, %313 in 0 : vector<1x8x32xf32>, vector<1x8x32xf32>, vector<1x8x32xf32>, vector<1x8x32xf32>, vector<1x8x32xf32>, vector<1x8x32xf32>, vector<1x8x32xf32>, vector<1x8x32xf32> -> vector<8x8x32xf32>
    %315 = vector.shape_cast %305 : vector<8x32xf32> to vector<1x8x32xf32>
    %316 = vector.shape_cast %271 : vector<8x32xf32> to vector<1x8x32xf32>
    %317 = vector.shape_cast %237 : vector<8x32xf32> to vector<1x8x32xf32>
    %318 = vector.shape_cast %203 : vector<8x32xf32> to vector<1x8x32xf32>
    %319 = vector.shape_cast %169 : vector<8x32xf32> to vector<1x8x32xf32>
    %320 = vector.shape_cast %135 : vector<8x32xf32> to vector<1x8x32xf32>
    %321 = vector.shape_cast %101 : vector<8x32xf32> to vector<1x8x32xf32>
    %322 = vector.shape_cast %67 : vector<8x32xf32> to vector<1x8x32xf32>
    %323 = tpu.concatenate %315, %316, %317, %318, %319, %320, %321, %322 in 0 : vector<1x8x32xf32>, vector<1x8x32xf32>, vector<1x8x32xf32>, vector<1x8x32xf32>, vector<1x8x32xf32>, vector<1x8x32xf32>, vector<1x8x32xf32>, vector<1x8x32xf32> -> vector<8x8x32xf32>
    %324 = tpu.concatenate %314, %323 in 2 : vector<8x8x32xf32>, vector<8x8x32xf32> -> vector<8x8x64xf32>
    %325 = vector.broadcast %0 : vector<8x8x1xf32> to vector<8x8x64xf32>
    %326 = arith.mulf %324, %325 : vector<8x8x64xf32>
    %cst_56 = arith.constant dense<0.000000e+00> : vector<8x1xf32>
    %327 = vector.multi_reduction <add>, %0, %cst_56 [0] : vector<8x8x1xf32> to vector<8x1xf32>
    %cst_57 = arith.constant dense<0.000000e+00> : vector<8x64xf32>
    %328 = vector.multi_reduction <add>, %326, %cst_57 [0] : vector<8x8x64xf32> to vector<8x64xf32>
    %329 = tpu.reciprocal %327 {approx = true} : vector<8x1xf32> -> vector<8x1xf32>
    %330 = vector.broadcast %329 : vector<8x1xf32> to vector<8x64xf32>
    %331 = arith.mulf %328, %330 : vector<8x64xf32>
    %c0_58 = arith.constant 0 : index
    %c0_59 = arith.constant 0 : index
    %332 = vector.load %arg10[%c0_58, %c0_59] : memref<64x64xf32, #tpu.memory_space<vmem>>, vector<64x64xf32>
    %cst_60 = arith.constant dense<0.000000e+00> : vector<8x64xf32>
    %333 = tpu.matmul %331, %332, %cst_60 {dimension_numbers = #tpu.dot_dimension_numbers<[1], [0], [0], [1], [0, 0, 1, 1], [], []>} : vector<8x64xf32>, vector<64x64xf32>, vector<8x64xf32> -> vector<8x64xf32>
    %c0_61 = arith.constant 0 : index
    %c0_62 = arith.constant 0 : index
    %334 = vector.load %arg11[%c0_61, %c0_62] : memref<1x64xf32, #tpu.memory_space<vmem>>, vector<1x64xf32>
    %335 = vector.broadcast %334 : vector<1x64xf32> to vector<8x64xf32>
    %336 = arith.addf %333, %335 : vector<8x64xf32>
    %337 = math.tanh %336 : vector<8x64xf32>
    %338 = vector.extract_strided_slice %337 {offsets = [0, 0], sizes = [8, 32], strides = [1, 1]} : vector<8x64xf32> to vector<8x32xf32>
    %339 = vector.extract_strided_slice %337 {offsets = [0, 32], sizes = [8, 32], strides = [1, 1]} : vector<8x64xf32> to vector<8x32xf32>
    %340 = vector.shape_cast %326 : vector<8x8x64xf32> to vector<64x64xf32>
    %c0_63 = arith.constant 0 : index
    %c0_64 = arith.constant 0 : index
    %341 = vector.load %arg12[%c0_63, %c0_64] : memref<64x32xf32, #tpu.memory_space<vmem>>, vector<64x32xf32>
    %cst_65 = arith.constant dense<0.000000e+00> : vector<64x32xf32>
    %342 = tpu.matmul %340, %341, %cst_65 {dimension_numbers = #tpu.dot_dimension_numbers<[1], [0], [0], [1], [0, 0, 1, 1], [], []>} : vector<64x64xf32>, vector<64x32xf32>, vector<64x32xf32> -> vector<64x32xf32>
    %343 = vector.shape_cast %342 : vector<64x32xf32> to vector<8x8x32xf32>
    %c0_66 = arith.constant 0 : index
    %c0_67 = arith.constant 0 : index
    %344 = vector.load %arg13[%c0_66, %c0_67] : memref<32x32xf32, #tpu.memory_space<vmem>>, vector<32x32xf32>
    %cst_68 = arith.constant dense<0.000000e+00> : vector<64x32xf32>
    %345 = tpu.matmul %27, %344, %cst_68 {dimension_numbers = #tpu.dot_dimension_numbers<[1], [0], [0], [1], [0, 0, 1, 1], [], []>} : vector<64x32xf32>, vector<32x32xf32>, vector<64x32xf32> -> vector<64x32xf32>
    %c0_69 = arith.constant 0 : index
    %c0_70 = arith.constant 0 : index
    %346 = vector.load %arg15[%c0_69, %c0_70] : memref<1x32xf32, #tpu.memory_space<vmem>>, vector<1x32xf32>
    %347 = vector.broadcast %346 : vector<1x32xf32> to vector<64x32xf32>
    %348 = arith.addf %345, %347 : vector<64x32xf32>
    %c0_71 = arith.constant 0 : index
    %c0_72 = arith.constant 0 : index
    %349 = vector.load %arg17[%c0_71, %c0_72] : memref<32x128xf32, #tpu.memory_space<vmem>>, vector<32x128xf32>
    %cst_73 = arith.constant dense<0.000000e+00> : vector<64x128xf32>
    %350 = tpu.matmul %27, %349, %cst_73 {dimension_numbers = #tpu.dot_dimension_numbers<[1], [0], [0], [1], [0, 0, 1, 1], [], []>} : vector<64x32xf32>, vector<32x128xf32>, vector<64x128xf32> -> vector<64x128xf32>
    %c0_74 = arith.constant 0 : index
    %c0_75 = arith.constant 0 : index
    %351 = vector.load %arg19[%c0_74, %c0_75] : memref<1x128xf32, #tpu.memory_space<vmem>>, vector<1x128xf32>
    %352 = vector.broadcast %351 : vector<1x128xf32> to vector<64x128xf32>
    %353 = arith.addf %350, %352 : vector<64x128xf32>
    %c0_76 = arith.constant 0 : index
    %c0_77 = arith.constant 0 : index
    %354 = vector.load %arg14[%c0_76, %c0_77] : memref<32x32xf32, #tpu.memory_space<vmem>>, vector<32x32xf32>
    %c0_78 = arith.constant 0 : index
    %c0_79 = arith.constant 0 : index
    %355 = vector.load %arg16[%c0_78, %c0_79] : memref<1x32xf32, #tpu.memory_space<vmem>>, vector<1x32xf32>
    %356 = vector.shape_cast %355 : vector<1x32xf32> to vector<1x1x32xf32>
    %c0_80 = arith.constant 0 : index
    %c0_81 = arith.constant 0 : index
    %357 = vector.load %arg18[%c0_80, %c0_81] : memref<96x128xf32, #tpu.memory_space<vmem>>, vector<96x128xf32>
    %cst_82 = arith.constant dense<0.000000e+00> : vector<8x32xf32>
    %358 = tpu.matmul %338, %354, %cst_82 {dimension_numbers = #tpu.dot_dimension_numbers<[1], [0], [0], [1], [0, 0, 1, 1], [], []>} : vector<8x32xf32>, vector<32x32xf32>, vector<8x32xf32> -> vector<8x32xf32>
    %359 = vector.extract_strided_slice %348 {offsets = [0, 0], sizes = [8, 32], strides = [1, 1]} : vector<64x32xf32> to vector<8x32xf32>
    %360 = arith.addf %358, %359 : vector<8x32xf32>
    %361 = vector.shape_cast %360 : vector<8x32xf32> to vector<1x8x32xf32>
    %362 = vector.broadcast %361 : vector<1x8x32xf32> to vector<8x8x32xf32>
    %363 = arith.addf %343, %362 : vector<8x8x32xf32>
    %364 = math.tanh %363 : vector<8x8x32xf32>
    %365 = vector.broadcast %356 : vector<1x1x32xf32> to vector<8x8x32xf32>
    %366 = arith.mulf %364, %365 : vector<8x8x32xf32>
    %cst_83 = arith.constant dense<0.000000e+00> : vector<8x8xf32>
    %367 = vector.multi_reduction <add>, %366, %cst_83 [2] : vector<8x8x32xf32> to vector<8x8xf32>
    %368 = vector.shape_cast %367 : vector<8x8xf32> to vector<8x8x1xf32>
    %cst_84 = arith.constant dense<0xFF800000> : vector<8x1xf32>
    %369 = vector.multi_reduction <maximumf>, %368, %cst_84 [0] : vector<8x8x1xf32> to vector<8x1xf32>
    %370 = vector.shape_cast %369 : vector<8x1xf32> to vector<1x8x1xf32>
    %371 = vector.broadcast %370 : vector<1x8x1xf32> to vector<8x8x1xf32>
    %372 = arith.subf %368, %371 : vector<8x8x1xf32>
    %373 = math.exp %372 : vector<8x8x1xf32>
    %374 = arith.mulf %373, %0 : vector<8x8x1xf32>
    %cst_85 = arith.constant dense<0.000000e+00> : vector<8x1xf32>
    %375 = vector.multi_reduction <add>, %374, %cst_85 [0] : vector<8x8x1xf32> to vector<8x1xf32>
    %376 = vector.broadcast %374 : vector<8x8x1xf32> to vector<8x8x64xf32>
    %377 = arith.mulf %376, %326 : vector<8x8x64xf32>
    %cst_86 = arith.constant dense<0.000000e+00> : vector<8x64xf32>
    %378 = vector.multi_reduction <add>, %377, %cst_86 [0] : vector<8x8x64xf32> to vector<8x64xf32>
    %cst_87 = arith.constant 1.000000e-15 : f32
    %379 = vector.broadcast %cst_87 : f32 to vector<8x1xf32>
    %380 = arith.addf %375, %379 : vector<8x1xf32>
    %381 = tpu.reciprocal %380 {approx = true} : vector<8x1xf32> -> vector<8x1xf32>
    %382 = vector.broadcast %381 : vector<8x1xf32> to vector<8x64xf32>
    %383 = arith.mulf %378, %382 : vector<8x64xf32>
    %384 = tpu.concatenate %383, %338 in 1 : vector<8x64xf32>, vector<8x32xf32> -> vector<8x96xf32>
    %cst_88 = arith.constant dense<0.000000e+00> : vector<8x128xf32>
    %385 = tpu.matmul %384, %357, %cst_88 {dimension_numbers = #tpu.dot_dimension_numbers<[1], [0], [0], [1], [0, 0, 1, 1], [], []>} : vector<8x96xf32>, vector<96x128xf32>, vector<8x128xf32> -> vector<8x128xf32>
    %386 = vector.extract_strided_slice %353 {offsets = [0, 0], sizes = [8, 128], strides = [1, 1]} : vector<64x128xf32> to vector<8x128xf32>
    %387 = arith.addf %385, %386 : vector<8x128xf32>
    %388 = vector.extract_strided_slice %387 {offsets = [0, 0], sizes = [8, 32], strides = [1, 1]} : vector<8x128xf32> to vector<8x32xf32>
    %389 = arith.negf %388 : vector<8x32xf32>
    %390 = math.exp %389 : vector<8x32xf32>
    %cst_89 = arith.constant 1.000000e+00 : f32
    %391 = vector.broadcast %cst_89 : f32 to vector<8x32xf32>
    %392 = arith.addf %391, %390 : vector<8x32xf32>
    %393 = arith.divf %391, %392 : vector<8x32xf32>
    %394 = vector.extract_strided_slice %387 {offsets = [0, 32], sizes = [8, 32], strides = [1, 1]} : vector<8x128xf32> to vector<8x32xf32>
    %395 = arith.negf %394 : vector<8x32xf32>
    %396 = math.exp %395 : vector<8x32xf32>
    %cst_90 = arith.constant 1.000000e+00 : f32
    %397 = vector.broadcast %cst_90 : f32 to vector<8x32xf32>
    %398 = arith.addf %397, %396 : vector<8x32xf32>
    %399 = arith.divf %397, %398 : vector<8x32xf32>
    %400 = vector.extract_strided_slice %387 {offsets = [0, 64], sizes = [8, 32], strides = [1, 1]} : vector<8x128xf32> to vector<8x32xf32>
    %401 = math.tanh %400 : vector<8x32xf32>
    %402 = vector.extract_strided_slice %387 {offsets = [0, 96], sizes = [8, 32], strides = [1, 1]} : vector<8x128xf32> to vector<8x32xf32>
    %403 = arith.negf %402 : vector<8x32xf32>
    %404 = math.exp %403 : vector<8x32xf32>
    %cst_91 = arith.constant 1.000000e+00 : f32
    %405 = vector.broadcast %cst_91 : f32 to vector<8x32xf32>
    %406 = arith.addf %405, %404 : vector<8x32xf32>
    %407 = arith.divf %405, %406 : vector<8x32xf32>
    %408 = arith.mulf %399, %339 : vector<8x32xf32>
    %409 = arith.mulf %393, %401 : vector<8x32xf32>
    %410 = arith.addf %408, %409 : vector<8x32xf32>
    %411 = math.tanh %410 : vector<8x32xf32>
    %412 = arith.mulf %407, %411 : vector<8x32xf32>
    %cst_92 = arith.constant dense<0.000000e+00> : vector<8x32xf32>
    %413 = tpu.matmul %412, %354, %cst_92 {dimension_numbers = #tpu.dot_dimension_numbers<[1], [0], [0], [1], [0, 0, 1, 1], [], []>} : vector<8x32xf32>, vector<32x32xf32>, vector<8x32xf32> -> vector<8x32xf32>
    %414 = vector.extract_strided_slice %348 {offsets = [8, 0], sizes = [8, 32], strides = [1, 1]} : vector<64x32xf32> to vector<8x32xf32>
    %415 = arith.addf %413, %414 : vector<8x32xf32>
    %416 = vector.shape_cast %415 : vector<8x32xf32> to vector<1x8x32xf32>
    %417 = vector.broadcast %416 : vector<1x8x32xf32> to vector<8x8x32xf32>
    %418 = arith.addf %343, %417 : vector<8x8x32xf32>
    %419 = math.tanh %418 : vector<8x8x32xf32>
    %420 = vector.broadcast %356 : vector<1x1x32xf32> to vector<8x8x32xf32>
    %421 = arith.mulf %419, %420 : vector<8x8x32xf32>
    %cst_93 = arith.constant dense<0.000000e+00> : vector<8x8xf32>
    %422 = vector.multi_reduction <add>, %421, %cst_93 [2] : vector<8x8x32xf32> to vector<8x8xf32>
    %423 = vector.shape_cast %422 : vector<8x8xf32> to vector<8x8x1xf32>
    %cst_94 = arith.constant dense<0xFF800000> : vector<8x1xf32>
    %424 = vector.multi_reduction <maximumf>, %423, %cst_94 [0] : vector<8x8x1xf32> to vector<8x1xf32>
    %425 = vector.shape_cast %424 : vector<8x1xf32> to vector<1x8x1xf32>
    %426 = vector.broadcast %425 : vector<1x8x1xf32> to vector<8x8x1xf32>
    %427 = arith.subf %423, %426 : vector<8x8x1xf32>
    %428 = math.exp %427 : vector<8x8x1xf32>
    %429 = arith.mulf %428, %0 : vector<8x8x1xf32>
    %cst_95 = arith.constant dense<0.000000e+00> : vector<8x1xf32>
    %430 = vector.multi_reduction <add>, %429, %cst_95 [0] : vector<8x8x1xf32> to vector<8x1xf32>
    %431 = vector.broadcast %429 : vector<8x8x1xf32> to vector<8x8x64xf32>
    %432 = arith.mulf %431, %326 : vector<8x8x64xf32>
    %cst_96 = arith.constant dense<0.000000e+00> : vector<8x64xf32>
    %433 = vector.multi_reduction <add>, %432, %cst_96 [0] : vector<8x8x64xf32> to vector<8x64xf32>
    %cst_97 = arith.constant 1.000000e-15 : f32
    %434 = vector.broadcast %cst_97 : f32 to vector<8x1xf32>
    %435 = arith.addf %430, %434 : vector<8x1xf32>
    %436 = tpu.reciprocal %435 {approx = true} : vector<8x1xf32> -> vector<8x1xf32>
    %437 = vector.broadcast %436 : vector<8x1xf32> to vector<8x64xf32>
    %438 = arith.mulf %433, %437 : vector<8x64xf32>
    %439 = tpu.concatenate %438, %412 in 1 : vector<8x64xf32>, vector<8x32xf32> -> vector<8x96xf32>
    %cst_98 = arith.constant dense<0.000000e+00> : vector<8x128xf32>
    %440 = tpu.matmul %439, %357, %cst_98 {dimension_numbers = #tpu.dot_dimension_numbers<[1], [0], [0], [1], [0, 0, 1, 1], [], []>} : vector<8x96xf32>, vector<96x128xf32>, vector<8x128xf32> -> vector<8x128xf32>
    %441 = vector.extract_strided_slice %353 {offsets = [8, 0], sizes = [8, 128], strides = [1, 1]} : vector<64x128xf32> to vector<8x128xf32>
    %442 = arith.addf %440, %441 : vector<8x128xf32>
    %443 = vector.extract_strided_slice %442 {offsets = [0, 0], sizes = [8, 32], strides = [1, 1]} : vector<8x128xf32> to vector<8x32xf32>
    %444 = arith.negf %443 : vector<8x32xf32>
    %445 = math.exp %444 : vector<8x32xf32>
    %cst_99 = arith.constant 1.000000e+00 : f32
    %446 = vector.broadcast %cst_99 : f32 to vector<8x32xf32>
    %447 = arith.addf %446, %445 : vector<8x32xf32>
    %448 = arith.divf %446, %447 : vector<8x32xf32>
    %449 = vector.extract_strided_slice %442 {offsets = [0, 32], sizes = [8, 32], strides = [1, 1]} : vector<8x128xf32> to vector<8x32xf32>
    %450 = arith.negf %449 : vector<8x32xf32>
    %451 = math.exp %450 : vector<8x32xf32>
    %cst_100 = arith.constant 1.000000e+00 : f32
    %452 = vector.broadcast %cst_100 : f32 to vector<8x32xf32>
    %453 = arith.addf %452, %451 : vector<8x32xf32>
    %454 = arith.divf %452, %453 : vector<8x32xf32>
    %455 = vector.extract_strided_slice %442 {offsets = [0, 64], sizes = [8, 32], strides = [1, 1]} : vector<8x128xf32> to vector<8x32xf32>
    %456 = math.tanh %455 : vector<8x32xf32>
    %457 = vector.extract_strided_slice %442 {offsets = [0, 96], sizes = [8, 32], strides = [1, 1]} : vector<8x128xf32> to vector<8x32xf32>
    %458 = arith.negf %457 : vector<8x32xf32>
    %459 = math.exp %458 : vector<8x32xf32>
    %cst_101 = arith.constant 1.000000e+00 : f32
    %460 = vector.broadcast %cst_101 : f32 to vector<8x32xf32>
    %461 = arith.addf %460, %459 : vector<8x32xf32>
    %462 = arith.divf %460, %461 : vector<8x32xf32>
    %463 = arith.mulf %454, %410 : vector<8x32xf32>
    %464 = arith.mulf %448, %456 : vector<8x32xf32>
    %465 = arith.addf %463, %464 : vector<8x32xf32>
    %466 = math.tanh %465 : vector<8x32xf32>
    %467 = arith.mulf %462, %466 : vector<8x32xf32>
    %cst_102 = arith.constant dense<0.000000e+00> : vector<8x32xf32>
    %468 = tpu.matmul %467, %354, %cst_102 {dimension_numbers = #tpu.dot_dimension_numbers<[1], [0], [0], [1], [0, 0, 1, 1], [], []>} : vector<8x32xf32>, vector<32x32xf32>, vector<8x32xf32> -> vector<8x32xf32>
    %469 = vector.extract_strided_slice %348 {offsets = [16, 0], sizes = [8, 32], strides = [1, 1]} : vector<64x32xf32> to vector<8x32xf32>
    %470 = arith.addf %468, %469 : vector<8x32xf32>
    %471 = vector.shape_cast %470 : vector<8x32xf32> to vector<1x8x32xf32>
    %472 = vector.broadcast %471 : vector<1x8x32xf32> to vector<8x8x32xf32>
    %473 = arith.addf %343, %472 : vector<8x8x32xf32>
    %474 = math.tanh %473 : vector<8x8x32xf32>
    %475 = vector.broadcast %356 : vector<1x1x32xf32> to vector<8x8x32xf32>
    %476 = arith.mulf %474, %475 : vector<8x8x32xf32>
    %cst_103 = arith.constant dense<0.000000e+00> : vector<8x8xf32>
    %477 = vector.multi_reduction <add>, %476, %cst_103 [2] : vector<8x8x32xf32> to vector<8x8xf32>
    %478 = vector.shape_cast %477 : vector<8x8xf32> to vector<8x8x1xf32>
    %cst_104 = arith.constant dense<0xFF800000> : vector<8x1xf32>
    %479 = vector.multi_reduction <maximumf>, %478, %cst_104 [0] : vector<8x8x1xf32> to vector<8x1xf32>
    %480 = vector.shape_cast %479 : vector<8x1xf32> to vector<1x8x1xf32>
    %481 = vector.broadcast %480 : vector<1x8x1xf32> to vector<8x8x1xf32>
    %482 = arith.subf %478, %481 : vector<8x8x1xf32>
    %483 = math.exp %482 : vector<8x8x1xf32>
    %484 = arith.mulf %483, %0 : vector<8x8x1xf32>
    %cst_105 = arith.constant dense<0.000000e+00> : vector<8x1xf32>
    %485 = vector.multi_reduction <add>, %484, %cst_105 [0] : vector<8x8x1xf32> to vector<8x1xf32>
    %486 = vector.broadcast %484 : vector<8x8x1xf32> to vector<8x8x64xf32>
    %487 = arith.mulf %486, %326 : vector<8x8x64xf32>
    %cst_106 = arith.constant dense<0.000000e+00> : vector<8x64xf32>
    %488 = vector.multi_reduction <add>, %487, %cst_106 [0] : vector<8x8x64xf32> to vector<8x64xf32>
    %cst_107 = arith.constant 1.000000e-15 : f32
    %489 = vector.broadcast %cst_107 : f32 to vector<8x1xf32>
    %490 = arith.addf %485, %489 : vector<8x1xf32>
    %491 = tpu.reciprocal %490 {approx = true} : vector<8x1xf32> -> vector<8x1xf32>
    %492 = vector.broadcast %491 : vector<8x1xf32> to vector<8x64xf32>
    %493 = arith.mulf %488, %492 : vector<8x64xf32>
    %494 = tpu.concatenate %493, %467 in 1 : vector<8x64xf32>, vector<8x32xf32> -> vector<8x96xf32>
    %cst_108 = arith.constant dense<0.000000e+00> : vector<8x128xf32>
    %495 = tpu.matmul %494, %357, %cst_108 {dimension_numbers = #tpu.dot_dimension_numbers<[1], [0], [0], [1], [0, 0, 1, 1], [], []>} : vector<8x96xf32>, vector<96x128xf32>, vector<8x128xf32> -> vector<8x128xf32>
    %496 = vector.extract_strided_slice %353 {offsets = [16, 0], sizes = [8, 128], strides = [1, 1]} : vector<64x128xf32> to vector<8x128xf32>
    %497 = arith.addf %495, %496 : vector<8x128xf32>
    %498 = vector.extract_strided_slice %497 {offsets = [0, 0], sizes = [8, 32], strides = [1, 1]} : vector<8x128xf32> to vector<8x32xf32>
    %499 = arith.negf %498 : vector<8x32xf32>
    %500 = math.exp %499 : vector<8x32xf32>
    %cst_109 = arith.constant 1.000000e+00 : f32
    %501 = vector.broadcast %cst_109 : f32 to vector<8x32xf32>
    %502 = arith.addf %501, %500 : vector<8x32xf32>
    %503 = arith.divf %501, %502 : vector<8x32xf32>
    %504 = vector.extract_strided_slice %497 {offsets = [0, 32], sizes = [8, 32], strides = [1, 1]} : vector<8x128xf32> to vector<8x32xf32>
    %505 = arith.negf %504 : vector<8x32xf32>
    %506 = math.exp %505 : vector<8x32xf32>
    %cst_110 = arith.constant 1.000000e+00 : f32
    %507 = vector.broadcast %cst_110 : f32 to vector<8x32xf32>
    %508 = arith.addf %507, %506 : vector<8x32xf32>
    %509 = arith.divf %507, %508 : vector<8x32xf32>
    %510 = vector.extract_strided_slice %497 {offsets = [0, 64], sizes = [8, 32], strides = [1, 1]} : vector<8x128xf32> to vector<8x32xf32>
    %511 = math.tanh %510 : vector<8x32xf32>
    %512 = vector.extract_strided_slice %497 {offsets = [0, 96], sizes = [8, 32], strides = [1, 1]} : vector<8x128xf32> to vector<8x32xf32>
    %513 = arith.negf %512 : vector<8x32xf32>
    %514 = math.exp %513 : vector<8x32xf32>
    %cst_111 = arith.constant 1.000000e+00 : f32
    %515 = vector.broadcast %cst_111 : f32 to vector<8x32xf32>
    %516 = arith.addf %515, %514 : vector<8x32xf32>
    %517 = arith.divf %515, %516 : vector<8x32xf32>
    %518 = arith.mulf %509, %465 : vector<8x32xf32>
    %519 = arith.mulf %503, %511 : vector<8x32xf32>
    %520 = arith.addf %518, %519 : vector<8x32xf32>
    %521 = math.tanh %520 : vector<8x32xf32>
    %522 = arith.mulf %517, %521 : vector<8x32xf32>
    %cst_112 = arith.constant dense<0.000000e+00> : vector<8x32xf32>
    %523 = tpu.matmul %522, %354, %cst_112 {dimension_numbers = #tpu.dot_dimension_numbers<[1], [0], [0], [1], [0, 0, 1, 1], [], []>} : vector<8x32xf32>, vector<32x32xf32>, vector<8x32xf32> -> vector<8x32xf32>
    %524 = vector.extract_strided_slice %348 {offsets = [24, 0], sizes = [8, 32], strides = [1, 1]} : vector<64x32xf32> to vector<8x32xf32>
    %525 = arith.addf %523, %524 : vector<8x32xf32>
    %526 = vector.shape_cast %525 : vector<8x32xf32> to vector<1x8x32xf32>
    %527 = vector.broadcast %526 : vector<1x8x32xf32> to vector<8x8x32xf32>
    %528 = arith.addf %343, %527 : vector<8x8x32xf32>
    %529 = math.tanh %528 : vector<8x8x32xf32>
    %530 = vector.broadcast %356 : vector<1x1x32xf32> to vector<8x8x32xf32>
    %531 = arith.mulf %529, %530 : vector<8x8x32xf32>
    %cst_113 = arith.constant dense<0.000000e+00> : vector<8x8xf32>
    %532 = vector.multi_reduction <add>, %531, %cst_113 [2] : vector<8x8x32xf32> to vector<8x8xf32>
    %533 = vector.shape_cast %532 : vector<8x8xf32> to vector<8x8x1xf32>
    %cst_114 = arith.constant dense<0xFF800000> : vector<8x1xf32>
    %534 = vector.multi_reduction <maximumf>, %533, %cst_114 [0] : vector<8x8x1xf32> to vector<8x1xf32>
    %535 = vector.shape_cast %534 : vector<8x1xf32> to vector<1x8x1xf32>
    %536 = vector.broadcast %535 : vector<1x8x1xf32> to vector<8x8x1xf32>
    %537 = arith.subf %533, %536 : vector<8x8x1xf32>
    %538 = math.exp %537 : vector<8x8x1xf32>
    %539 = arith.mulf %538, %0 : vector<8x8x1xf32>
    %cst_115 = arith.constant dense<0.000000e+00> : vector<8x1xf32>
    %540 = vector.multi_reduction <add>, %539, %cst_115 [0] : vector<8x8x1xf32> to vector<8x1xf32>
    %541 = vector.broadcast %539 : vector<8x8x1xf32> to vector<8x8x64xf32>
    %542 = arith.mulf %541, %326 : vector<8x8x64xf32>
    %cst_116 = arith.constant dense<0.000000e+00> : vector<8x64xf32>
    %543 = vector.multi_reduction <add>, %542, %cst_116 [0] : vector<8x8x64xf32> to vector<8x64xf32>
    %cst_117 = arith.constant 1.000000e-15 : f32
    %544 = vector.broadcast %cst_117 : f32 to vector<8x1xf32>
    %545 = arith.addf %540, %544 : vector<8x1xf32>
    %546 = tpu.reciprocal %545 {approx = true} : vector<8x1xf32> -> vector<8x1xf32>
    %547 = vector.broadcast %546 : vector<8x1xf32> to vector<8x64xf32>
    %548 = arith.mulf %543, %547 : vector<8x64xf32>
    %549 = tpu.concatenate %548, %522 in 1 : vector<8x64xf32>, vector<8x32xf32> -> vector<8x96xf32>
    %cst_118 = arith.constant dense<0.000000e+00> : vector<8x128xf32>
    %550 = tpu.matmul %549, %357, %cst_118 {dimension_numbers = #tpu.dot_dimension_numbers<[1], [0], [0], [1], [0, 0, 1, 1], [], []>} : vector<8x96xf32>, vector<96x128xf32>, vector<8x128xf32> -> vector<8x128xf32>
    %551 = vector.extract_strided_slice %353 {offsets = [24, 0], sizes = [8, 128], strides = [1, 1]} : vector<64x128xf32> to vector<8x128xf32>
    %552 = arith.addf %550, %551 : vector<8x128xf32>
    %553 = vector.extract_strided_slice %552 {offsets = [0, 0], sizes = [8, 32], strides = [1, 1]} : vector<8x128xf32> to vector<8x32xf32>
    %554 = arith.negf %553 : vector<8x32xf32>
    %555 = math.exp %554 : vector<8x32xf32>
    %cst_119 = arith.constant 1.000000e+00 : f32
    %556 = vector.broadcast %cst_119 : f32 to vector<8x32xf32>
    %557 = arith.addf %556, %555 : vector<8x32xf32>
    %558 = arith.divf %556, %557 : vector<8x32xf32>
    %559 = vector.extract_strided_slice %552 {offsets = [0, 32], sizes = [8, 32], strides = [1, 1]} : vector<8x128xf32> to vector<8x32xf32>
    %560 = arith.negf %559 : vector<8x32xf32>
    %561 = math.exp %560 : vector<8x32xf32>
    %cst_120 = arith.constant 1.000000e+00 : f32
    %562 = vector.broadcast %cst_120 : f32 to vector<8x32xf32>
    %563 = arith.addf %562, %561 : vector<8x32xf32>
    %564 = arith.divf %562, %563 : vector<8x32xf32>
    %565 = vector.extract_strided_slice %552 {offsets = [0, 64], sizes = [8, 32], strides = [1, 1]} : vector<8x128xf32> to vector<8x32xf32>
    %566 = math.tanh %565 : vector<8x32xf32>
    %567 = vector.extract_strided_slice %552 {offsets = [0, 96], sizes = [8, 32], strides = [1, 1]} : vector<8x128xf32> to vector<8x32xf32>
    %568 = arith.negf %567 : vector<8x32xf32>
    %569 = math.exp %568 : vector<8x32xf32>
    %cst_121 = arith.constant 1.000000e+00 : f32
    %570 = vector.broadcast %cst_121 : f32 to vector<8x32xf32>
    %571 = arith.addf %570, %569 : vector<8x32xf32>
    %572 = arith.divf %570, %571 : vector<8x32xf32>
    %573 = arith.mulf %564, %520 : vector<8x32xf32>
    %574 = arith.mulf %558, %566 : vector<8x32xf32>
    %575 = arith.addf %573, %574 : vector<8x32xf32>
    %576 = math.tanh %575 : vector<8x32xf32>
    %577 = arith.mulf %572, %576 : vector<8x32xf32>
    %cst_122 = arith.constant dense<0.000000e+00> : vector<8x32xf32>
    %578 = tpu.matmul %577, %354, %cst_122 {dimension_numbers = #tpu.dot_dimension_numbers<[1], [0], [0], [1], [0, 0, 1, 1], [], []>} : vector<8x32xf32>, vector<32x32xf32>, vector<8x32xf32> -> vector<8x32xf32>
    %579 = vector.extract_strided_slice %348 {offsets = [32, 0], sizes = [8, 32], strides = [1, 1]} : vector<64x32xf32> to vector<8x32xf32>
    %580 = arith.addf %578, %579 : vector<8x32xf32>
    %581 = vector.shape_cast %580 : vector<8x32xf32> to vector<1x8x32xf32>
    %582 = vector.broadcast %581 : vector<1x8x32xf32> to vector<8x8x32xf32>
    %583 = arith.addf %343, %582 : vector<8x8x32xf32>
    %584 = math.tanh %583 : vector<8x8x32xf32>
    %585 = vector.broadcast %356 : vector<1x1x32xf32> to vector<8x8x32xf32>
    %586 = arith.mulf %584, %585 : vector<8x8x32xf32>
    %cst_123 = arith.constant dense<0.000000e+00> : vector<8x8xf32>
    %587 = vector.multi_reduction <add>, %586, %cst_123 [2] : vector<8x8x32xf32> to vector<8x8xf32>
    %588 = vector.shape_cast %587 : vector<8x8xf32> to vector<8x8x1xf32>
    %cst_124 = arith.constant dense<0xFF800000> : vector<8x1xf32>
    %589 = vector.multi_reduction <maximumf>, %588, %cst_124 [0] : vector<8x8x1xf32> to vector<8x1xf32>
    %590 = vector.shape_cast %589 : vector<8x1xf32> to vector<1x8x1xf32>
    %591 = vector.broadcast %590 : vector<1x8x1xf32> to vector<8x8x1xf32>
    %592 = arith.subf %588, %591 : vector<8x8x1xf32>
    %593 = math.exp %592 : vector<8x8x1xf32>
    %594 = arith.mulf %593, %0 : vector<8x8x1xf32>
    %cst_125 = arith.constant dense<0.000000e+00> : vector<8x1xf32>
    %595 = vector.multi_reduction <add>, %594, %cst_125 [0] : vector<8x8x1xf32> to vector<8x1xf32>
    %596 = vector.broadcast %594 : vector<8x8x1xf32> to vector<8x8x64xf32>
    %597 = arith.mulf %596, %326 : vector<8x8x64xf32>
    %cst_126 = arith.constant dense<0.000000e+00> : vector<8x64xf32>
    %598 = vector.multi_reduction <add>, %597, %cst_126 [0] : vector<8x8x64xf32> to vector<8x64xf32>
    %cst_127 = arith.constant 1.000000e-15 : f32
    %599 = vector.broadcast %cst_127 : f32 to vector<8x1xf32>
    %600 = arith.addf %595, %599 : vector<8x1xf32>
    %601 = tpu.reciprocal %600 {approx = true} : vector<8x1xf32> -> vector<8x1xf32>
    %602 = vector.broadcast %601 : vector<8x1xf32> to vector<8x64xf32>
    %603 = arith.mulf %598, %602 : vector<8x64xf32>
    %604 = tpu.concatenate %603, %577 in 1 : vector<8x64xf32>, vector<8x32xf32> -> vector<8x96xf32>
    %cst_128 = arith.constant dense<0.000000e+00> : vector<8x128xf32>
    %605 = tpu.matmul %604, %357, %cst_128 {dimension_numbers = #tpu.dot_dimension_numbers<[1], [0], [0], [1], [0, 0, 1, 1], [], []>} : vector<8x96xf32>, vector<96x128xf32>, vector<8x128xf32> -> vector<8x128xf32>
    %606 = vector.extract_strided_slice %353 {offsets = [32, 0], sizes = [8, 128], strides = [1, 1]} : vector<64x128xf32> to vector<8x128xf32>
    %607 = arith.addf %605, %606 : vector<8x128xf32>
    %608 = vector.extract_strided_slice %607 {offsets = [0, 0], sizes = [8, 32], strides = [1, 1]} : vector<8x128xf32> to vector<8x32xf32>
    %609 = arith.negf %608 : vector<8x32xf32>
    %610 = math.exp %609 : vector<8x32xf32>
    %cst_129 = arith.constant 1.000000e+00 : f32
    %611 = vector.broadcast %cst_129 : f32 to vector<8x32xf32>
    %612 = arith.addf %611, %610 : vector<8x32xf32>
    %613 = arith.divf %611, %612 : vector<8x32xf32>
    %614 = vector.extract_strided_slice %607 {offsets = [0, 32], sizes = [8, 32], strides = [1, 1]} : vector<8x128xf32> to vector<8x32xf32>
    %615 = arith.negf %614 : vector<8x32xf32>
    %616 = math.exp %615 : vector<8x32xf32>
    %cst_130 = arith.constant 1.000000e+00 : f32
    %617 = vector.broadcast %cst_130 : f32 to vector<8x32xf32>
    %618 = arith.addf %617, %616 : vector<8x32xf32>
    %619 = arith.divf %617, %618 : vector<8x32xf32>
    %620 = vector.extract_strided_slice %607 {offsets = [0, 64], sizes = [8, 32], strides = [1, 1]} : vector<8x128xf32> to vector<8x32xf32>
    %621 = math.tanh %620 : vector<8x32xf32>
    %622 = vector.extract_strided_slice %607 {offsets = [0, 96], sizes = [8, 32], strides = [1, 1]} : vector<8x128xf32> to vector<8x32xf32>
    %623 = arith.negf %622 : vector<8x32xf32>
    %624 = math.exp %623 : vector<8x32xf32>
    %cst_131 = arith.constant 1.000000e+00 : f32
    %625 = vector.broadcast %cst_131 : f32 to vector<8x32xf32>
    %626 = arith.addf %625, %624 : vector<8x32xf32>
    %627 = arith.divf %625, %626 : vector<8x32xf32>
    %628 = arith.mulf %619, %575 : vector<8x32xf32>
    %629 = arith.mulf %613, %621 : vector<8x32xf32>
    %630 = arith.addf %628, %629 : vector<8x32xf32>
    %631 = math.tanh %630 : vector<8x32xf32>
    %632 = arith.mulf %627, %631 : vector<8x32xf32>
    %cst_132 = arith.constant dense<0.000000e+00> : vector<8x32xf32>
    %633 = tpu.matmul %632, %354, %cst_132 {dimension_numbers = #tpu.dot_dimension_numbers<[1], [0], [0], [1], [0, 0, 1, 1], [], []>} : vector<8x32xf32>, vector<32x32xf32>, vector<8x32xf32> -> vector<8x32xf32>
    %634 = vector.extract_strided_slice %348 {offsets = [40, 0], sizes = [8, 32], strides = [1, 1]} : vector<64x32xf32> to vector<8x32xf32>
    %635 = arith.addf %633, %634 : vector<8x32xf32>
    %636 = vector.shape_cast %635 : vector<8x32xf32> to vector<1x8x32xf32>
    %637 = vector.broadcast %636 : vector<1x8x32xf32> to vector<8x8x32xf32>
    %638 = arith.addf %343, %637 : vector<8x8x32xf32>
    %639 = math.tanh %638 : vector<8x8x32xf32>
    %640 = vector.broadcast %356 : vector<1x1x32xf32> to vector<8x8x32xf32>
    %641 = arith.mulf %639, %640 : vector<8x8x32xf32>
    %cst_133 = arith.constant dense<0.000000e+00> : vector<8x8xf32>
    %642 = vector.multi_reduction <add>, %641, %cst_133 [2] : vector<8x8x32xf32> to vector<8x8xf32>
    %643 = vector.shape_cast %642 : vector<8x8xf32> to vector<8x8x1xf32>
    %cst_134 = arith.constant dense<0xFF800000> : vector<8x1xf32>
    %644 = vector.multi_reduction <maximumf>, %643, %cst_134 [0] : vector<8x8x1xf32> to vector<8x1xf32>
    %645 = vector.shape_cast %644 : vector<8x1xf32> to vector<1x8x1xf32>
    %646 = vector.broadcast %645 : vector<1x8x1xf32> to vector<8x8x1xf32>
    %647 = arith.subf %643, %646 : vector<8x8x1xf32>
    %648 = math.exp %647 : vector<8x8x1xf32>
    %649 = arith.mulf %648, %0 : vector<8x8x1xf32>
    %cst_135 = arith.constant dense<0.000000e+00> : vector<8x1xf32>
    %650 = vector.multi_reduction <add>, %649, %cst_135 [0] : vector<8x8x1xf32> to vector<8x1xf32>
    %651 = vector.broadcast %649 : vector<8x8x1xf32> to vector<8x8x64xf32>
    %652 = arith.mulf %651, %326 : vector<8x8x64xf32>
    %cst_136 = arith.constant dense<0.000000e+00> : vector<8x64xf32>
    %653 = vector.multi_reduction <add>, %652, %cst_136 [0] : vector<8x8x64xf32> to vector<8x64xf32>
    %cst_137 = arith.constant 1.000000e-15 : f32
    %654 = vector.broadcast %cst_137 : f32 to vector<8x1xf32>
    %655 = arith.addf %650, %654 : vector<8x1xf32>
    %656 = tpu.reciprocal %655 {approx = true} : vector<8x1xf32> -> vector<8x1xf32>
    %657 = vector.broadcast %656 : vector<8x1xf32> to vector<8x64xf32>
    %658 = arith.mulf %653, %657 : vector<8x64xf32>
    %659 = tpu.concatenate %658, %632 in 1 : vector<8x64xf32>, vector<8x32xf32> -> vector<8x96xf32>
    %cst_138 = arith.constant dense<0.000000e+00> : vector<8x128xf32>
    %660 = tpu.matmul %659, %357, %cst_138 {dimension_numbers = #tpu.dot_dimension_numbers<[1], [0], [0], [1], [0, 0, 1, 1], [], []>} : vector<8x96xf32>, vector<96x128xf32>, vector<8x128xf32> -> vector<8x128xf32>
    %661 = vector.extract_strided_slice %353 {offsets = [40, 0], sizes = [8, 128], strides = [1, 1]} : vector<64x128xf32> to vector<8x128xf32>
    %662 = arith.addf %660, %661 : vector<8x128xf32>
    %663 = vector.extract_strided_slice %662 {offsets = [0, 0], sizes = [8, 32], strides = [1, 1]} : vector<8x128xf32> to vector<8x32xf32>
    %664 = arith.negf %663 : vector<8x32xf32>
    %665 = math.exp %664 : vector<8x32xf32>
    %cst_139 = arith.constant 1.000000e+00 : f32
    %666 = vector.broadcast %cst_139 : f32 to vector<8x32xf32>
    %667 = arith.addf %666, %665 : vector<8x32xf32>
    %668 = arith.divf %666, %667 : vector<8x32xf32>
    %669 = vector.extract_strided_slice %662 {offsets = [0, 32], sizes = [8, 32], strides = [1, 1]} : vector<8x128xf32> to vector<8x32xf32>
    %670 = arith.negf %669 : vector<8x32xf32>
    %671 = math.exp %670 : vector<8x32xf32>
    %cst_140 = arith.constant 1.000000e+00 : f32
    %672 = vector.broadcast %cst_140 : f32 to vector<8x32xf32>
    %673 = arith.addf %672, %671 : vector<8x32xf32>
    %674 = arith.divf %672, %673 : vector<8x32xf32>
    %675 = vector.extract_strided_slice %662 {offsets = [0, 64], sizes = [8, 32], strides = [1, 1]} : vector<8x128xf32> to vector<8x32xf32>
    %676 = math.tanh %675 : vector<8x32xf32>
    %677 = vector.extract_strided_slice %662 {offsets = [0, 96], sizes = [8, 32], strides = [1, 1]} : vector<8x128xf32> to vector<8x32xf32>
    %678 = arith.negf %677 : vector<8x32xf32>
    %679 = math.exp %678 : vector<8x32xf32>
    %cst_141 = arith.constant 1.000000e+00 : f32
    %680 = vector.broadcast %cst_141 : f32 to vector<8x32xf32>
    %681 = arith.addf %680, %679 : vector<8x32xf32>
    %682 = arith.divf %680, %681 : vector<8x32xf32>
    %683 = arith.mulf %674, %630 : vector<8x32xf32>
    %684 = arith.mulf %668, %676 : vector<8x32xf32>
    %685 = arith.addf %683, %684 : vector<8x32xf32>
    %686 = math.tanh %685 : vector<8x32xf32>
    %687 = arith.mulf %682, %686 : vector<8x32xf32>
    %cst_142 = arith.constant dense<0.000000e+00> : vector<8x32xf32>
    %688 = tpu.matmul %687, %354, %cst_142 {dimension_numbers = #tpu.dot_dimension_numbers<[1], [0], [0], [1], [0, 0, 1, 1], [], []>} : vector<8x32xf32>, vector<32x32xf32>, vector<8x32xf32> -> vector<8x32xf32>
    %689 = vector.extract_strided_slice %348 {offsets = [48, 0], sizes = [8, 32], strides = [1, 1]} : vector<64x32xf32> to vector<8x32xf32>
    %690 = arith.addf %688, %689 : vector<8x32xf32>
    %691 = vector.shape_cast %690 : vector<8x32xf32> to vector<1x8x32xf32>
    %692 = vector.broadcast %691 : vector<1x8x32xf32> to vector<8x8x32xf32>
    %693 = arith.addf %343, %692 : vector<8x8x32xf32>
    %694 = math.tanh %693 : vector<8x8x32xf32>
    %695 = vector.broadcast %356 : vector<1x1x32xf32> to vector<8x8x32xf32>
    %696 = arith.mulf %694, %695 : vector<8x8x32xf32>
    %cst_143 = arith.constant dense<0.000000e+00> : vector<8x8xf32>
    %697 = vector.multi_reduction <add>, %696, %cst_143 [2] : vector<8x8x32xf32> to vector<8x8xf32>
    %698 = vector.shape_cast %697 : vector<8x8xf32> to vector<8x8x1xf32>
    %cst_144 = arith.constant dense<0xFF800000> : vector<8x1xf32>
    %699 = vector.multi_reduction <maximumf>, %698, %cst_144 [0] : vector<8x8x1xf32> to vector<8x1xf32>
    %700 = vector.shape_cast %699 : vector<8x1xf32> to vector<1x8x1xf32>
    %701 = vector.broadcast %700 : vector<1x8x1xf32> to vector<8x8x1xf32>
    %702 = arith.subf %698, %701 : vector<8x8x1xf32>
    %703 = math.exp %702 : vector<8x8x1xf32>
    %704 = arith.mulf %703, %0 : vector<8x8x1xf32>
    %cst_145 = arith.constant dense<0.000000e+00> : vector<8x1xf32>
    %705 = vector.multi_reduction <add>, %704, %cst_145 [0] : vector<8x8x1xf32> to vector<8x1xf32>
    %706 = vector.broadcast %704 : vector<8x8x1xf32> to vector<8x8x64xf32>
    %707 = arith.mulf %706, %326 : vector<8x8x64xf32>
    %cst_146 = arith.constant dense<0.000000e+00> : vector<8x64xf32>
    %708 = vector.multi_reduction <add>, %707, %cst_146 [0] : vector<8x8x64xf32> to vector<8x64xf32>
    %cst_147 = arith.constant 1.000000e-15 : f32
    %709 = vector.broadcast %cst_147 : f32 to vector<8x1xf32>
    %710 = arith.addf %705, %709 : vector<8x1xf32>
    %711 = tpu.reciprocal %710 {approx = true} : vector<8x1xf32> -> vector<8x1xf32>
    %712 = vector.broadcast %711 : vector<8x1xf32> to vector<8x64xf32>
    %713 = arith.mulf %708, %712 : vector<8x64xf32>
    %714 = tpu.concatenate %713, %687 in 1 : vector<8x64xf32>, vector<8x32xf32> -> vector<8x96xf32>
    %cst_148 = arith.constant dense<0.000000e+00> : vector<8x128xf32>
    %715 = tpu.matmul %714, %357, %cst_148 {dimension_numbers = #tpu.dot_dimension_numbers<[1], [0], [0], [1], [0, 0, 1, 1], [], []>} : vector<8x96xf32>, vector<96x128xf32>, vector<8x128xf32> -> vector<8x128xf32>
    %716 = vector.extract_strided_slice %353 {offsets = [48, 0], sizes = [8, 128], strides = [1, 1]} : vector<64x128xf32> to vector<8x128xf32>
    %717 = arith.addf %715, %716 : vector<8x128xf32>
    %718 = vector.extract_strided_slice %717 {offsets = [0, 0], sizes = [8, 32], strides = [1, 1]} : vector<8x128xf32> to vector<8x32xf32>
    %719 = arith.negf %718 : vector<8x32xf32>
    %720 = math.exp %719 : vector<8x32xf32>
    %cst_149 = arith.constant 1.000000e+00 : f32
    %721 = vector.broadcast %cst_149 : f32 to vector<8x32xf32>
    %722 = arith.addf %721, %720 : vector<8x32xf32>
    %723 = arith.divf %721, %722 : vector<8x32xf32>
    %724 = vector.extract_strided_slice %717 {offsets = [0, 32], sizes = [8, 32], strides = [1, 1]} : vector<8x128xf32> to vector<8x32xf32>
    %725 = arith.negf %724 : vector<8x32xf32>
    %726 = math.exp %725 : vector<8x32xf32>
    %cst_150 = arith.constant 1.000000e+00 : f32
    %727 = vector.broadcast %cst_150 : f32 to vector<8x32xf32>
    %728 = arith.addf %727, %726 : vector<8x32xf32>
    %729 = arith.divf %727, %728 : vector<8x32xf32>
    %730 = vector.extract_strided_slice %717 {offsets = [0, 64], sizes = [8, 32], strides = [1, 1]} : vector<8x128xf32> to vector<8x32xf32>
    %731 = math.tanh %730 : vector<8x32xf32>
    %732 = vector.extract_strided_slice %717 {offsets = [0, 96], sizes = [8, 32], strides = [1, 1]} : vector<8x128xf32> to vector<8x32xf32>
    %733 = arith.negf %732 : vector<8x32xf32>
    %734 = math.exp %733 : vector<8x32xf32>
    %cst_151 = arith.constant 1.000000e+00 : f32
    %735 = vector.broadcast %cst_151 : f32 to vector<8x32xf32>
    %736 = arith.addf %735, %734 : vector<8x32xf32>
    %737 = arith.divf %735, %736 : vector<8x32xf32>
    %738 = arith.mulf %729, %685 : vector<8x32xf32>
    %739 = arith.mulf %723, %731 : vector<8x32xf32>
    %740 = arith.addf %738, %739 : vector<8x32xf32>
    %741 = math.tanh %740 : vector<8x32xf32>
    %742 = arith.mulf %737, %741 : vector<8x32xf32>
    %cst_152 = arith.constant dense<0.000000e+00> : vector<8x32xf32>
    %743 = tpu.matmul %742, %354, %cst_152 {dimension_numbers = #tpu.dot_dimension_numbers<[1], [0], [0], [1], [0, 0, 1, 1], [], []>} : vector<8x32xf32>, vector<32x32xf32>, vector<8x32xf32> -> vector<8x32xf32>
    %744 = vector.extract_strided_slice %348 {offsets = [56, 0], sizes = [8, 32], strides = [1, 1]} : vector<64x32xf32> to vector<8x32xf32>
    %745 = arith.addf %743, %744 : vector<8x32xf32>
    %746 = vector.shape_cast %745 : vector<8x32xf32> to vector<1x8x32xf32>
    %747 = vector.broadcast %746 : vector<1x8x32xf32> to vector<8x8x32xf32>
    %748 = arith.addf %343, %747 : vector<8x8x32xf32>
    %749 = math.tanh %748 : vector<8x8x32xf32>
    %750 = vector.broadcast %356 : vector<1x1x32xf32> to vector<8x8x32xf32>
    %751 = arith.mulf %749, %750 : vector<8x8x32xf32>
    %cst_153 = arith.constant dense<0.000000e+00> : vector<8x8xf32>
    %752 = vector.multi_reduction <add>, %751, %cst_153 [2] : vector<8x8x32xf32> to vector<8x8xf32>
    %753 = vector.shape_cast %752 : vector<8x8xf32> to vector<8x8x1xf32>
    %cst_154 = arith.constant dense<0xFF800000> : vector<8x1xf32>
    %754 = vector.multi_reduction <maximumf>, %753, %cst_154 [0] : vector<8x8x1xf32> to vector<8x1xf32>
    %755 = vector.shape_cast %754 : vector<8x1xf32> to vector<1x8x1xf32>
    %756 = vector.broadcast %755 : vector<1x8x1xf32> to vector<8x8x1xf32>
    %757 = arith.subf %753, %756 : vector<8x8x1xf32>
    %758 = math.exp %757 : vector<8x8x1xf32>
    %759 = arith.mulf %758, %0 : vector<8x8x1xf32>
    %cst_155 = arith.constant dense<0.000000e+00> : vector<8x1xf32>
    %760 = vector.multi_reduction <add>, %759, %cst_155 [0] : vector<8x8x1xf32> to vector<8x1xf32>
    %761 = vector.broadcast %759 : vector<8x8x1xf32> to vector<8x8x64xf32>
    %762 = arith.mulf %761, %326 : vector<8x8x64xf32>
    %cst_156 = arith.constant dense<0.000000e+00> : vector<8x64xf32>
    %763 = vector.multi_reduction <add>, %762, %cst_156 [0] : vector<8x8x64xf32> to vector<8x64xf32>
    %cst_157 = arith.constant 1.000000e-15 : f32
    %764 = vector.broadcast %cst_157 : f32 to vector<8x1xf32>
    %765 = arith.addf %760, %764 : vector<8x1xf32>
    %766 = tpu.reciprocal %765 {approx = true} : vector<8x1xf32> -> vector<8x1xf32>
    %767 = vector.broadcast %766 : vector<8x1xf32> to vector<8x64xf32>
    %768 = arith.mulf %763, %767 : vector<8x64xf32>
    %769 = tpu.concatenate %768, %742 in 1 : vector<8x64xf32>, vector<8x32xf32> -> vector<8x96xf32>
    %cst_158 = arith.constant dense<0.000000e+00> : vector<8x128xf32>
    %770 = tpu.matmul %769, %357, %cst_158 {dimension_numbers = #tpu.dot_dimension_numbers<[1], [0], [0], [1], [0, 0, 1, 1], [], []>} : vector<8x96xf32>, vector<96x128xf32>, vector<8x128xf32> -> vector<8x128xf32>
    %771 = vector.extract_strided_slice %353 {offsets = [56, 0], sizes = [8, 128], strides = [1, 1]} : vector<64x128xf32> to vector<8x128xf32>
    %772 = arith.addf %770, %771 : vector<8x128xf32>
    %773 = vector.extract_strided_slice %772 {offsets = [0, 0], sizes = [8, 32], strides = [1, 1]} : vector<8x128xf32> to vector<8x32xf32>
    %774 = arith.negf %773 : vector<8x32xf32>
    %775 = math.exp %774 : vector<8x32xf32>
    %cst_159 = arith.constant 1.000000e+00 : f32
    %776 = vector.broadcast %cst_159 : f32 to vector<8x32xf32>
    %777 = arith.addf %776, %775 : vector<8x32xf32>
    %778 = arith.divf %776, %777 : vector<8x32xf32>
    %779 = vector.extract_strided_slice %772 {offsets = [0, 32], sizes = [8, 32], strides = [1, 1]} : vector<8x128xf32> to vector<8x32xf32>
    %780 = arith.negf %779 : vector<8x32xf32>
    %781 = math.exp %780 : vector<8x32xf32>
    %cst_160 = arith.constant 1.000000e+00 : f32
    %782 = vector.broadcast %cst_160 : f32 to vector<8x32xf32>
    %783 = arith.addf %782, %781 : vector<8x32xf32>
    %784 = arith.divf %782, %783 : vector<8x32xf32>
    %785 = vector.extract_strided_slice %772 {offsets = [0, 64], sizes = [8, 32], strides = [1, 1]} : vector<8x128xf32> to vector<8x32xf32>
    %786 = math.tanh %785 : vector<8x32xf32>
    %787 = vector.extract_strided_slice %772 {offsets = [0, 96], sizes = [8, 32], strides = [1, 1]} : vector<8x128xf32> to vector<8x32xf32>
    %788 = arith.negf %787 : vector<8x32xf32>
    %789 = math.exp %788 : vector<8x32xf32>
    %cst_161 = arith.constant 1.000000e+00 : f32
    %790 = vector.broadcast %cst_161 : f32 to vector<8x32xf32>
    %791 = arith.addf %790, %789 : vector<8x32xf32>
    %792 = arith.divf %790, %791 : vector<8x32xf32>
    %793 = arith.mulf %784, %740 : vector<8x32xf32>
    %794 = arith.mulf %778, %786 : vector<8x32xf32>
    %795 = arith.addf %793, %794 : vector<8x32xf32>
    %796 = math.tanh %795 : vector<8x32xf32>
    %797 = arith.mulf %792, %796 : vector<8x32xf32>
    %798 = vector.shape_cast %383 : vector<8x64xf32> to vector<1x8x64xf32>
    %799 = vector.shape_cast %438 : vector<8x64xf32> to vector<1x8x64xf32>
    %800 = vector.shape_cast %493 : vector<8x64xf32> to vector<1x8x64xf32>
    %801 = vector.shape_cast %548 : vector<8x64xf32> to vector<1x8x64xf32>
    %802 = vector.shape_cast %603 : vector<8x64xf32> to vector<1x8x64xf32>
    %803 = vector.shape_cast %658 : vector<8x64xf32> to vector<1x8x64xf32>
    %804 = vector.shape_cast %713 : vector<8x64xf32> to vector<1x8x64xf32>
    %805 = vector.shape_cast %768 : vector<8x64xf32> to vector<1x8x64xf32>
    %806 = tpu.concatenate %798, %799, %800, %801, %802, %803, %804, %805 in 0 : vector<1x8x64xf32>, vector<1x8x64xf32>, vector<1x8x64xf32>, vector<1x8x64xf32>, vector<1x8x64xf32>, vector<1x8x64xf32>, vector<1x8x64xf32>, vector<1x8x64xf32> -> vector<8x8x64xf32>
    %807 = vector.shape_cast %806 : vector<8x8x64xf32> to vector<64x64xf32>
    %808 = vector.shape_cast %412 : vector<8x32xf32> to vector<1x8x32xf32>
    %809 = vector.shape_cast %467 : vector<8x32xf32> to vector<1x8x32xf32>
    %810 = vector.shape_cast %522 : vector<8x32xf32> to vector<1x8x32xf32>
    %811 = vector.shape_cast %577 : vector<8x32xf32> to vector<1x8x32xf32>
    %812 = vector.shape_cast %632 : vector<8x32xf32> to vector<1x8x32xf32>
    %813 = vector.shape_cast %687 : vector<8x32xf32> to vector<1x8x32xf32>
    %814 = vector.shape_cast %742 : vector<8x32xf32> to vector<1x8x32xf32>
    %815 = vector.shape_cast %797 : vector<8x32xf32> to vector<1x8x32xf32>
    %816 = tpu.concatenate %808, %809, %810, %811, %812, %813, %814, %815 in 0 : vector<1x8x32xf32>, vector<1x8x32xf32>, vector<1x8x32xf32>, vector<1x8x32xf32>, vector<1x8x32xf32>, vector<1x8x32xf32>, vector<1x8x32xf32>, vector<1x8x32xf32> -> vector<8x8x32xf32>
    %817 = vector.shape_cast %816 : vector<8x8x32xf32> to vector<64x32xf32>
    %818 = tpu.concatenate %807, %817, %27 in 1 : vector<64x64xf32>, vector<64x32xf32>, vector<64x32xf32> -> vector<64x128xf32>
    %c0_162 = arith.constant 0 : index
    %c0_163 = arith.constant 0 : index
    %819 = vector.load %arg20[%c0_162, %c0_163] : memref<128x64xf32, #tpu.memory_space<vmem>>, vector<128x64xf32>
    %cst_164 = arith.constant dense<0.000000e+00> : vector<64x64xf32>
    %820 = tpu.matmul %818, %819, %cst_164 {dimension_numbers = #tpu.dot_dimension_numbers<[1], [0], [0], [1], [0, 0, 1, 1], [], []>} : vector<64x128xf32>, vector<128x64xf32>, vector<64x64xf32> -> vector<64x64xf32>
    %c0_165 = arith.constant 0 : index
    %c0_166 = arith.constant 0 : index
    %821 = vector.load %arg21[%c0_165, %c0_166] : memref<1x64xf32, #tpu.memory_space<vmem>>, vector<1x64xf32>
    %822 = vector.broadcast %821 : vector<1x64xf32> to vector<64x64xf32>
    %823 = arith.addf %820, %822 : vector<64x64xf32>
    %824 = vector.extract_strided_slice %823 {offsets = [0, 0], sizes = [64, 32], strides = [1, 1]} : vector<64x64xf32> to vector<64x32xf32>
    %825 = vector.extract_strided_slice %823 {offsets = [0, 32], sizes = [64, 32], strides = [1, 1]} : vector<64x64xf32> to vector<64x32xf32>
    %826 = arith.maximumf %824, %825 : vector<64x32xf32>
    %c0_167 = arith.constant 0 : index
    %c0_168 = arith.constant 0 : index
    %827 = vector.load %arg22[%c0_167, %c0_168] : memref<32x64xf32, #tpu.memory_space<vmem>>, vector<32x64xf32>
    %cst_169 = arith.constant dense<0.000000e+00> : vector<64x64xf32>
    %828 = tpu.matmul %826, %827, %cst_169 {dimension_numbers = #tpu.dot_dimension_numbers<[1], [0], [0], [1], [0, 0, 1, 1], [], []>} : vector<64x32xf32>, vector<32x64xf32>, vector<64x64xf32> -> vector<64x64xf32>
    %c0_170 = arith.constant 0 : index
    %c0_171 = arith.constant 0 : index
    %829 = vector.load %arg23[%c0_170, %c0_171] : memref<1x64xf32, #tpu.memory_space<vmem>>, vector<1x64xf32>
    %830 = vector.broadcast %829 : vector<1x64xf32> to vector<64x64xf32>
    %831 = arith.addf %828, %830 : vector<64x64xf32>
    %cst_172 = arith.constant dense<0xFF800000> : vector<64xf32>
    %832 = vector.multi_reduction <maximumf>, %831, %cst_172 [1] : vector<64x64xf32> to vector<64xf32>
    %833 = vector.shape_cast %832 : vector<64xf32> to vector<64x1xf32>
    %834 = vector.broadcast %833 : vector<64x1xf32> to vector<64x64xf32>
    %835 = arith.subf %831, %834 : vector<64x64xf32>
    %836 = math.exp %835 : vector<64x64xf32>
    %cst_173 = arith.constant dense<0.000000e+00> : vector<64xf32>
    %837 = vector.multi_reduction <add>, %836, %cst_173 [1] : vector<64x64xf32> to vector<64xf32>
    %838 = vector.shape_cast %837 : vector<64xf32> to vector<64x1xf32>
    %839 = math.log %838 : vector<64x1xf32>
    %840 = arith.addf %833, %839 : vector<64x1xf32>
    %841 = vector.broadcast %840 : vector<64x1xf32> to vector<64x64xf32>
    %842 = arith.subf %841, %831 : vector<64x64xf32>
    %843 = arith.mulf %18, %842 : vector<64x64xf32>
    %cst_174 = arith.constant dense<0.000000e+00> : vector<64xf32>
    %844 = vector.multi_reduction <add>, %843, %cst_174 [1] : vector<64x64xf32> to vector<64xf32>
    %845 = vector.shape_cast %844 : vector<64xf32> to vector<64x1xf32>
    %846 = arith.mulf %845, %2 : vector<64x1xf32>
    %cst_175 = arith.constant dense<0.000000e+00> : vector<1xf32>
    %847 = vector.multi_reduction <add>, %846, %cst_175 [0] : vector<64x1xf32> to vector<1xf32>
    %848 = vector.shape_cast %847 : vector<1xf32> to vector<1x1xf32>
    %cst_176 = arith.constant 1.250000e-01 : f32
    %849 = vector.broadcast %cst_176 : f32 to vector<1x1xf32>
    %850 = arith.mulf %848, %849 : vector<1x1xf32>
    %c0_177 = arith.constant 0 : index
    %c0_178 = arith.constant 0 : index
    %851 = vector.load %arg24[%c0_177, %c0_178] : memref<1x1xf32, #tpu.memory_space<vmem>>, vector<1x1xf32>
    tpu.vector_store %arg24[%c0_177, %c0_178], %850 {strides = array<i32>} : memref<1x1xf32, #tpu.memory_space<vmem>>, vector<1x1xf32>,
    return
  }
}

</mosaic_0001>

<llo_original>
// kernel: att_nmt_forward.1
$region0: #{att_nmt_forward.1}
  #allocation0 [shape = 'u32[]', space=smem, size = 0x4, offset = 0x4, fixed_abs, tag = 'smem constant byte address 0x4 - core index']
  #allocation1 [shape = 'u32[72,128]{1,0:T(1,128)}', space=vmem, size = 0x9000, scoped, tag = 'internal scratch']
  %s0 = inlined_call_operand.vmem [shape: s32[64,1], index: 0, kind: input, shape index: {}]
  %s1 = inlined_call_operand.vmem [shape: f32[8,8,1], index: 1, kind: input, shape index: {}]
  %s2 = inlined_call_operand.vmem [shape: f32[64,1], index: 2, kind: input, shape index: {}]
  %s3 = inlined_call_operand.vmem [shape: s32[64,1], index: 3, kind: input, shape index: {}]
  %s4 = inlined_call_operand.vmem [shape: f32[64,1], index: 4, kind: input, shape index: {}]
  %s5 = inlined_call_operand.vmem [shape: f32[64,32], index: 5, kind: input, shape index: {}]
  %s6 = inlined_call_operand.vmem [shape: f32[64,32], index: 6, kind: input, shape index: {}]
  %s7 = inlined_call_operand.vmem [shape: f32[32,512], index: 7, kind: input, shape index: {}]
  %s8 = inlined_call_operand.vmem [shape: f32[64,256], index: 8, kind: input, shape index: {}]
  %s9 = inlined_call_operand.vmem [shape: f32[1,256], index: 9, kind: input, shape index: {}]
  %s10 = inlined_call_operand.vmem [shape: f32[64,64], index: 10, kind: input, shape index: {}]
  %s11 = inlined_call_operand.vmem [shape: f32[1,64], index: 11, kind: input, shape index: {}]
  %s12 = inlined_call_operand.vmem [shape: f32[64,32], index: 12, kind: input, shape index: {}]
  %s13 = inlined_call_operand.vmem [shape: f32[32,32], index: 13, kind: input, shape index: {}]
  %s14 = inlined_call_operand.vmem [shape: f32[32,32], index: 14, kind: input, shape index: {}]
  %s15 = inlined_call_operand.vmem [shape: f32[1,32], index: 15, kind: input, shape index: {}]
  %s16 = inlined_call_operand.vmem [shape: f32[1,32], index: 16, kind: input, shape index: {}]
  %s17 = inlined_call_operand.vmem [shape: f32[32,128], index: 17, kind: input, shape index: {}]
  %s18 = inlined_call_operand.vmem [shape: f32[96,128], index: 18, kind: input, shape index: {}]
  %s19 = inlined_call_operand.vmem [shape: f32[1,128], index: 19, kind: input, shape index: {}]
  %s20 = inlined_call_operand.vmem [shape: f32[128,64], index: 20, kind: input, shape index: {}]
  %s21 = inlined_call_operand.vmem [shape: f32[1,64], index: 21, kind: input, shape index: {}]
  %s22 = inlined_call_operand.vmem [shape: f32[32,64], index: 22, kind: input, shape index: {}]
  %s23 = inlined_call_operand.vmem [shape: f32[1,64], index: 23, kind: input, shape index: {}]
  %s24 = inlined_call_operand.hbm [shape: f32[1,1], index: 24, kind: output, shape index: {}]
  %s25 = sld [smem:[#allocation0]]
  $region106: #{att_nmt_forward.1} parent=0
    _
  %s27 = ssub.s32 1, %s25
  %s28 = scalar_select 0, %s27, %s25
  $region1: #{att_nmt_forward.1} parent=0
    #allocation2 [shape = 'u8[512]{0}', space=vmem, size = 0x400, scoped, tag = 'output window, operand 0, single buffered']
    #allocation3 [shape = 's32[1]{0}', space=sflag, size = 0x4, scoped, tag = 'scoped memory for att_nmt_forward.1']
    %29 = vsyncpa [#allocation3], 0
    // Predicated region
    $region2: #{att_nmt_forward.1} parent=1 // pred_check
      _
    $region3: #{att_nmt_forward.1} parent=1 // pred_check_branch
      %31 = sbr.rel (0) target = $region5
    $region4: #{att_nmt_forward.1} parent=1 // pred_region
      _
    $region5: #{att_nmt_forward.1} parent=1 // pred_fallthru
      _
    // Predicated region
    $region6: #{att_nmt_forward.1} parent=1 // pred_check
      _
    $region7: #{att_nmt_forward.1} parent=1 // pred_check_branch
      %33 = sbr.rel (0) target = $region9
    $region8: #{att_nmt_forward.1} parent=1 // pred_region
      _
    $region9: #{att_nmt_forward.1} parent=1 // pred_fallthru
      _
    // Predicated region
    $region10: #{att_nmt_forward.1} parent=1 // pred_check
      _
    $region11: #{att_nmt_forward.1} parent=1 // pred_check_branch
      %35 = sbr.rel (0) target = $region13
    $region12: #{att_nmt_forward.1} parent=1 // pred_region
      _
    $region13: #{att_nmt_forward.1} parent=1 // pred_fallthru
      _
    // Predicated region
    $region14: #{att_nmt_forward.1} parent=1 // pred_check
      _
    $region15: #{att_nmt_forward.1} parent=1 // pred_check_branch
      %37 = sbr.rel (0) target = $region17
    $region16: #{att_nmt_forward.1} parent=1 // pred_region
      _
    $region17: #{att_nmt_forward.1} parent=1 // pred_fallthru
      _
    // Predicated region
    $region18: #{att_nmt_forward.1} parent=1 // pred_check
      _
    $region19: #{att_nmt_forward.1} parent=1 // pred_check_branch
      %39 = sbr.rel (0) target = $region21
    $region20: #{att_nmt_forward.1} parent=1 // pred_region
      _
    $region21: #{att_nmt_forward.1} parent=1 // pred_fallthru
      _
    // Predicated region
    $region22: #{att_nmt_forward.1} parent=1 // pred_check
      _
    $region23: #{att_nmt_forward.1} parent=1 // pred_check_branch
      %41 = sbr.rel (0) target = $region25
    $region24: #{att_nmt_forward.1} parent=1 // pred_region
      _
    $region25: #{att_nmt_forward.1} parent=1 // pred_fallthru
      _
    // Predicated region
    $region26: #{att_nmt_forward.1} parent=1 // pred_check
      _
    $region27: #{att_nmt_forward.1} parent=1 // pred_check_branch
      %43 = sbr.rel (0) target = $region29
    $region28: #{att_nmt_forward.1} parent=1 // pred_region
      _
    $region29: #{att_nmt_forward.1} parent=1 // pred_fallthru
      _
    // Predicated region
    $region30: #{att_nmt_forward.1} parent=1 // pred_check
      _
    $region31: #{att_nmt_forward.1} parent=1 // pred_check_branch
      %45 = sbr.rel (0) target = $region33
    $region32: #{att_nmt_forward.1} parent=1 // pred_region
      _
    $region33: #{att_nmt_forward.1} parent=1 // pred_fallthru
      _
    // Predicated region
    $region34: #{att_nmt_forward.1} parent=1 // pred_check
      _
    $region35: #{att_nmt_forward.1} parent=1 // pred_check_branch
      %47 = sbr.rel (0) target = $region37
    $region36: #{att_nmt_forward.1} parent=1 // pred_region
      _
    $region37: #{att_nmt_forward.1} parent=1 // pred_fallthru
      _
    // Predicated region
    $region38: #{att_nmt_forward.1} parent=1 // pred_check
      _
    $region39: #{att_nmt_forward.1} parent=1 // pred_check_branch
      %49 = sbr.rel (0) target = $region41
    $region40: #{att_nmt_forward.1} parent=1 // pred_region
      _
    $region41: #{att_nmt_forward.1} parent=1 // pred_fallthru
      _
    // Predicated region
    $region42: #{att_nmt_forward.1} parent=1 // pred_check
      _
    $region43: #{att_nmt_forward.1} parent=1 // pred_check_branch
      %51 = sbr.rel (0) target = $region45
    $region44: #{att_nmt_forward.1} parent=1 // pred_region
      _
    $region45: #{att_nmt_forward.1} parent=1 // pred_fallthru
      _
    // Predicated region
    $region46: #{att_nmt_forward.1} parent=1 // pred_check
      _
    $region47: #{att_nmt_forward.1} parent=1 // pred_check_branch
      %53 = sbr.rel (0) target = $region49
    $region48: #{att_nmt_forward.1} parent=1 // pred_region
      _
    $region49: #{att_nmt_forward.1} parent=1 // pred_fallthru
      _
    // Predicated region
    $region50: #{att_nmt_forward.1} parent=1 // pred_check
      _
    $region51: #{att_nmt_forward.1} parent=1 // pred_check_branch
      %55 = sbr.rel (0) target = $region53
    $region52: #{att_nmt_forward.1} parent=1 // pred_region
      _
    $region53: #{att_nmt_forward.1} parent=1 // pred_fallthru
      _
    // Predicated region
    $region54: #{att_nmt_forward.1} parent=1 // pred_check
      _
    $region55: #{att_nmt_forward.1} parent=1 // pred_check_branch
      %57 = sbr.rel (0) target = $region57
    $region56: #{att_nmt_forward.1} parent=1 // pred_region
      _
    $region57: #{att_nmt_forward.1} parent=1 // pred_fallthru
      _
    // Predicated region
    $region58: #{att_nmt_forward.1} parent=1 // pred_check
      _
    $region59: #{att_nmt_forward.1} parent=1 // pred_check_branch
      %59 = sbr.rel (0) target = $region61
    $region60: #{att_nmt_forward.1} parent=1 // pred_region
      _
    $region61: #{att_nmt_forward.1} parent=1 // pred_fallthru
      _
    // Predicated region
    $region62: #{att_nmt_forward.1} parent=1 // pred_check
      _
    $region63: #{att_nmt_forward.1} parent=1 // pred_check_branch
      %61 = sbr.rel (0) target = $region65
    $region64: #{att_nmt_forward.1} parent=1 // pred_region
      _
    $region65: #{att_nmt_forward.1} parent=1 // pred_fallthru
      _
    // Predicated region
    $region66: #{att_nmt_forward.1} parent=1 // pred_check
      _
    $region67: #{att_nmt_forward.1} parent=1 // pred_check_branch
      %63 = sbr.rel (0) target = $region69
    $region68: #{att_nmt_forward.1} parent=1 // pred_region
      _
    $region69: #{att_nmt_forward.1} parent=1 // pred_fallthru
      _
    // Predicated region
    $region70: #{att_nmt_forward.1} parent=1 // pred_check
      _
    $region71: #{att_nmt_forward.1} parent=1 // pred_check_branch
      %65 = sbr.rel (0) target = $region73
    $region72: #{att_nmt_forward.1} parent=1 // pred_region
      _
    $region73: #{att_nmt_forward.1} parent=1 // pred_fallthru
      _
    // Predicated region
    $region74: #{att_nmt_forward.1} parent=1 // pred_check
      _
    $region75: #{att_nmt_forward.1} parent=1 // pred_check_branch
      %67 = sbr.rel (0) target = $region77
    $region76: #{att_nmt_forward.1} parent=1 // pred_region
      _
    $region77: #{att_nmt_forward.1} parent=1 // pred_fallthru
      _
    // Predicated region
    $region78: #{att_nmt_forward.1} parent=1 // pred_check
      _
    $region79: #{att_nmt_forward.1} parent=1 // pred_check_branch
      %69 = sbr.rel (0) target = $region81
    $region80: #{att_nmt_forward.1} parent=1 // pred_region
      _
    $region81: #{att_nmt_forward.1} parent=1 // pred_fallthru
      _
    // Predicated region
    $region82: #{att_nmt_forward.1} parent=1 // pred_check
      _
    $region83: #{att_nmt_forward.1} parent=1 // pred_check_branch
      %71 = sbr.rel (0) target = $region85
    $region84: #{att_nmt_forward.1} parent=1 // pred_region
      _
    $region85: #{att_nmt_forward.1} parent=1 // pred_fallthru
      _
    // Predicated region
    $region86: #{att_nmt_forward.1} parent=1 // pred_check
      _
    $region87: #{att_nmt_forward.1} parent=1 // pred_check_branch
      %73 = sbr.rel (0) target = $region89
    $region88: #{att_nmt_forward.1} parent=1 // pred_region
      _
    $region89: #{att_nmt_forward.1} parent=1 // pred_fallthru
      _
    // Predicated region
    $region90: #{att_nmt_forward.1} parent=1 // pred_check
      _
    $region91: #{att_nmt_forward.1} parent=1 // pred_check_branch
      %75 = sbr.rel (0) target = $region93
    $region92: #{att_nmt_forward.1} parent=1 // pred_region
      _
    $region93: #{att_nmt_forward.1} parent=1 // pred_fallthru
      _
    // Predicated region
    $region94: #{att_nmt_forward.1} parent=1 // pred_check
      _
    $region95: #{att_nmt_forward.1} parent=1 // pred_check_branch
      %77 = sbr.rel (0) target = $region97
    $region96: #{att_nmt_forward.1} parent=1 // pred_region
      _
    $region97: #{att_nmt_forward.1} parent=1 // pred_fallthru
      _
    %v78 = vld [vmem:[%s1] sm:$0xff]
    %v79 = vld [vmem:[%s1 + $0x8] sm:$0xff]
    %v80 = vld [vmem:[%s1 + $0x10] sm:$0xff]
    %v81 = vld [vmem:[%s1 + $0x18] sm:$0xff]
    %v82 = vld [vmem:[%s1 + $0x20] sm:$0xff]
    %v83 = vld [vmem:[%s1 + $0x28] sm:$0xff]
    %v84 = vld [vmem:[%s1 + $0x30] sm:$0xff]
    %v85 = vld [vmem:[%s1 + $0x38] sm:$0xff]
    %v86 = vld [vmem:[%s2] sm:$0xff]
    %v87 = vld [vmem:[%s2 + $0x8] sm:$0xff]
    %v88 = vld [vmem:[%s2 + $0x10] sm:$0xff]
    %v89 = vld [vmem:[%s2 + $0x18] sm:$0xff]
    %v90 = vld [vmem:[%s2 + $0x20] sm:$0xff]
    %v91 = vld [vmem:[%s2 + $0x28] sm:$0xff]
    %v92 = vld [vmem:[%s2 + $0x30] sm:$0xff]
    %v93 = vld [vmem:[%s2 + $0x38] sm:$0xff]
    %v94 = vld [vmem:[%s4] sm:$0xff]
    %v95 = vld [vmem:[%s4 + $0x8] sm:$0xff]
    %v96 = vld [vmem:[%s4 + $0x10] sm:$0xff]
    %v97 = vld [vmem:[%s4 + $0x18] sm:$0xff]
    %v98 = vld [vmem:[%s4 + $0x20] sm:$0xff]
    %v99 = vld [vmem:[%s4 + $0x28] sm:$0xff]
    %v100 = vld [vmem:[%s4 + $0x30] sm:$0xff]
    %v101 = vld [vmem:[%s4 + $0x38] sm:$0xff]
    %v102 = vld [vmem:[%s0] sm:$0xff]
    %v103 = vld [vmem:[%s0 + $0x8] sm:$0xff]
    %v104 = vld [vmem:[%s0 + $0x10] sm:$0xff]
    %v105 = vld [vmem:[%s0 + $0x18] sm:$0xff]
    %v106 = vld [vmem:[%s0 + $0x20] sm:$0xff]
    %v107 = vld [vmem:[%s0 + $0x28] sm:$0xff]
    %v108 = vld [vmem:[%s0 + $0x30] sm:$0xff]
    %v109 = vld [vmem:[%s0 + $0x38] sm:$0xff]
    %v110 = vlaneseq
    %v111 = vand.u32 %v110, 127
    %112 = vset.pattern.permute.xlu0 0
    %113 = vperm.xlu0 %112, %v102
    %v114 = vpop.permute.xlu0 %113
    %115 = vset.pattern.permute.xlu0 0
    %116 = vperm.xlu0 %115, %v103
    %v117 = vpop.permute.xlu0 %116
    %118 = vset.pattern.permute.xlu0 0
    %119 = vperm.xlu0 %118, %v104
    %v120 = vpop.permute.xlu0 %119
    %121 = vset.pattern.permute.xlu0 0
    %122 = vperm.xlu0 %121, %v105
    %v123 = vpop.permute.xlu0 %122
    %124 = vset.pattern.permute.xlu0 0
    %125 = vperm.xlu0 %124, %v106
    %v126 = vpop.permute.xlu0 %125
    %127 = vset.pattern.permute.xlu0 0
    %128 = vperm.xlu0 %127, %v107
    %v129 = vpop.permute.xlu0 %128
    %130 = vset.pattern.permute.xlu0 0
    %131 = vperm.xlu0 %130, %v108
    %v132 = vpop.permute.xlu0 %131
    %133 = vset.pattern.permute.xlu0 0
    %134 = vperm.xlu0 %133, %v109
    %v135 = vpop.permute.xlu0 %134
    %vm136 = vcmp.eq.s32.totalorder %v111, %v114
    %vm137 = vcmp.eq.s32.totalorder %v111, %v117
    %vm138 = vcmp.eq.s32.totalorder %v111, %v120
    %vm139 = vcmp.eq.s32.totalorder %v111, %v123
    %vm140 = vcmp.eq.s32.totalorder %v111, %v126
    %vm141 = vcmp.eq.s32.totalorder %v111, %v129
    %vm142 = vcmp.eq.s32.totalorder %v111, %v132
    %vm143 = vcmp.eq.s32.totalorder %v111, %v135
    %v144 = vsel %vm136, 1, 0
    %v145 = vsel %vm137, 1, 0
    %v146 = vsel %vm138, 1, 0
    %v147 = vsel %vm139, 1, 0
    %v148 = vsel %vm140, 1, 0
    %v149 = vsel %vm141, 1, 0
    %v150 = vsel %vm142, 1, 0
    %v151 = vsel %vm143, 1, 0
    %v152 = vcvt.s32.f32 %v144
    %v153 = vcvt.s32.f32 %v145
    %v154 = vcvt.s32.f32 %v146
    %v155 = vcvt.s32.f32 %v147
    %v156 = vcvt.s32.f32 %v148
    %v157 = vcvt.s32.f32 %v149
    %v158 = vcvt.s32.f32 %v150
    %v159 = vcvt.s32.f32 %v151
    %v160 = vld [vmem:[%s5] sm:$0xff]
    %v161 = vld [vmem:[%s5 + $0x8] sm:$0xff]
    %v162 = vld [vmem:[%s5 + $0x10] sm:$0xff]
    %v163 = vld [vmem:[%s5 + $0x18] sm:$0xff]
    %v164 = vld [vmem:[%s5 + $0x20] sm:$0xff]
    %v165 = vld [vmem:[%s5 + $0x28] sm:$0xff]
    %v166 = vld [vmem:[%s5 + $0x30] sm:$0xff]
    %v167 = vld [vmem:[%s5 + $0x38] sm:$0xff]
    %vm168 = vcmask 523264
    %v170 = vsel %vm168, %v152, 0
    %v173 = vsel %vm168, %v153, 0
    %v176 = vsel %vm168, %v154, 0
    %v179 = vsel %vm168, %v155, 0
    %v182 = vsel %vm168, %v156, 0
    %v185 = vsel %vm168, %v157, 0
    %v188 = vsel %vm168, %v158, 0
    %v191 = vsel %vm168, %v159, 0
    %193 = vmatpush.msra.mxu0 0.0
    %194 = vmatpush.msra.mxu0 0.0
    %195 = vmatpush.msra.mxu0 0.0
    %196 = vmatpush.msra.mxu0 0.0
    %197 = vmatpush.msra.mxu0 0.0
    %198 = vmatpush.msra.mxu0 0.0
    %199 = vmatpush.msra.mxu0 0.0
    %200 = vmatpush.msra.mxu0 0.0
    %201 = vmatpush.msra.mxu0 %v167
    %202 = vmatpush.msra.mxu0 %v166
    %203 = vmatpush.msra.mxu0 %v165
    %204 = vmatpush.msra.mxu0 %v164
    %205 = vmatpush.msra.mxu0 %v163
    %206 = vmatpush.msra.mxu0 %v162
    %207 = vmatpush.msra.mxu0 %v161
    %208 = vmatpush.msra.mxu0 %v160
    %209 = vmatmul.f32.gmra.mxu0 %v170
    %v210 = vpop.f32.mrf.mxu0
    %v211 = vadd.f32 0.0, %v210
    %212 = vmatmul.f32.gmra.mxu0 %v173
    %v213 = vpop.f32.mrf.mxu0
    %v214 = vadd.f32 0.0, %v213
    %215 = vmatmul.f32.gmra.mxu0 %v176
    %v216 = vpop.f32.mrf.mxu0
    %v217 = vadd.f32 0.0, %v216
    %218 = vmatmul.f32.gmra.mxu0 %v179
    %v219 = vpop.f32.mrf.mxu0
    %v220 = vadd.f32 0.0, %v219
    %221 = vmatmul.f32.gmra.mxu0 %v182
    %v222 = vpop.f32.mrf.mxu0
    %v223 = vadd.f32 0.0, %v222
    %224 = vmatmul.f32.gmra.mxu0 %v185
    %v225 = vpop.f32.mrf.mxu0
    %v226 = vadd.f32 0.0, %v225
    %227 = vmatmul.f32.gmra.mxu0 %v188
    %v228 = vpop.f32.mrf.mxu0
    %v229 = vadd.f32 0.0, %v228
    %230 = vmatmul.f32.gmra.mxu0 %v191
    %v231 = vpop.f32.mrf.mxu0
    %v232 = vadd.f32 0.0, %v231
    %233 = vdwg.mxu0
    %235 = vset.pattern.permute.xlu0 0
    %236 = vperm.xlu0 %235, %v86
    %v237 = vpop.permute.xlu0 %236
    %240 = vset.pattern.permute.xlu0 0
    %241 = vperm.xlu0 %240, %v87
    %v242 = vpop.permute.xlu0 %241
    %245 = vset.pattern.permute.xlu0 0
    %246 = vperm.xlu0 %245, %v88
    %v247 = vpop.permute.xlu0 %246
    %250 = vset.pattern.permute.xlu0 0
    %251 = vperm.xlu0 %250, %v89
    %v252 = vpop.permute.xlu0 %251
    %255 = vset.pattern.permute.xlu0 0
    %256 = vperm.xlu0 %255, %v90
    %v257 = vpop.permute.xlu0 %256
    %260 = vset.pattern.permute.xlu0 0
    %261 = vperm.xlu0 %260, %v91
    %v262 = vpop.permute.xlu0 %261
    %265 = vset.pattern.permute.xlu0 0
    %266 = vperm.xlu0 %265, %v92
    %v267 = vpop.permute.xlu0 %266
    %270 = vset.pattern.permute.xlu0 0
    %271 = vperm.xlu0 %270, %v93
    %v272 = vpop.permute.xlu0 %271
    %v274 = vmul.f32 %v211, %v237
    %v275 = vmul.f32 %v214, %v242
    %v276 = vmul.f32 %v217, %v247
    %v277 = vmul.f32 %v220, %v252
    %v278 = vmul.f32 %v223, %v257
    %v279 = vmul.f32 %v226, %v262
    %v280 = vmul.f32 %v229, %v267
    %v281 = vmul.f32 %v232, %v272
    %v282 = vld [vmem:[%s3] sm:$0xff]
    %v283 = vld [vmem:[%s3 + $0x8] sm:$0xff]
    %v284 = vld [vmem:[%s3 + $0x10] sm:$0xff]
    %v285 = vld [vmem:[%s3 + $0x18] sm:$0xff]
    %v286 = vld [vmem:[%s3 + $0x20] sm:$0xff]
    %v287 = vld [vmem:[%s3 + $0x28] sm:$0xff]
    %v288 = vld [vmem:[%s3 + $0x30] sm:$0xff]
    %v289 = vld [vmem:[%s3 + $0x38] sm:$0xff]
    %290 = vset.pattern.permute.xlu0 0
    %291 = vperm.xlu0 %290, %v282
    %v292 = vpop.permute.xlu0 %291
    %293 = vset.pattern.permute.xlu0 0
    %294 = vperm.xlu0 %293, %v283
    %v295 = vpop.permute.xlu0 %294
    %296 = vset.pattern.permute.xlu0 0
    %297 = vperm.xlu0 %296, %v284
    %v298 = vpop.permute.xlu0 %297
    %299 = vset.pattern.permute.xlu0 0
    %300 = vperm.xlu0 %299, %v285
    %v301 = vpop.permute.xlu0 %300
    %302 = vset.pattern.permute.xlu0 0
    %303 = vperm.xlu0 %302, %v286
    %v304 = vpop.permute.xlu0 %303
    %305 = vset.pattern.permute.xlu0 0
    %306 = vperm.xlu0 %305, %v287
    %v307 = vpop.permute.xlu0 %306
    %308 = vset.pattern.permute.xlu0 0
    %309 = vperm.xlu0 %308, %v288
    %v310 = vpop.permute.xlu0 %309
    %311 = vset.pattern.permute.xlu0 0
    %312 = vperm.xlu0 %311, %v289
    %v313 = vpop.permute.xlu0 %312
    %vm314 = vcmp.eq.s32.totalorder %v111, %v292
    %vm315 = vcmp.eq.s32.totalorder %v111, %v295
    %vm316 = vcmp.eq.s32.totalorder %v111, %v298
    %vm317 = vcmp.eq.s32.totalorder %v111, %v301
    %vm318 = vcmp.eq.s32.totalorder %v111, %v304
    %vm319 = vcmp.eq.s32.totalorder %v111, %v307
    %vm320 = vcmp.eq.s32.totalorder %v111, %v310
    %vm321 = vcmp.eq.s32.totalorder %v111, %v313
    %v322 = vsel %vm314, 1, 0
    %v323 = vsel %vm315, 1, 0
    %v324 = vsel %vm316, 1, 0
    %v325 = vsel %vm317, 1, 0
    %v326 = vsel %vm318, 1, 0
    %v327 = vsel %vm319, 1, 0
    %v328 = vsel %vm320, 1, 0
    %v329 = vsel %vm321, 1, 0
    %v330 = vcvt.s32.f32 %v322
    %v331 = vcvt.s32.f32 %v323
    %v332 = vcvt.s32.f32 %v324
    %v333 = vcvt.s32.f32 %v325
    %v334 = vcvt.s32.f32 %v326
    %v335 = vcvt.s32.f32 %v327
    %v336 = vcvt.s32.f32 %v328
    %v337 = vcvt.s32.f32 %v329
    %vm338 = vcmp.eq.s32.totalorder %v111, 0
    %v339 = vsel %vm338, 1, 0
    %v340 = vcvt.s32.f32 %v339
    %v341 = vld [vmem:[%s6] sm:$0xff]
    %v342 = vld [vmem:[%s6 + $0x8] sm:$0xff]
    %v343 = vld [vmem:[%s6 + $0x10] sm:$0xff]
    %v344 = vld [vmem:[%s6 + $0x18] sm:$0xff]
    %v345 = vld [vmem:[%s6 + $0x20] sm:$0xff]
    %v346 = vld [vmem:[%s6 + $0x28] sm:$0xff]
    %v347 = vld [vmem:[%s6 + $0x30] sm:$0xff]
    %v348 = vld [vmem:[%s6 + $0x38] sm:$0xff]
    %v350 = vsel %vm168, %v340, 0
    %v353 = vsel %vm168, %v330, 0
    %v356 = vsel %vm168, %v331, 0
    %v359 = vsel %vm168, %v332, 0
    %v362 = vsel %vm168, %v333, 0
    %v365 = vsel %vm168, %v334, 0
    %v368 = vsel %vm168, %v335, 0
    %v371 = vsel %vm168, %v336, 0
    %373 = vmatpush.msra.mxu0 0.0
    %374 = vmatpush.msra.mxu0 0.0
    %375 = vmatpush.msra.mxu0 0.0
    %376 = vmatpush.msra.mxu0 0.0
    %377 = vmatpush.msra.mxu0 0.0
    %378 = vmatpush.msra.mxu0 0.0
    %379 = vmatpush.msra.mxu0 0.0
    %380 = vmatpush.msra.mxu0 0.0
    %381 = vmatpush.msra.mxu0 %v348
    %382 = vmatpush.msra.mxu0 %v347
    %383 = vmatpush.msra.mxu0 %v346
    %384 = vmatpush.msra.mxu0 %v345
    %385 = vmatpush.msra.mxu0 %v344
    %386 = vmatpush.msra.mxu0 %v343
    %387 = vmatpush.msra.mxu0 %v342
    %388 = vmatpush.msra.mxu0 %v341
    %389 = vmatmul.f32.gmra.mxu0 %v350
    %v390 = vpop.f32.mrf.mxu0
    %v391 = vadd.f32 0.0, %v390
    %392 = vmatmul.f32.gmra.mxu0 %v353
    %v393 = vpop.f32.mrf.mxu0
    %v394 = vadd.f32 0.0, %v393
    %395 = vmatmul.f32.gmra.mxu0 %v356
    %v396 = vpop.f32.mrf.mxu0
    %v397 = vadd.f32 0.0, %v396
    %398 = vmatmul.f32.gmra.mxu0 %v359
    %v399 = vpop.f32.mrf.mxu0
    %v400 = vadd.f32 0.0, %v399
    %401 = vmatmul.f32.gmra.mxu0 %v362
    %v402 = vpop.f32.mrf.mxu0
    %v403 = vadd.f32 0.0, %v402
    %404 = vmatmul.f32.gmra.mxu0 %v365
    %v405 = vpop.f32.mrf.mxu0
    %v406 = vadd.f32 0.0, %v405
    %407 = vmatmul.f32.gmra.mxu0 %v368
    %v408 = vpop.f32.mrf.mxu0
    %v409 = vadd.f32 0.0, %v408
    %410 = vmatmul.f32.gmra.mxu0 %v371
    %v411 = vpop.f32.mrf.mxu0
    %v412 = vadd.f32 0.0, %v411
    %413 = vdwg.mxu0
    %v414 = vld [vmem:[%s7] sm:$0xff]
    %v415 = vld [vmem:[%s7 + $0x8] sm:$0xff]
    %v416 = vld [vmem:[%s7 + $0x10] sm:$0xff]
    %v417 = vld [vmem:[%s7 + $0x18] sm:$0xff]
    %v418 = vld [vmem:[%s7 + $0x20] sm:$0xff]
    %v419 = vld [vmem:[%s7 + $0x28] sm:$0xff]
    %v420 = vld [vmem:[%s7 + $0x30] sm:$0xff]
    %v421 = vld [vmem:[%s7 + $0x38] sm:$0xff]
    %v422 = vld [vmem:[%s7 + $0x40] sm:$0xff]
    %v423 = vld [vmem:[%s7 + $0x48] sm:$0xff]
    %v424 = vld [vmem:[%s7 + $0x50] sm:$0xff]
    %v425 = vld [vmem:[%s7 + $0x58] sm:$0xff]
    %v426 = vld [vmem:[%s7 + $0x60] sm:$0xff]
    %v427 = vld [vmem:[%s7 + $0x68] sm:$0xff]
    %v428 = vld [vmem:[%s7 + $0x70] sm:$0xff]
    %v429 = vld [vmem:[%s7 + $0x78] sm:$0xff]
    %vm430 = vcmask 261120
    %v432 = vsel %vm430, %v274, 0
    %v435 = vsel %vm430, %v275, 0
    %v438 = vsel %vm430, %v276, 0
    %v441 = vsel %vm430, %v277, 0
    %v444 = vsel %vm430, %v278, 0
    %v447 = vsel %vm430, %v279, 0
    %v450 = vsel %vm430, %v280, 0
    %v453 = vsel %vm430, %v281, 0
    %455 = vmatpush.msra.mxu0 0.0
    %456 = vmatpush.msra.mxu0 0.0
    %457 = vmatpush.msra.mxu0 0.0
    %458 = vmatpush.msra.mxu0 0.0
    %459 = vmatpush.msra.mxu0 0.0
    %460 = vmatpush.msra.mxu0 0.0
    %461 = vmatpush.msra.mxu0 0.0
    %462 = vmatpush.msra.mxu0 0.0
    %463 = vmatpush.msra.mxu0 0.0
    %464 = vmatpush.msra.mxu0 0.0
    %465 = vmatpush.msra.mxu0 0.0
    %466 = vmatpush.msra.mxu0 0.0
    %467 = vmatpush.msra.mxu0 %v426
    %468 = vmatpush.msra.mxu0 %v422
    %469 = vmatpush.msra.mxu0 %v418
    %470 = vmatpush.msra.mxu0 %v414
    %471 = vmatmul.f32.gmra.mxu0 %v432
    %v472 = vpop.f32.mrf.mxu0
    %v473 = vadd.f32 0.0, %v472
    %474 = vmatmul.f32.gmra.mxu0 %v435
    %v475 = vpop.f32.mrf.mxu0
    %v476 = vadd.f32 0.0, %v475
    %477 = vmatmul.f32.gmra.mxu0 %v438
    %v478 = vpop.f32.mrf.mxu0
    %v479 = vadd.f32 0.0, %v478
    %480 = vmatmul.f32.gmra.mxu0 %v441
    %v481 = vpop.f32.mrf.mxu0
    %v482 = vadd.f32 0.0, %v481
    %483 = vmatmul.f32.gmra.mxu0 %v444
    %v484 = vpop.f32.mrf.mxu0
    %v485 = vadd.f32 0.0, %v484
    %486 = vmatmul.f32.gmra.mxu0 %v447
    %v487 = vpop.f32.mrf.mxu0
    %v488 = vadd.f32 0.0, %v487
    %489 = vmatmul.f32.gmra.mxu0 %v450
    %v490 = vpop.f32.mrf.mxu0
    %v491 = vadd.f32 0.0, %v490
    %492 = vmatmul.f32.gmra.mxu0 %v453
    %v493 = vpop.f32.mrf.mxu0
    %v494 = vadd.f32 0.0, %v493
    %495 = vdwg.mxu0
    %496 = vmatpush.msra.mxu0 0.0
    %497 = vmatpush.msra.mxu0 0.0
    %498 = vmatpush.msra.mxu0 0.0
    %499 = vmatpush.msra.mxu0 0.0
    %500 = vmatpush.msra.mxu0 0.0
    %501 = vmatpush.msra.mxu0 0.0
    %502 = vmatpush.msra.mxu0 0.0
    %503 = vmatpush.msra.mxu0 0.0
    %504 = vmatpush.msra.mxu0 0.0
    %505 = vmatpush.msra.mxu0 0.0
    %506 = vmatpush.msra.mxu0 0.0
    %507 = vmatpush.msra.mxu0 0.0
    %508 = vmatpush.msra.mxu0 %v427
    %509 = vmatpush.msra.mxu0 %v423
    %510 = vmatpush.msra.mxu0 %v419
    %511 = vmatpush.msra.mxu0 %v415
    %512 = vmatmul.f32.gmra.mxu0 %v432
    %v513 = vpop.f32.mrf.mxu0
    %v514 = vadd.f32 0.0, %v513
    %515 = vmatmul.f32.gmra.mxu0 %v435
    %v516 = vpop.f32.mrf.mxu0
    %v517 = vadd.f32 0.0, %v516
    %518 = vmatmul.f32.gmra.mxu0 %v438
    %v519 = vpop.f32.mrf.mxu0
    %v520 = vadd.f32 0.0, %v519
    %521 = vmatmul.f32.gmra.mxu0 %v441
    %v522 = vpop.f32.mrf.mxu0
    %v523 = vadd.f32 0.0, %v522
    %524 = vmatmul.f32.gmra.mxu0 %v444
    %v525 = vpop.f32.mrf.mxu0
    %v526 = vadd.f32 0.0, %v525
    %527 = vmatmul.f32.gmra.mxu0 %v447
    %v528 = vpop.f32.mrf.mxu0
    %v529 = vadd.f32 0.0, %v528
    %530 = vmatmul.f32.gmra.mxu0 %v450
    %v531 = vpop.f32.mrf.mxu0
    %v532 = vadd.f32 0.0, %v531
    %533 = vmatmul.f32.gmra.mxu0 %v453
    %v534 = vpop.f32.mrf.mxu0
    %v535 = vadd.f32 0.0, %v534
    %536 = vdwg.mxu0
    %537 = vmatpush.msra.mxu0 0.0
    %538 = vmatpush.msra.mxu0 0.0
    %539 = vmatpush.msra.mxu0 0.0
    %540 = vmatpush.msra.mxu0 0.0
    %541 = vmatpush.msra.mxu0 0.0
    %542 = vmatpush.msra.mxu0 0.0
    %543 = vmatpush.msra.mxu0 0.0
    %544 = vmatpush.msra.mxu0 0.0
    %545 = vmatpush.msra.mxu0 0.0
    %546 = vmatpush.msra.mxu0 0.0
    %547 = vmatpush.msra.mxu0 0.0
    %548 = vmatpush.msra.mxu0 0.0
    %549 = vmatpush.msra.mxu0 %v428
    %550 = vmatpush.msra.mxu0 %v424
    %551 = vmatpush.msra.mxu0 %v420
    %552 = vmatpush.msra.mxu0 %v416
    %553 = vmatmul.f32.gmra.mxu0 %v432
    %v554 = vpop.f32.mrf.mxu0
    %v555 = vadd.f32 0.0, %v554
    %556 = vmatmul.f32.gmra.mxu0 %v435
    %v557 = vpop.f32.mrf.mxu0
    %v558 = vadd.f32 0.0, %v557
    %559 = vmatmul.f32.gmra.mxu0 %v438
    %v560 = vpop.f32.mrf.mxu0
    %v561 = vadd.f32 0.0, %v560
    %562 = vmatmul.f32.gmra.mxu0 %v441
    %v563 = vpop.f32.mrf.mxu0
    %v564 = vadd.f32 0.0, %v563
    %565 = vmatmul.f32.gmra.mxu0 %v444
    %v566 = vpop.f32.mrf.mxu0
    %v567 = vadd.f32 0.0, %v566
    %568 = vmatmul.f32.gmra.mxu0 %v447
    %v569 = vpop.f32.mrf.mxu0
    %v570 = vadd.f32 0.0, %v569
    %571 = vmatmul.f32.gmra.mxu0 %v450
    %v572 = vpop.f32.mrf.mxu0
    %v573 = vadd.f32 0.0, %v572
    %574 = vmatmul.f32.gmra.mxu0 %v453
    %v575 = vpop.f32.mrf.mxu0
    %v576 = vadd.f32 0.0, %v575
    %577 = vdwg.mxu0
    %578 = vmatpush.msra.mxu0 0.0
    %579 = vmatpush.msra.mxu0 0.0
    %580 = vmatpush.msra.mxu0 0.0
    %581 = vmatpush.msra.mxu0 0.0
    %582 = vmatpush.msra.mxu0 0.0
    %583 = vmatpush.msra.mxu0 0.0
    %584 = vmatpush.msra.mxu0 0.0
    %585 = vmatpush.msra.mxu0 0.0
    %586 = vmatpush.msra.mxu0 0.0
    %587 = vmatpush.msra.mxu0 0.0
    %588 = vmatpush.msra.mxu0 0.0
    %589 = vmatpush.msra.mxu0 0.0
    %590 = vmatpush.msra.mxu0 %v429
    %591 = vmatpush.msra.mxu0 %v425
    %592 = vmatpush.msra.mxu0 %v421
    %593 = vmatpush.msra.mxu0 %v417
    %594 = vmatmul.f32.gmra.mxu0 %v432
    %v595 = vpop.f32.mrf.mxu0
    %v596 = vadd.f32 0.0, %v595
    %597 = vmatmul.f32.gmra.mxu0 %v435
    %v598 = vpop.f32.mrf.mxu0
    %v599 = vadd.f32 0.0, %v598
    %600 = vmatmul.f32.gmra.mxu0 %v438
    %v601 = vpop.f32.mrf.mxu0
    %v602 = vadd.f32 0.0, %v601
    %603 = vmatmul.f32.gmra.mxu0 %v441
    %v604 = vpop.f32.mrf.mxu0
    %v605 = vadd.f32 0.0, %v604
    %606 = vmatmul.f32.gmra.mxu0 %v444
    %v607 = vpop.f32.mrf.mxu0
    %v608 = vadd.f32 0.0, %v607
    %609 = vmatmul.f32.gmra.mxu0 %v447
    %v610 = vpop.f32.mrf.mxu0
    %v611 = vadd.f32 0.0, %v610
    %612 = vmatmul.f32.gmra.mxu0 %v450
    %v613 = vpop.f32.mrf.mxu0
    %v614 = vadd.f32 0.0, %v613
    %615 = vmatmul.f32.gmra.mxu0 %v453
    %v616 = vpop.f32.mrf.mxu0
    %v617 = vadd.f32 0.0, %v616
    %618 = vdwg.mxu0
    %v619 = vld [vmem:[%s8] sm:$0xff]
    %v620 = vld [vmem:[%s8 + $0x8] sm:$0xff]
    %v621 = vld [vmem:[%s8 + $0x10] sm:$0xff]
    %v622 = vld [vmem:[%s8 + $0x18] sm:$0xff]
    %v623 = vld [vmem:[%s8 + $0x20] sm:$0xff]
    %v624 = vld [vmem:[%s8 + $0x28] sm:$0xff]
    %v625 = vld [vmem:[%s8 + $0x30] sm:$0xff]
    %v626 = vld [vmem:[%s8 + $0x38] sm:$0xff]
    %v627 = vld [vmem:[%s8 + $0x40] sm:$0xff]
    %v628 = vld [vmem:[%s8 + $0x48] sm:$0xff]
    %v629 = vld [vmem:[%s8 + $0x50] sm:$0xff]
    %v630 = vld [vmem:[%s8 + $0x58] sm:$0xff]
    %v631 = vld [vmem:[%s8 + $0x60] sm:$0xff]
    %v632 = vld [vmem:[%s8 + $0x68] sm:$0xff]
    %v633 = vld [vmem:[%s8 + $0x70] sm:$0xff]
    %v634 = vld [vmem:[%s8 + $0x78] sm:$0xff]
    %v635 = vld [vmem:[%s9] sm:$0x3]
    %v637 = vsel %vm168, 0.0, 0
    %639 = vmatpush.msra.mxu0 0.0
    %640 = vmatpush.msra.mxu0 0.0
    %641 = vmatpush.msra.mxu0 0.0
    %642 = vmatpush.msra.mxu0 0.0
    %643 = vmatpush.msra.mxu0 0.0
    %644 = vmatpush.msra.mxu0 0.0
    %645 = vmatpush.msra.mxu0 0.0
    %646 = vmatpush.msra.mxu0 0.0
    %647 = vmatpush.msra.mxu0 %v633
    %648 = vmatpush.msra.mxu0 %v631
    %649 = vmatpush.msra.mxu0 %v629
    %650 = vmatpush.msra.mxu0 %v627
    %651 = vmatpush.msra.mxu0 %v625
    %652 = vmatpush.msra.mxu0 %v623
    %653 = vmatpush.msra.mxu0 %v621
    %654 = vmatpush.msra.mxu0 %v619
    %655 = vmatmul.f32.gmra.mxu0 %v637
    %v656 = vpop.f32.mrf.mxu0
    %v657 = vadd.f32 %v473, %v656
    %658 = vdwg.mxu0
    %659 = vmatpush.msra.mxu0 0.0
    %660 = vmatpush.msra.mxu0 0.0
    %661 = vmatpush.msra.mxu0 0.0
    %662 = vmatpush.msra.mxu0 0.0
    %663 = vmatpush.msra.mxu0 0.0
    %664 = vmatpush.msra.mxu0 0.0
    %665 = vmatpush.msra.mxu0 0.0
    %666 = vmatpush.msra.mxu0 0.0
    %667 = vmatpush.msra.mxu0 %v634
    %668 = vmatpush.msra.mxu0 %v632
    %669 = vmatpush.msra.mxu0 %v630
    %670 = vmatpush.msra.mxu0 %v628
    %671 = vmatpush.msra.mxu0 %v626
    %672 = vmatpush.msra.mxu0 %v624
    %673 = vmatpush.msra.mxu0 %v622
    %674 = vmatpush.msra.mxu0 %v620
    %675 = vmatmul.f32.gmra.mxu0 %v637
    %v676 = vpop.f32.mrf.mxu0
    %v677 = vadd.f32 %v514, %v676
    %678 = vdwg.mxu0
    %v679 = vadd.f32 %v657, %v576
    %v680 = vadd.f32 %v677, %v617
    %v682 = vperm.slane %v635, 0
    %v683 = vperm.slane %v635, 1
    %v686 = vadd.f32 %v679, %v682
    %v687 = vadd.f32 %v680, %v683
    %v688 = vxor.u32 %v686, 2147483648
    %v689 = vmul.f32 %v688, 1.442695
    %v690 = vpow.pop %v689
    %v691 = vadd.f32 %v690, 1.0
    %v692 = vrcp.pop %v691
    %v693 = vmul.f32 %v691, %v692
    %v694 = vsub.f32 1.0, %v693
    %v695 = vmul.f32 %v692, %v694
    %v696 = vadd.f32 %v692, %v695
    %vm697 = vweird.f32 %v691
    %vm698 = vweird.f32 %v692
    %vm699 = vmor %vm697, %vm698
    %v700 = vsel %vm699, %v692, %v696
    %v701 = vand.u32 2147483647, %v691
    %vm702 = vcmp.eq.f32.partialorder %v701, 8.507059e+37
    %v703 = vand.u32 %v691, 2147483648
    %v704 = vor.u32 1.1754944e-38, %v703
    %v705 = vsel %vm702, %v704, %v700
    %v706 = vmul.f32 1.0, %v705
    %v707 = vtanh.pop %v687
    %v708 = vxor.u32 %v687, 2147483648
    %v709 = vmul.f32 %v708, 1.442695
    %v710 = vpow.pop %v709
    %v711 = vadd.f32 %v710, 1.0
    %v712 = vrcp.pop %v711
    %v713 = vmul.f32 %v711, %v712
    %v714 = vsub.f32 1.0, %v713
    %v715 = vmul.f32 %v712, %v714
    %v716 = vadd.f32 %v712, %v715
    %vm717 = vweird.f32 %v711
    %vm718 = vweird.f32 %v712
    %vm719 = vmor %vm717, %vm718
    %v720 = vsel %vm719, %v712, %v716
    %v721 = vand.u32 2147483647, %v711
    %vm722 = vcmp.eq.f32.partialorder %v721, 8.507059e+37
    %v723 = vand.u32 %v711, 2147483648
    %v724 = vor.u32 1.1754944e-38, %v723
    %v725 = vsel %vm722, %v724, %v720
    %v726 = vmul.f32 1.0, %v725
    %v727 = vmul.f32 %v706, 0.0
    %v728 = vmul.f32 %v706, %v707
    %730 = vrot.lane.b32.xlu0 %v728, 64
    %v731 = vpop.permute.xlu0 %730
    %v733 = vadd.f32 %v727, %v731
    %v734 = vtanh.pop %v733
    %v735 = vmul.f32 %v726, %v734
    %737 = vrot.lane.b32.xlu0 %v735, 64
    %v738 = vpop.permute.xlu0 %737
    %v739 = vsel %vm168, %v738, 0
    %741 = vmatpush.msra.mxu0 0.0
    %742 = vmatpush.msra.mxu0 0.0
    %743 = vmatpush.msra.mxu0 0.0
    %744 = vmatpush.msra.mxu0 0.0
    %745 = vmatpush.msra.mxu0 0.0
    %746 = vmatpush.msra.mxu0 0.0
    %747 = vmatpush.msra.mxu0 0.0
    %748 = vmatpush.msra.mxu0 0.0
    %749 = vmatpush.msra.mxu0 %v633
    %750 = vmatpush.msra.mxu0 %v631
    %751 = vmatpush.msra.mxu0 %v629
    %752 = vmatpush.msra.mxu0 %v627
    %753 = vmatpush.msra.mxu0 %v625
    %754 = vmatpush.msra.mxu0 %v623
    %755 = vmatpush.msra.mxu0 %v621
    %756 = vmatpush.msra.mxu0 %v619
    %757 = vmatmul.f32.gmra.mxu0 %v739
    %v758 = vpop.f32.mrf.mxu0
    %v759 = vadd.f32 %v476, %v758
    %760 = vdwg.mxu0
    %761 = vmatpush.msra.mxu0 0.0
    %762 = vmatpush.msra.mxu0 0.0
    %763 = vmatpush.msra.mxu0 0.0
    %764 = vmatpush.msra.mxu0 0.0
    %765 = vmatpush.msra.mxu0 0.0
    %766 = vmatpush.msra.mxu0 0.0
    %767 = vmatpush.msra.mxu0 0.0
    %768 = vmatpush.msra.mxu0 0.0
    %769 = vmatpush.msra.mxu0 %v634
    %770 = vmatpush.msra.mxu0 %v632
    %771 = vmatpush.msra.mxu0 %v630
    %772 = vmatpush.msra.mxu0 %v628
    %773 = vmatpush.msra.mxu0 %v626
    %774 = vmatpush.msra.mxu0 %v624
    %775 = vmatpush.msra.mxu0 %v622
    %776 = vmatpush.msra.mxu0 %v620
    %777 = vmatmul.f32.gmra.mxu0 %v739
    %v778 = vpop.f32.mrf.mxu0
    %v779 = vadd.f32 %v517, %v778
    %780 = vdwg.mxu0
    %v781 = vadd.f32 %v759, %v573
    %v782 = vadd.f32 %v779, %v614
    %v783 = vadd.f32 %v781, %v682
    %v784 = vadd.f32 %v782, %v683
    %v785 = vxor.u32 %v783, 2147483648
    %v786 = vmul.f32 %v785, 1.442695
    %v787 = vpow.pop %v786
    %v788 = vadd.f32 %v787, 1.0
    %v789 = vrcp.pop %v788
    %v790 = vmul.f32 %v788, %v789
    %v791 = vsub.f32 1.0, %v790
    %v792 = vmul.f32 %v789, %v791
    %v793 = vadd.f32 %v789, %v792
    %vm794 = vweird.f32 %v788
    %vm795 = vweird.f32 %v789
    %vm796 = vmor %vm794, %vm795
    %v797 = vsel %vm796, %v789, %v793
    %v798 = vand.u32 2147483647, %v788
    %vm799 = vcmp.eq.f32.partialorder %v798, 8.507059e+37
    %v800 = vand.u32 %v788, 2147483648
    %v801 = vor.u32 1.1754944e-38, %v800
    %v802 = vsel %vm799, %v801, %v797
    %v803 = vmul.f32 1.0, %v802
    %v804 = vtanh.pop %v784
    %v805 = vxor.u32 %v784, 2147483648
    %v806 = vmul.f32 %v805, 1.442695
    %v807 = vpow.pop %v806
    %v808 = vadd.f32 %v807, 1.0
    %v809 = vrcp.pop %v808
    %v810 = vmul.f32 %v808, %v809
    %v811 = vsub.f32 1.0, %v810
    %v812 = vmul.f32 %v809, %v811
    %v813 = vadd.f32 %v809, %v812
    %vm814 = vweird.f32 %v808
    %vm815 = vweird.f32 %v809
    %vm816 = vmor %vm814, %vm815
    %v817 = vsel %vm816, %v809, %v813
    %v818 = vand.u32 2147483647, %v808
    %vm819 = vcmp.eq.f32.partialorder %v818, 8.507059e+37
    %v820 = vand.u32 %v808, 2147483648
    %v821 = vor.u32 1.1754944e-38, %v820
    %v822 = vsel %vm819, %v821, %v817
    %v823 = vmul.f32 1.0, %v822
    %v824 = vmul.f32 %v803, %v733
    %v825 = vmul.f32 %v803, %v804
    %827 = vrot.lane.b32.xlu0 %v825, 64
    %v828 = vpop.permute.xlu0 %827
    %v830 = vadd.f32 %v824, %v828
    %v831 = vtanh.pop %v830
    %v832 = vmul.f32 %v823, %v831
    %834 = vrot.lane.b32.xlu0 %v832, 64
    %v835 = vpop.permute.xlu0 %834
    %v836 = vsel %vm168, %v835, 0
    %838 = vmatpush.msra.mxu0 0.0
    %839 = vmatpush.msra.mxu0 0.0
    %840 = vmatpush.msra.mxu0 0.0
    %841 = vmatpush.msra.mxu0 0.0
    %842 = vmatpush.msra.mxu0 0.0
    %843 = vmatpush.msra.mxu0 0.0
    %844 = vmatpush.msra.mxu0 0.0
    %845 = vmatpush.msra.mxu0 0.0
    %846 = vmatpush.msra.mxu0 %v633
    %847 = vmatpush.msra.mxu0 %v631
    %848 = vmatpush.msra.mxu0 %v629
    %849 = vmatpush.msra.mxu0 %v627
    %850 = vmatpush.msra.mxu0 %v625
    %851 = vmatpush.msra.mxu0 %v623
    %852 = vmatpush.msra.mxu0 %v621
    %853 = vmatpush.msra.mxu0 %v619
    %854 = vmatmul.f32.gmra.mxu0 %v836
    %v855 = vpop.f32.mrf.mxu0
    %v856 = vadd.f32 %v479, %v855
    %857 = vdwg.mxu0
    %858 = vmatpush.msra.mxu0 0.0
    %859 = vmatpush.msra.mxu0 0.0
    %860 = vmatpush.msra.mxu0 0.0
    %861 = vmatpush.msra.mxu0 0.0
    %862 = vmatpush.msra.mxu0 0.0
    %863 = vmatpush.msra.mxu0 0.0
    %864 = vmatpush.msra.mxu0 0.0
    %865 = vmatpush.msra.mxu0 0.0
    %866 = vmatpush.msra.mxu0 %v634
    %867 = vmatpush.msra.mxu0 %v632
    %868 = vmatpush.msra.mxu0 %v630
    %869 = vmatpush.msra.mxu0 %v628
    %870 = vmatpush.msra.mxu0 %v626
    %871 = vmatpush.msra.mxu0 %v624
    %872 = vmatpush.msra.mxu0 %v622
    %873 = vmatpush.msra.mxu0 %v620
    %874 = vmatmul.f32.gmra.mxu0 %v836
    %v875 = vpop.f32.mrf.mxu0
    %v876 = vadd.f32 %v520, %v875
    %877 = vdwg.mxu0
    %v878 = vadd.f32 %v856, %v570
    %v879 = vadd.f32 %v876, %v611
    %v880 = vadd.f32 %v878, %v682
    %v881 = vadd.f32 %v879, %v683
    %v882 = vxor.u32 %v880, 2147483648
    %v883 = vmul.f32 %v882, 1.442695
    %v884 = vpow.pop %v883
    %v885 = vadd.f32 %v884, 1.0
    %v886 = vrcp.pop %v885
    %v887 = vmul.f32 %v885, %v886
    %v888 = vsub.f32 1.0, %v887
    %v889 = vmul.f32 %v886, %v888
    %v890 = vadd.f32 %v886, %v889
    %vm891 = vweird.f32 %v885
    %vm892 = vweird.f32 %v886
    %vm893 = vmor %vm891, %vm892
    %v894 = vsel %vm893, %v886, %v890
    %v895 = vand.u32 2147483647, %v885
    %vm896 = vcmp.eq.f32.partialorder %v895, 8.507059e+37
    %v897 = vand.u32 %v885, 2147483648
    %v898 = vor.u32 1.1754944e-38, %v897
    %v899 = vsel %vm896, %v898, %v894
    %v900 = vmul.f32 1.0, %v899
    %v901 = vtanh.pop %v881
    %v902 = vxor.u32 %v881, 2147483648
    %v903 = vmul.f32 %v902, 1.442695
    %v904 = vpow.pop %v903
    %v905 = vadd.f32 %v904, 1.0
    %v906 = vrcp.pop %v905
    %v907 = vmul.f32 %v905, %v906
    %v908 = vsub.f32 1.0, %v907
    %v909 = vmul.f32 %v906, %v908
    %v910 = vadd.f32 %v906, %v909
    %vm911 = vweird.f32 %v905
    %vm912 = vweird.f32 %v906
    %vm913 = vmor %vm911, %vm912
    %v914 = vsel %vm913, %v906, %v910
    %v915 = vand.u32 2147483647, %v905
    %vm916 = vcmp.eq.f32.partialorder %v915, 8.507059e+37
    %v917 = vand.u32 %v905, 2147483648
    %v918 = vor.u32 1.1754944e-38, %v917
    %v919 = vsel %vm916, %v918, %v914
    %v920 = vmul.f32 1.0, %v919
    %v921 = vmul.f32 %v900, %v830
    %v922 = vmul.f32 %v900, %v901
    %924 = vrot.lane.b32.xlu0 %v922, 64
    %v925 = vpop.permute.xlu0 %924
    %v927 = vadd.f32 %v921, %v925
    %v928 = vtanh.pop %v927
    %v929 = vmul.f32 %v920, %v928
    %931 = vrot.lane.b32.xlu0 %v929, 64
    %v932 = vpop.permute.xlu0 %931
    %v933 = vsel %vm168, %v932, 0
    %935 = vmatpush.msra.mxu0 0.0
    %936 = vmatpush.msra.mxu0 0.0
    %937 = vmatpush.msra.mxu0 0.0
    %938 = vmatpush.msra.mxu0 0.0
    %939 = vmatpush.msra.mxu0 0.0
    %940 = vmatpush.msra.mxu0 0.0
    %941 = vmatpush.msra.mxu0 0.0
    %942 = vmatpush.msra.mxu0 0.0
    %943 = vmatpush.msra.mxu0 %v633
    %944 = vmatpush.msra.mxu0 %v631
    %945 = vmatpush.msra.mxu0 %v629
    %946 = vmatpush.msra.mxu0 %v627
    %947 = vmatpush.msra.mxu0 %v625
    %948 = vmatpush.msra.mxu0 %v623
    %949 = vmatpush.msra.mxu0 %v621
    %950 = vmatpush.msra.mxu0 %v619
    %951 = vmatmul.f32.gmra.mxu0 %v933
    %v952 = vpop.f32.mrf.mxu0
    %v953 = vadd.f32 %v482, %v952
    %954 = vdwg.mxu0
    %955 = vmatpush.msra.mxu0 0.0
    %956 = vmatpush.msra.mxu0 0.0
    %957 = vmatpush.msra.mxu0 0.0
    %958 = vmatpush.msra.mxu0 0.0
    %959 = vmatpush.msra.mxu0 0.0
    %960 = vmatpush.msra.mxu0 0.0
    %961 = vmatpush.msra.mxu0 0.0
    %962 = vmatpush.msra.mxu0 0.0
    %963 = vmatpush.msra.mxu0 %v634
    %964 = vmatpush.msra.mxu0 %v632
    %965 = vmatpush.msra.mxu0 %v630
    %966 = vmatpush.msra.mxu0 %v628
    %967 = vmatpush.msra.mxu0 %v626
    %968 = vmatpush.msra.mxu0 %v624
    %969 = vmatpush.msra.mxu0 %v622
    %970 = vmatpush.msra.mxu0 %v620
    %971 = vmatmul.f32.gmra.mxu0 %v933
    %v972 = vpop.f32.mrf.mxu0
    %v973 = vadd.f32 %v523, %v972
    %974 = vdwg.mxu0
    %v975 = vadd.f32 %v953, %v567
    %v976 = vadd.f32 %v973, %v608
    %v977 = vadd.f32 %v975, %v682
    %v978 = vadd.f32 %v976, %v683
    %v979 = vxor.u32 %v977, 2147483648
    %v980 = vmul.f32 %v979, 1.442695
    %v981 = vpow.pop %v980
    %v982 = vadd.f32 %v981, 1.0
    %v983 = vrcp.pop %v982
    %v984 = vmul.f32 %v982, %v983
    %v985 = vsub.f32 1.0, %v984
    %v986 = vmul.f32 %v983, %v985
    %v987 = vadd.f32 %v983, %v986
    %vm988 = vweird.f32 %v982
    %vm989 = vweird.f32 %v983
    %vm990 = vmor %vm988, %vm989
    %v991 = vsel %vm990, %v983, %v987
    %v992 = vand.u32 2147483647, %v982
    %vm993 = vcmp.eq.f32.partialorder %v992, 8.507059e+37
    %v994 = vand.u32 %v982, 2147483648
    %v995 = vor.u32 1.1754944e-38, %v994
    %v996 = vsel %vm993, %v995, %v991
    %v997 = vmul.f32 1.0, %v996
    %v998 = vtanh.pop %v978
    %v999 = vxor.u32 %v978, 2147483648
    %v1000 = vmul.f32 %v999, 1.442695
    %v1001 = vpow.pop %v1000
    %v1002 = vadd.f32 %v1001, 1.0
    %v1003 = vrcp.pop %v1002
    %v1004 = vmul.f32 %v1002, %v1003
    %v1005 = vsub.f32 1.0, %v1004
    %v1006 = vmul.f32 %v1003, %v1005
    %v1007 = vadd.f32 %v1003, %v1006
    %vm1008 = vweird.f32 %v1002
    %vm1009 = vweird.f32 %v1003
    %vm1010 = vmor %vm1008, %vm1009
    %v1011 = vsel %vm1010, %v1003, %v1007
    %v1012 = vand.u32 2147483647, %v1002
    %vm1013 = vcmp.eq.f32.partialorder %v1012, 8.507059e+37
    %v1014 = vand.u32 %v1002, 2147483648
    %v1015 = vor.u32 1.1754944e-38, %v1014
    %v1016 = vsel %vm1013, %v1015, %v1011
    %v1017 = vmul.f32 1.0, %v1016
    %v1018 = vmul.f32 %v997, %v927
    %v1019 = vmul.f32 %v997, %v998
    %1021 = vrot.lane.b32.xlu0 %v1019, 64
    %v1022 = vpop.permute.xlu0 %1021
    %v1024 = vadd.f32 %v1018, %v1022
    %v1025 = vtanh.pop %v1024
    %v1026 = vmul.f32 %v1017, %v1025
    %1028 = vrot.lane.b32.xlu0 %v1026, 64
    %v1029 = vpop.permute.xlu0 %1028
    %v1030 = vsel %vm168, %v1029, 0
    %1032 = vmatpush.msra.mxu0 0.0
    %1033 = vmatpush.msra.mxu0 0.0
    %1034 = vmatpush.msra.mxu0 0.0
    %1035 = vmatpush.msra.mxu0 0.0
    %1036 = vmatpush.msra.mxu0 0.0
    %1037 = vmatpush.msra.mxu0 0.0
    %1038 = vmatpush.msra.mxu0 0.0
    %1039 = vmatpush.msra.mxu0 0.0
    %1040 = vmatpush.msra.mxu0 %v633
    %1041 = vmatpush.msra.mxu0 %v631
    %1042 = vmatpush.msra.mxu0 %v629
    %1043 = vmatpush.msra.mxu0 %v627
    %1044 = vmatpush.msra.mxu0 %v625
    %1045 = vmatpush.msra.mxu0 %v623
    %1046 = vmatpush.msra.mxu0 %v621
    %1047 = vmatpush.msra.mxu0 %v619
    %1048 = vmatmul.f32.gmra.mxu0 %v1030
    %v1049 = vpop.f32.mrf.mxu0
    %v1050 = vadd.f32 %v485, %v1049
    %1051 = vdwg.mxu0
    %1052 = vmatpush.msra.mxu0 0.0
    %1053 = vmatpush.msra.mxu0 0.0
    %1054 = vmatpush.msra.mxu0 0.0
    %1055 = vmatpush.msra.mxu0 0.0
    %1056 = vmatpush.msra.mxu0 0.0
    %1057 = vmatpush.msra.mxu0 0.0
    %1058 = vmatpush.msra.mxu0 0.0
    %1059 = vmatpush.msra.mxu0 0.0
    %1060 = vmatpush.msra.mxu0 %v634
    %1061 = vmatpush.msra.mxu0 %v632
    %1062 = vmatpush.msra.mxu0 %v630
    %1063 = vmatpush.msra.mxu0 %v628
    %1064 = vmatpush.msra.mxu0 %v626
    %1065 = vmatpush.msra.mxu0 %v624
    %1066 = vmatpush.msra.mxu0 %v622
    %1067 = vmatpush.msra.mxu0 %v620
    %1068 = vmatmul.f32.gmra.mxu0 %v1030
    %v1069 = vpop.f32.mrf.mxu0
    %v1070 = vadd.f32 %v526, %v1069
    %1071 = vdwg.mxu0
    %v1072 = vadd.f32 %v1050, %v564
    %v1073 = vadd.f32 %v1070, %v605
    %v1074 = vadd.f32 %v1072, %v682
    %v1075 = vadd.f32 %v1073, %v683
    %v1076 = vxor.u32 %v1074, 2147483648
    %v1077 = vmul.f32 %v1076, 1.442695
    %v1078 = vpow.pop %v1077
    %v1079 = vadd.f32 %v1078, 1.0
    %v1080 = vrcp.pop %v1079
    %v1081 = vmul.f32 %v1079, %v1080
    %v1082 = vsub.f32 1.0, %v1081
    %v1083 = vmul.f32 %v1080, %v1082
    %v1084 = vadd.f32 %v1080, %v1083
    %vm1085 = vweird.f32 %v1079
    %vm1086 = vweird.f32 %v1080
    %vm1087 = vmor %vm1085, %vm1086
    %v1088 = vsel %vm1087, %v1080, %v1084
    %v1089 = vand.u32 2147483647, %v1079
    %vm1090 = vcmp.eq.f32.partialorder %v1089, 8.507059e+37
    %v1091 = vand.u32 %v1079, 2147483648
    %v1092 = vor.u32 1.1754944e-38, %v1091
    %v1093 = vsel %vm1090, %v1092, %v1088
    %v1094 = vmul.f32 1.0, %v1093
    %v1095 = vtanh.pop %v1075
    %v1096 = vxor.u32 %v1075, 2147483648
    %v1097 = vmul.f32 %v1096, 1.442695
    %v1098 = vpow.pop %v1097
    %v1099 = vadd.f32 %v1098, 1.0
    %v1100 = vrcp.pop %v1099
    %v1101 = vmul.f32 %v1099, %v1100
    %v1102 = vsub.f32 1.0, %v1101
    %v1103 = vmul.f32 %v1100, %v1102
    %v1104 = vadd.f32 %v1100, %v1103
    %vm1105 = vweird.f32 %v1099
    %vm1106 = vweird.f32 %v1100
    %vm1107 = vmor %vm1105, %vm1106
    %v1108 = vsel %vm1107, %v1100, %v1104
    %v1109 = vand.u32 2147483647, %v1099
    %vm1110 = vcmp.eq.f32.partialorder %v1109, 8.507059e+37
    %v1111 = vand.u32 %v1099, 2147483648
    %v1112 = vor.u32 1.1754944e-38, %v1111
    %v1113 = vsel %vm1110, %v1112, %v1108
    %v1114 = vmul.f32 1.0, %v1113
    %v1115 = vmul.f32 %v1094, %v1024
    %v1116 = vmul.f32 %v1094, %v1095
    %1118 = vrot.lane.b32.xlu0 %v1116, 64
    %v1119 = vpop.permute.xlu0 %1118
    %v1121 = vadd.f32 %v1115, %v1119
    %v1122 = vtanh.pop %v1121
    %v1123 = vmul.f32 %v1114, %v1122
    %1125 = vrot.lane.b32.xlu0 %v1123, 64
    %v1126 = vpop.permute.xlu0 %1125
    %v1127 = vsel %vm168, %v1126, 0
    %1129 = vmatpush.msra.mxu0 0.0
    %1130 = vmatpush.msra.mxu0 0.0
    %1131 = vmatpush.msra.mxu0 0.0
    %1132 = vmatpush.msra.mxu0 0.0
    %1133 = vmatpush.msra.mxu0 0.0
    %1134 = vmatpush.msra.mxu0 0.0
    %1135 = vmatpush.msra.mxu0 0.0
    %1136 = vmatpush.msra.mxu0 0.0
    %1137 = vmatpush.msra.mxu0 %v633
    %1138 = vmatpush.msra.mxu0 %v631
    %1139 = vmatpush.msra.mxu0 %v629
    %1140 = vmatpush.msra.mxu0 %v627
    %1141 = vmatpush.msra.mxu0 %v625
    %1142 = vmatpush.msra.mxu0 %v623
    %1143 = vmatpush.msra.mxu0 %v621
    %1144 = vmatpush.msra.mxu0 %v619
    %1145 = vmatmul.f32.gmra.mxu0 %v1127
    %v1146 = vpop.f32.mrf.mxu0
    %v1147 = vadd.f32 %v488, %v1146
    %1148 = vdwg.mxu0
    %1149 = vmatpush.msra.mxu0 0.0
    %1150 = vmatpush.msra.mxu0 0.0
    %1151 = vmatpush.msra.mxu0 0.0
    %1152 = vmatpush.msra.mxu0 0.0
    %1153 = vmatpush.msra.mxu0 0.0
    %1154 = vmatpush.msra.mxu0 0.0
    %1155 = vmatpush.msra.mxu0 0.0
    %1156 = vmatpush.msra.mxu0 0.0
    %1157 = vmatpush.msra.mxu0 %v634
    %1158 = vmatpush.msra.mxu0 %v632
    %1159 = vmatpush.msra.mxu0 %v630
    %1160 = vmatpush.msra.mxu0 %v628
    %1161 = vmatpush.msra.mxu0 %v626
    %1162 = vmatpush.msra.mxu0 %v624
    %1163 = vmatpush.msra.mxu0 %v622
    %1164 = vmatpush.msra.mxu0 %v620
    %1165 = vmatmul.f32.gmra.mxu0 %v1127
    %v1166 = vpop.f32.mrf.mxu0
    %v1167 = vadd.f32 %v529, %v1166
    %1168 = vdwg.mxu0
    %v1169 = vadd.f32 %v1147, %v561
    %v1170 = vadd.f32 %v1167, %v602
    %v1171 = vadd.f32 %v1169, %v682
    %v1172 = vadd.f32 %v1170, %v683
    %v1173 = vxor.u32 %v1171, 2147483648
    %v1174 = vmul.f32 %v1173, 1.442695
    %v1175 = vpow.pop %v1174
    %v1176 = vadd.f32 %v1175, 1.0
    %v1177 = vrcp.pop %v1176
    %v1178 = vmul.f32 %v1176, %v1177
    %v1179 = vsub.f32 1.0, %v1178
    %v1180 = vmul.f32 %v1177, %v1179
    %v1181 = vadd.f32 %v1177, %v1180
    %vm1182 = vweird.f32 %v1176
    %vm1183 = vweird.f32 %v1177
    %vm1184 = vmor %vm1182, %vm1183
    %v1185 = vsel %vm1184, %v1177, %v1181
    %v1186 = vand.u32 2147483647, %v1176
    %vm1187 = vcmp.eq.f32.partialorder %v1186, 8.507059e+37
    %v1188 = vand.u32 %v1176, 2147483648
    %v1189 = vor.u32 1.1754944e-38, %v1188
    %v1190 = vsel %vm1187, %v1189, %v1185
    %v1191 = vmul.f32 1.0, %v1190
    %v1192 = vtanh.pop %v1172
    %v1193 = vxor.u32 %v1172, 2147483648
    %v1194 = vmul.f32 %v1193, 1.442695
    %v1195 = vpow.pop %v1194
    %v1196 = vadd.f32 %v1195, 1.0
    %v1197 = vrcp.pop %v1196
    %v1198 = vmul.f32 %v1196, %v1197
    %v1199 = vsub.f32 1.0, %v1198
    %v1200 = vmul.f32 %v1197, %v1199
    %v1201 = vadd.f32 %v1197, %v1200
    %vm1202 = vweird.f32 %v1196
    %vm1203 = vweird.f32 %v1197
    %vm1204 = vmor %vm1202, %vm1203
    %v1205 = vsel %vm1204, %v1197, %v1201
    %v1206 = vand.u32 2147483647, %v1196
    %vm1207 = vcmp.eq.f32.partialorder %v1206, 8.507059e+37
    %v1208 = vand.u32 %v1196, 2147483648
    %v1209 = vor.u32 1.1754944e-38, %v1208
    %v1210 = vsel %vm1207, %v1209, %v1205
    %v1211 = vmul.f32 1.0, %v1210
    %v1212 = vmul.f32 %v1191, %v1121
    %v1213 = vmul.f32 %v1191, %v1192
    %1215 = vrot.lane.b32.xlu0 %v1213, 64
    %v1216 = vpop.permute.xlu0 %1215
    %v1218 = vadd.f32 %v1212, %v1216
    %v1219 = vtanh.pop %v1218
    %v1220 = vmul.f32 %v1211, %v1219
    %1222 = vrot.lane.b32.xlu0 %v1220, 64
    %v1223 = vpop.permute.xlu0 %1222
    %v1224 = vsel %vm168, %v1223, 0
    %1226 = vmatpush.msra.mxu0 0.0
    %1227 = vmatpush.msra.mxu0 0.0
    %1228 = vmatpush.msra.mxu0 0.0
    %1229 = vmatpush.msra.mxu0 0.0
    %1230 = vmatpush.msra.mxu0 0.0
    %1231 = vmatpush.msra.mxu0 0.0
    %1232 = vmatpush.msra.mxu0 0.0
    %1233 = vmatpush.msra.mxu0 0.0
    %1234 = vmatpush.msra.mxu0 %v633
    %1235 = vmatpush.msra.mxu0 %v631
    %1236 = vmatpush.msra.mxu0 %v629
    %1237 = vmatpush.msra.mxu0 %v627
    %1238 = vmatpush.msra.mxu0 %v625
    %1239 = vmatpush.msra.mxu0 %v623
    %1240 = vmatpush.msra.mxu0 %v621
    %1241 = vmatpush.msra.mxu0 %v619
    %1242 = vmatmul.f32.gmra.mxu0 %v1224
    %v1243 = vpop.f32.mrf.mxu0
    %v1244 = vadd.f32 %v491, %v1243
    %1245 = vdwg.mxu0
    %1246 = vmatpush.msra.mxu0 0.0
    %1247 = vmatpush.msra.mxu0 0.0
    %1248 = vmatpush.msra.mxu0 0.0
    %1249 = vmatpush.msra.mxu0 0.0
    %1250 = vmatpush.msra.mxu0 0.0
    %1251 = vmatpush.msra.mxu0 0.0
    %1252 = vmatpush.msra.mxu0 0.0
    %1253 = vmatpush.msra.mxu0 0.0
    %1254 = vmatpush.msra.mxu0 %v634
    %1255 = vmatpush.msra.mxu0 %v632
    %1256 = vmatpush.msra.mxu0 %v630
    %1257 = vmatpush.msra.mxu0 %v628
    %1258 = vmatpush.msra.mxu0 %v626
    %1259 = vmatpush.msra.mxu0 %v624
    %1260 = vmatpush.msra.mxu0 %v622
    %1261 = vmatpush.msra.mxu0 %v620
    %1262 = vmatmul.f32.gmra.mxu0 %v1224
    %v1263 = vpop.f32.mrf.mxu0
    %v1264 = vadd.f32 %v532, %v1263
    %1265 = vdwg.mxu0
    %v1266 = vadd.f32 %v1244, %v558
    %v1267 = vadd.f32 %v1264, %v599
    %v1268 = vadd.f32 %v1266, %v682
    %v1269 = vadd.f32 %v1267, %v683
    %v1270 = vxor.u32 %v1268, 2147483648
    %v1271 = vmul.f32 %v1270, 1.442695
    %v1272 = vpow.pop %v1271
    %v1273 = vadd.f32 %v1272, 1.0
    %v1274 = vrcp.pop %v1273
    %v1275 = vmul.f32 %v1273, %v1274
    %v1276 = vsub.f32 1.0, %v1275
    %v1277 = vmul.f32 %v1274, %v1276
    %v1278 = vadd.f32 %v1274, %v1277
    %vm1279 = vweird.f32 %v1273
    %vm1280 = vweird.f32 %v1274
    %vm1281 = vmor %vm1279, %vm1280
    %v1282 = vsel %vm1281, %v1274, %v1278
    %v1283 = vand.u32 2147483647, %v1273
    %vm1284 = vcmp.eq.f32.partialorder %v1283, 8.507059e+37
    %v1285 = vand.u32 %v1273, 2147483648
    %v1286 = vor.u32 1.1754944e-38, %v1285
    %v1287 = vsel %vm1284, %v1286, %v1282
    %v1288 = vmul.f32 1.0, %v1287
    %v1289 = vtanh.pop %v1269
    %v1290 = vxor.u32 %v1269, 2147483648
    %v1291 = vmul.f32 %v1290, 1.442695
    %v1292 = vpow.pop %v1291
    %v1293 = vadd.f32 %v1292, 1.0
    %v1294 = vrcp.pop %v1293
    %v1295 = vmul.f32 %v1293, %v1294
    %v1296 = vsub.f32 1.0, %v1295
    %v1297 = vmul.f32 %v1294, %v1296
    %v1298 = vadd.f32 %v1294, %v1297
    %vm1299 = vweird.f32 %v1293
    %vm1300 = vweird.f32 %v1294
    %vm1301 = vmor %vm1299, %vm1300
    %v1302 = vsel %vm1301, %v1294, %v1298
    %v1303 = vand.u32 2147483647, %v1293
    %vm1304 = vcmp.eq.f32.partialorder %v1303, 8.507059e+37
    %v1305 = vand.u32 %v1293, 2147483648
    %v1306 = vor.u32 1.1754944e-38, %v1305
    %v1307 = vsel %vm1304, %v1306, %v1302
    %v1308 = vmul.f32 1.0, %v1307
    %v1309 = vmul.f32 %v1288, %v1218
    %v1310 = vmul.f32 %v1288, %v1289
    %1312 = vrot.lane.b32.xlu0 %v1310, 64
    %v1313 = vpop.permute.xlu0 %1312
    %v1315 = vadd.f32 %v1309, %v1313
    %v1316 = vtanh.pop %v1315
    %v1317 = vmul.f32 %v1308, %v1316
    %1319 = vrot.lane.b32.xlu0 %v1317, 64
    %v1320 = vpop.permute.xlu0 %1319
    %v1321 = vsel %vm168, %v1320, 0
    %1323 = vmatpush.msra.mxu0 0.0
    %1324 = vmatpush.msra.mxu0 0.0
    %1325 = vmatpush.msra.mxu0 0.0
    %1326 = vmatpush.msra.mxu0 0.0
    %1327 = vmatpush.msra.mxu0 0.0
    %1328 = vmatpush.msra.mxu0 0.0
    %1329 = vmatpush.msra.mxu0 0.0
    %1330 = vmatpush.msra.mxu0 0.0
    %1331 = vmatpush.msra.mxu0 %v633
    %1332 = vmatpush.msra.mxu0 %v631
    %1333 = vmatpush.msra.mxu0 %v629
    %1334 = vmatpush.msra.mxu0 %v627
    %1335 = vmatpush.msra.mxu0 %v625
    %1336 = vmatpush.msra.mxu0 %v623
    %1337 = vmatpush.msra.mxu0 %v621
    %1338 = vmatpush.msra.mxu0 %v619
    %1339 = vmatmul.f32.gmra.mxu0 %v1321
    %v1340 = vpop.f32.mrf.mxu0
    %v1341 = vadd.f32 %v494, %v1340
    %1342 = vdwg.mxu0
    %1343 = vmatpush.msra.mxu0 0.0
    %1344 = vmatpush.msra.mxu0 0.0
    %1345 = vmatpush.msra.mxu0 0.0
    %1346 = vmatpush.msra.mxu0 0.0
    %1347 = vmatpush.msra.mxu0 0.0
    %1348 = vmatpush.msra.mxu0 0.0
    %1349 = vmatpush.msra.mxu0 0.0
    %1350 = vmatpush.msra.mxu0 0.0
    %1351 = vmatpush.msra.mxu0 %v634
    %1352 = vmatpush.msra.mxu0 %v632
    %1353 = vmatpush.msra.mxu0 %v630
    %1354 = vmatpush.msra.mxu0 %v628
    %1355 = vmatpush.msra.mxu0 %v626
    %1356 = vmatpush.msra.mxu0 %v624
    %1357 = vmatpush.msra.mxu0 %v622
    %1358 = vmatpush.msra.mxu0 %v620
    %1359 = vmatmul.f32.gmra.mxu0 %v1321
    %v1360 = vpop.f32.mrf.mxu0
    %v1361 = vadd.f32 %v535, %v1360
    %1362 = vdwg.mxu0
    %v1363 = vadd.f32 %v1341, %v555
    %v1364 = vadd.f32 %v1361, %v596
    %v1365 = vadd.f32 %v1363, %v682
    %v1366 = vadd.f32 %v1364, %v683
    %v1367 = vxor.u32 %v1365, 2147483648
    %v1368 = vmul.f32 %v1367, 1.442695
    %v1369 = vpow.pop %v1368
    %v1370 = vadd.f32 %v1369, 1.0
    %v1371 = vrcp.pop %v1370
    %v1372 = vmul.f32 %v1370, %v1371
    %v1373 = vsub.f32 1.0, %v1372
    %v1374 = vmul.f32 %v1371, %v1373
    %v1375 = vadd.f32 %v1371, %v1374
    %vm1376 = vweird.f32 %v1370
    %vm1377 = vweird.f32 %v1371
    %vm1378 = vmor %vm1376, %vm1377
    %v1379 = vsel %vm1378, %v1371, %v1375
    %v1380 = vand.u32 2147483647, %v1370
    %vm1381 = vcmp.eq.f32.partialorder %v1380, 8.507059e+37
    %v1382 = vand.u32 %v1370, 2147483648
    %v1383 = vor.u32 1.1754944e-38, %v1382
    %v1384 = vsel %vm1381, %v1383, %v1379
    %v1385 = vmul.f32 1.0, %v1384
    %v1386 = vtanh.pop %v1366
    %v1387 = vxor.u32 %v1366, 2147483648
    %v1388 = vmul.f32 %v1387, 1.442695
    %v1389 = vpow.pop %v1388
    %v1390 = vadd.f32 %v1389, 1.0
    %v1391 = vrcp.pop %v1390
    %v1392 = vmul.f32 %v1390, %v1391
    %v1393 = vsub.f32 1.0, %v1392
    %v1394 = vmul.f32 %v1391, %v1393
    %v1395 = vadd.f32 %v1391, %v1394
    %vm1396 = vweird.f32 %v1390
    %vm1397 = vweird.f32 %v1391
    %vm1398 = vmor %vm1396, %vm1397
    %v1399 = vsel %vm1398, %v1391, %v1395
    %v1400 = vand.u32 2147483647, %v1390
    %vm1401 = vcmp.eq.f32.partialorder %v1400, 8.507059e+37
    %v1402 = vand.u32 %v1390, 2147483648
    %v1403 = vor.u32 1.1754944e-38, %v1402
    %v1404 = vsel %vm1401, %v1403, %v1399
    %v1405 = vmul.f32 1.0, %v1404
    %v1406 = vmul.f32 %v1385, %v1315
    %v1407 = vmul.f32 %v1385, %v1386
    %1409 = vrot.lane.b32.xlu0 %v1407, 64
    %v1410 = vpop.permute.xlu0 %1409
    %v1412 = vadd.f32 %v1406, %v1410
    %v1413 = vtanh.pop %v1412
    %v1414 = vmul.f32 %v1405, %v1413
    %1416 = vrot.lane.b32.xlu0 %v1414, 64
    %v1417 = vpop.permute.xlu0 %1416
    %v1426 = vsel %vm430, %v738, %v1417
    %v1427 = vsel %vm430, %v835, %v1320
    %v1428 = vsel %vm430, %v932, %v1223
    %v1429 = vsel %vm430, %v1029, %v1126
    %v1430 = vsel %vm430, %v1126, %v1029
    %v1431 = vsel %vm430, %v1223, %v932
    %v1432 = vsel %vm430, %v1320, %v835
    %v1433 = vsel %vm430, %v1417, %v738
    %1435 = vset.pattern.permute.xlu0 0
    %1436 = vperm.xlu0 %1435, %v78
    %v1437 = vpop.permute.xlu0 %1436
    %1440 = vset.pattern.permute.xlu0 0
    %1441 = vperm.xlu0 %1440, %v79
    %v1442 = vpop.permute.xlu0 %1441
    %1445 = vset.pattern.permute.xlu0 0
    %1446 = vperm.xlu0 %1445, %v80
    %v1447 = vpop.permute.xlu0 %1446
    %1450 = vset.pattern.permute.xlu0 0
    %1451 = vperm.xlu0 %1450, %v81
    %v1452 = vpop.permute.xlu0 %1451
    %1455 = vset.pattern.permute.xlu0 0
    %1456 = vperm.xlu0 %1455, %v82
    %v1457 = vpop.permute.xlu0 %1456
    %1460 = vset.pattern.permute.xlu0 0
    %1461 = vperm.xlu0 %1460, %v83
    %v1462 = vpop.permute.xlu0 %1461
    %1465 = vset.pattern.permute.xlu0 0
    %1466 = vperm.xlu0 %1465, %v84
    %v1467 = vpop.permute.xlu0 %1466
    %1470 = vset.pattern.permute.xlu0 0
    %1471 = vperm.xlu0 %1470, %v85
    %v1472 = vpop.permute.xlu0 %1471
    %v1474 = vmul.f32 %v1426, %v1437
    %v1475 = vmul.f32 %v1427, %v1442
    %v1476 = vmul.f32 %v1428, %v1447
    %v1477 = vmul.f32 %v1429, %v1452
    %v1478 = vmul.f32 %v1430, %v1457
    %v1479 = vmul.f32 %v1431, %v1462
    %v1480 = vmul.f32 %v1432, %v1467
    %v1481 = vmul.f32 %v1433, %v1472
    %vm1482 = vcmask 7168
    %v1483 = vsel %vm1482, %v78, 0.0
    %v1484 = vsel %vm1482, %v79, 0.0
    %v1485 = vadd.f32 %v1483, %v1484
    %v1486 = vsel %vm1482, %v80, 0.0
    %v1487 = vadd.f32 %v1485, %v1486
    %v1488 = vsel %vm1482, %v81, 0.0
    %v1489 = vadd.f32 %v1487, %v1488
    %v1490 = vsel %vm1482, %v82, 0.0
    %v1491 = vadd.f32 %v1489, %v1490
    %v1492 = vsel %vm1482, %v83, 0.0
    %v1493 = vadd.f32 %v1491, %v1492
    %v1494 = vsel %vm1482, %v84, 0.0
    %v1495 = vadd.f32 %v1493, %v1494
    %v1496 = vsel %vm1482, %v85, 0.0
    %v1497 = vadd.f32 %v1495, %v1496
    %v1498 = vsel %vm168, %v1474, 0.0
    %v1499 = vsel %vm168, %v1475, 0.0
    %v1500 = vadd.f32 %v1498, %v1499
    %v1501 = vsel %vm168, %v1476, 0.0
    %v1502 = vadd.f32 %v1500, %v1501
    %v1503 = vsel %vm168, %v1477, 0.0
    %v1504 = vadd.f32 %v1502, %v1503
    %v1505 = vsel %vm168, %v1478, 0.0
    %v1506 = vadd.f32 %v1504, %v1505
    %v1507 = vsel %vm168, %v1479, 0.0
    %v1508 = vadd.f32 %v1506, %v1507
    %v1509 = vsel %vm168, %v1480, 0.0
    %v1510 = vadd.f32 %v1508, %v1509
    %v1511 = vsel %vm168, %v1481, 0.0
    %v1512 = vadd.f32 %v1510, %v1511
    %v1513 = vrcp.pop %v1497
    %1515 = vset.pattern.permute.xlu0 0
    %1516 = vperm.xlu0 %1515, %v1513
    %v1517 = vpop.permute.xlu0 %1516
    %v1519 = vmul.f32 %v1512, %v1517
    %v1520 = vld [vmem:[%s10] sm:$0xff]
    %v1521 = vld [vmem:[%s10 + $0x8] sm:$0xff]
    %v1522 = vld [vmem:[%s10 + $0x10] sm:$0xff]
    %v1523 = vld [vmem:[%s10 + $0x18] sm:$0xff]
    %v1524 = vld [vmem:[%s10 + $0x20] sm:$0xff]
    %v1525 = vld [vmem:[%s10 + $0x28] sm:$0xff]
    %v1526 = vld [vmem:[%s10 + $0x30] sm:$0xff]
    %v1527 = vld [vmem:[%s10 + $0x38] sm:$0xff]
    %v1528 = vld [vmem:[%s11] sm:$0x1]
    %v1530 = vperm.slane %v1528, 0
    %v1533 = vsel %vm168, %v1519, 0
    %1535 = vmatpush.msra.mxu0 0.0
    %1536 = vmatpush.msra.mxu0 0.0
    %1537 = vmatpush.msra.mxu0 0.0
    %1538 = vmatpush.msra.mxu0 0.0
    %1539 = vmatpush.msra.mxu0 0.0
    %1540 = vmatpush.msra.mxu0 0.0
    %1541 = vmatpush.msra.mxu0 0.0
    %1542 = vmatpush.msra.mxu0 0.0
    %1543 = vmatpush.msra.mxu0 %v1527
    %1544 = vmatpush.msra.mxu0 %v1526
    %1545 = vmatpush.msra.mxu0 %v1525
    %1546 = vmatpush.msra.mxu0 %v1524
    %1547 = vmatpush.msra.mxu0 %v1523
    %1548 = vmatpush.msra.mxu0 %v1522
    %1549 = vmatpush.msra.mxu0 %v1521
    %1550 = vmatpush.msra.mxu0 %v1520
    %1551 = vmatmul.f32.gmra.mxu0 %v1533
    %v1552 = vpop.f32.mrf.mxu0
    %v1553 = vadd.f32 %v1530, %v1552
    %1554 = vdwg.mxu0
    %v1555 = vtanh.pop %v1553
    %v1556 = vld [vmem:[%s12] sm:$0xff]
    %v1557 = vld [vmem:[%s12 + $0x8] sm:$0xff]
    %v1558 = vld [vmem:[%s12 + $0x10] sm:$0xff]
    %v1559 = vld [vmem:[%s12 + $0x18] sm:$0xff]
    %v1560 = vld [vmem:[%s12 + $0x20] sm:$0xff]
    %v1561 = vld [vmem:[%s12 + $0x28] sm:$0xff]
    %v1562 = vld [vmem:[%s12 + $0x30] sm:$0xff]
    %v1563 = vld [vmem:[%s12 + $0x38] sm:$0xff]
    %v1565 = vsel %vm168, %v1474, 0
    %v1568 = vsel %vm168, %v1475, 0
    %v1571 = vsel %vm168, %v1476, 0
    %v1574 = vsel %vm168, %v1477, 0
    %v1577 = vsel %vm168, %v1478, 0
    %v1580 = vsel %vm168, %v1479, 0
    %v1583 = vsel %vm168, %v1480, 0
    %v1586 = vsel %vm168, %v1481, 0
    %1588 = vmatpush.msra.mxu0 0.0
    %1589 = vmatpush.msra.mxu0 0.0
    %1590 = vmatpush.msra.mxu0 0.0
    %1591 = vmatpush.msra.mxu0 0.0
    %1592 = vmatpush.msra.mxu0 0.0
    %1593 = vmatpush.msra.mxu0 0.0
    %1594 = vmatpush.msra.mxu0 0.0
    %1595 = vmatpush.msra.mxu0 0.0
    %1596 = vmatpush.msra.mxu0 %v1563
    %1597 = vmatpush.msra.mxu0 %v1562
    %1598 = vmatpush.msra.mxu0 %v1561
    %1599 = vmatpush.msra.mxu0 %v1560
    %1600 = vmatpush.msra.mxu0 %v1559
    %1601 = vmatpush.msra.mxu0 %v1558
    %1602 = vmatpush.msra.mxu0 %v1557
    %1603 = vmatpush.msra.mxu0 %v1556
    %1604 = vmatmul.f32.gmra.mxu0 %v1565
    %v1605 = vpop.f32.mrf.mxu0
    %v1606 = vadd.f32 0.0, %v1605
    %1607 = vmatmul.f32.gmra.mxu0 %v1568
    %v1608 = vpop.f32.mrf.mxu0
    %v1609 = vadd.f32 0.0, %v1608
    %1610 = vmatmul.f32.gmra.mxu0 %v1571
    %v1611 = vpop.f32.mrf.mxu0
    %v1612 = vadd.f32 0.0, %v1611
    %1613 = vmatmul.f32.gmra.mxu0 %v1574
    %v1614 = vpop.f32.mrf.mxu0
    %v1615 = vadd.f32 0.0, %v1614
    %1616 = vmatmul.f32.gmra.mxu0 %v1577
    %v1617 = vpop.f32.mrf.mxu0
    %v1618 = vadd.f32 0.0, %v1617
    %1619 = vmatmul.f32.gmra.mxu0 %v1580
    %v1620 = vpop.f32.mrf.mxu0
    %v1621 = vadd.f32 0.0, %v1620
    %1622 = vmatmul.f32.gmra.mxu0 %v1583
    %v1623 = vpop.f32.mrf.mxu0
    %v1624 = vadd.f32 0.0, %v1623
    %1625 = vmatmul.f32.gmra.mxu0 %v1586
    %v1626 = vpop.f32.mrf.mxu0
    %v1627 = vadd.f32 0.0, %v1626
    %1628 = vdwg.mxu0
    %v1629 = vld [vmem:[%s13] sm:$0xff]
    %v1630 = vld [vmem:[%s13 + $0x8] sm:$0xff]
    %v1631 = vld [vmem:[%s13 + $0x10] sm:$0xff]
    %v1632 = vld [vmem:[%s13 + $0x18] sm:$0xff]
    %v1633 = vld [vmem:[%s15] sm:$0x1]
    %v1635 = vperm.slane %v1633, 0
    %v1638 = vsel %vm430, %v391, 0
    %v1641 = vsel %vm430, %v394, 0
    %v1644 = vsel %vm430, %v397, 0
    %v1647 = vsel %vm430, %v400, 0
    %v1650 = vsel %vm430, %v403, 0
    %v1653 = vsel %vm430, %v406, 0
    %v1656 = vsel %vm430, %v409, 0
    %v1659 = vsel %vm430, %v412, 0
    %1661 = vmatpush.msra.mxu0 0.0
    %1662 = vmatpush.msra.mxu0 0.0
    %1663 = vmatpush.msra.mxu0 0.0
    %1664 = vmatpush.msra.mxu0 0.0
    %1665 = vmatpush.msra.mxu0 0.0
    %1666 = vmatpush.msra.mxu0 0.0
    %1667 = vmatpush.msra.mxu0 0.0
    %1668 = vmatpush.msra.mxu0 0.0
    %1669 = vmatpush.msra.mxu0 0.0
    %1670 = vmatpush.msra.mxu0 0.0
    %1671 = vmatpush.msra.mxu0 0.0
    %1672 = vmatpush.msra.mxu0 0.0
    %1673 = vmatpush.msra.mxu0 %v1632
    %1674 = vmatpush.msra.mxu0 %v1631
    %1675 = vmatpush.msra.mxu0 %v1630
    %1676 = vmatpush.msra.mxu0 %v1629
    %1677 = vmatmul.f32.gmra.mxu0 %v1638
    %v1678 = vpop.f32.mrf.mxu0
    %v1679 = vadd.f32 %v1635, %v1678
    %1680 = vmatmul.f32.gmra.mxu0 %v1641
    %v1681 = vpop.f32.mrf.mxu0
    %v1682 = vadd.f32 %v1635, %v1681
    %1683 = vmatmul.f32.gmra.mxu0 %v1644
    %v1684 = vpop.f32.mrf.mxu0
    %v1685 = vadd.f32 %v1635, %v1684
    %1686 = vmatmul.f32.gmra.mxu0 %v1647
    %v1687 = vpop.f32.mrf.mxu0
    %v1688 = vadd.f32 %v1635, %v1687
    %1689 = vmatmul.f32.gmra.mxu0 %v1650
    %v1690 = vpop.f32.mrf.mxu0
    %v1691 = vadd.f32 %v1635, %v1690
    %1692 = vmatmul.f32.gmra.mxu0 %v1653
    %v1693 = vpop.f32.mrf.mxu0
    %v1694 = vadd.f32 %v1635, %v1693
    %1695 = vmatmul.f32.gmra.mxu0 %v1656
    %v1696 = vpop.f32.mrf.mxu0
    %v1697 = vadd.f32 %v1635, %v1696
    %1698 = vmatmul.f32.gmra.mxu0 %v1659
    %v1699 = vpop.f32.mrf.mxu0
    %v1700 = vadd.f32 %v1635, %v1699
    %1701 = vdwg.mxu0
    %v1702 = vld [vmem:[%s17] sm:$0xff]
    %v1703 = vld [vmem:[%s17 + $0x8] sm:$0xff]
    %v1704 = vld [vmem:[%s17 + $0x10] sm:$0xff]
    %v1705 = vld [vmem:[%s17 + $0x18] sm:$0xff]
    %v1706 = vld [vmem:[%s19] sm:$0x1]
    %v1708 = vperm.slane %v1706, 0
    %1710 = vmatpush.msra.mxu0 0.0
    %1711 = vmatpush.msra.mxu0 0.0
    %1712 = vmatpush.msra.mxu0 0.0
    %1713 = vmatpush.msra.mxu0 0.0
    %1714 = vmatpush.msra.mxu0 0.0
    %1715 = vmatpush.msra.mxu0 0.0
    %1716 = vmatpush.msra.mxu0 0.0
    %1717 = vmatpush.msra.mxu0 0.0
    %1718 = vmatpush.msra.mxu0 0.0
    %1719 = vmatpush.msra.mxu0 0.0
    %1720 = vmatpush.msra.mxu0 0.0
    %1721 = vmatpush.msra.mxu0 0.0
    %1722 = vmatpush.msra.mxu0 %v1705
    %1723 = vmatpush.msra.mxu0 %v1704
    %1724 = vmatpush.msra.mxu0 %v1703
    %1725 = vmatpush.msra.mxu0 %v1702
    %1726 = vmatmul.f32.gmra.mxu0 %v1638
    %v1727 = vpop.f32.mrf.mxu0
    %v1728 = vadd.f32 %v1708, %v1727
    %1729 = vmatmul.f32.gmra.mxu0 %v1641
    %v1730 = vpop.f32.mrf.mxu0
    %v1731 = vadd.f32 %v1708, %v1730
    %1732 = vmatmul.f32.gmra.mxu0 %v1644
    %v1733 = vpop.f32.mrf.mxu0
    %v1734 = vadd.f32 %v1708, %v1733
    %1735 = vmatmul.f32.gmra.mxu0 %v1647
    %v1736 = vpop.f32.mrf.mxu0
    %v1737 = vadd.f32 %v1708, %v1736
    %1738 = vmatmul.f32.gmra.mxu0 %v1650
    %v1739 = vpop.f32.mrf.mxu0
    %v1740 = vadd.f32 %v1708, %v1739
    %1741 = vmatmul.f32.gmra.mxu0 %v1653
    %v1742 = vpop.f32.mrf.mxu0
    %v1743 = vadd.f32 %v1708, %v1742
    %1744 = vmatmul.f32.gmra.mxu0 %v1656
    %v1745 = vpop.f32.mrf.mxu0
    %v1746 = vadd.f32 %v1708, %v1745
    %1747 = vmatmul.f32.gmra.mxu0 %v1659
    %v1748 = vpop.f32.mrf.mxu0
    %v1749 = vadd.f32 %v1708, %v1748
    %1750 = vdwg.mxu0
    %v1751 = vld [vmem:[%s14] sm:$0xff]
    %v1752 = vld [vmem:[%s14 + $0x8] sm:$0xff]
    %v1753 = vld [vmem:[%s14 + $0x10] sm:$0xff]
    %v1754 = vld [vmem:[%s14 + $0x18] sm:$0xff]
    %v1755 = vld [vmem:[%s16] sm:$0x1]
    %v1756 = vld [vmem:[%s18] sm:$0xff]
    %v1757 = vld [vmem:[%s18 + $0x8] sm:$0xff]
    %v1758 = vld [vmem:[%s18 + $0x10] sm:$0xff]
    %v1759 = vld [vmem:[%s18 + $0x18] sm:$0xff]
    %v1760 = vld [vmem:[%s18 + $0x20] sm:$0xff]
    %v1761 = vld [vmem:[%s18 + $0x28] sm:$0xff]
    %v1762 = vld [vmem:[%s18 + $0x30] sm:$0xff]
    %v1763 = vld [vmem:[%s18 + $0x38] sm:$0xff]
    %v1764 = vld [vmem:[%s18 + $0x40] sm:$0xff]
    %v1765 = vld [vmem:[%s18 + $0x48] sm:$0xff]
    %v1766 = vld [vmem:[%s18 + $0x50] sm:$0xff]
    %v1767 = vld [vmem:[%s18 + $0x58] sm:$0xff]
    %v1769 = vsel %vm430, %v1555, 0
    %1771 = vmatpush.msra.mxu0 0.0
    %1772 = vmatpush.msra.mxu0 0.0
    %1773 = vmatpush.msra.mxu0 0.0
    %1774 = vmatpush.msra.mxu0 0.0
    %1775 = vmatpush.msra.mxu0 0.0
    %1776 = vmatpush.msra.mxu0 0.0
    %1777 = vmatpush.msra.mxu0 0.0
    %1778 = vmatpush.msra.mxu0 0.0
    %1779 = vmatpush.msra.mxu0 0.0
    %1780 = vmatpush.msra.mxu0 0.0
    %1781 = vmatpush.msra.mxu0 0.0
    %1782 = vmatpush.msra.mxu0 0.0
    %1783 = vmatpush.msra.mxu0 %v1754
    %1784 = vmatpush.msra.mxu0 %v1753
    %1785 = vmatpush.msra.mxu0 %v1752
    %1786 = vmatpush.msra.mxu0 %v1751
    %1787 = vmatmul.f32.gmra.mxu0 %v1769
    %v1788 = vpop.f32.mrf.mxu0
    %v1789 = vadd.f32 %v1679, %v1788
    %1790 = vdwg.mxu0
    %v1791 = vadd.f32 %v1606, %v1789
    %v1792 = vadd.f32 %v1609, %v1789
    %v1793 = vadd.f32 %v1612, %v1789
    %v1794 = vadd.f32 %v1615, %v1789
    %v1795 = vadd.f32 %v1618, %v1789
    %v1796 = vadd.f32 %v1621, %v1789
    %v1797 = vadd.f32 %v1624, %v1789
    %v1798 = vadd.f32 %v1627, %v1789
    %v1799 = vtanh.pop %v1791
    %v1800 = vtanh.pop %v1792
    %v1801 = vtanh.pop %v1793
    %v1802 = vtanh.pop %v1794
    %v1803 = vtanh.pop %v1795
    %v1804 = vtanh.pop %v1796
    %v1805 = vtanh.pop %v1797
    %v1806 = vtanh.pop %v1798
    %v1808 = vperm.slane %v1755, 0
    %v1810 = vmul.f32 %v1799, %v1808
    %v1811 = vmul.f32 %v1800, %v1808
    %v1812 = vmul.f32 %v1801, %v1808
    %v1813 = vmul.f32 %v1802, %v1808
    %v1814 = vmul.f32 %v1803, %v1808
    %v1815 = vmul.f32 %v1804, %v1808
    %v1816 = vmul.f32 %v1805, %v1808
    %v1817 = vmul.f32 %v1806, %v1808
    %v1818 = vsel %vm430, %v1810, 0.0
    %1819 = vadd.xlane.f32.xlu0 %v1818
    %v1820 = vpop.xlane.xlu0 %1819
    %v1821 = vsel %vm430, %v1811, 0.0
    %1822 = vadd.xlane.f32.xlu0 %v1821
    %v1823 = vpop.xlane.xlu0 %1822
    %v1824 = vsel %vm430, %v1812, 0.0
    %1825 = vadd.xlane.f32.xlu0 %v1824
    %v1826 = vpop.xlane.xlu0 %1825
    %v1827 = vsel %vm430, %v1813, 0.0
    %1828 = vadd.xlane.f32.xlu0 %v1827
    %v1829 = vpop.xlane.xlu0 %1828
    %v1830 = vsel %vm430, %v1814, 0.0
    %1831 = vadd.xlane.f32.xlu0 %v1830
    %v1832 = vpop.xlane.xlu0 %1831
    %v1833 = vsel %vm430, %v1815, 0.0
    %1834 = vadd.xlane.f32.xlu0 %v1833
    %v1835 = vpop.xlane.xlu0 %1834
    %v1836 = vsel %vm430, %v1816, 0.0
    %1837 = vadd.xlane.f32.xlu0 %v1836
    %v1838 = vpop.xlane.xlu0 %1837
    %v1839 = vsel %vm430, %v1817, 0.0
    %1840 = vadd.xlane.f32.xlu0 %v1839
    %v1841 = vpop.xlane.xlu0 %1840
    %v1842 = vmax.f32 %v1820, %v1832
    %v1843 = vmax.f32 %v1823, %v1835
    %v1844 = vmax.f32 %v1826, %v1838
    %v1845 = vmax.f32 %v1829, %v1841
    %v1846 = vmax.f32 %v1842, %v1843
    %v1847 = vmax.f32 %v1844, %v1845
    %v1848 = vmax.f32 %v1846, %v1847
    %v1849 = vsub.f32 %v1820, %v1848
    %v1850 = vsub.f32 %v1823, %v1848
    %v1851 = vsub.f32 %v1826, %v1848
    %v1852 = vsub.f32 %v1829, %v1848
    %v1853 = vsub.f32 %v1832, %v1848
    %v1854 = vsub.f32 %v1835, %v1848
    %v1855 = vsub.f32 %v1838, %v1848
    %v1856 = vsub.f32 %v1841, %v1848
    %v1857 = vmul.f32 %v1849, 1.442695
    %v1858 = vpow.pop %v1857
    %v1859 = vmul.f32 %v1850, 1.442695
    %v1860 = vpow.pop %v1859
    %v1861 = vmul.f32 %v1851, 1.442695
    %v1862 = vpow.pop %v1861
    %v1863 = vmul.f32 %v1852, 1.442695
    %v1864 = vpow.pop %v1863
    %v1865 = vmul.f32 %v1853, 1.442695
    %v1866 = vpow.pop %v1865
    %v1867 = vmul.f32 %v1854, 1.442695
    %v1868 = vpow.pop %v1867
    %v1869 = vmul.f32 %v1855, 1.442695
    %v1870 = vpow.pop %v1869
    %v1871 = vmul.f32 %v1856, 1.442695
    %v1872 = vpow.pop %v1871
    %v1873 = vmul.f32 %v1858, %v78
    %v1874 = vmul.f32 %v1860, %v79
    %v1875 = vmul.f32 %v1862, %v80
    %v1876 = vmul.f32 %v1864, %v81
    %v1877 = vmul.f32 %v1866, %v82
    %v1878 = vmul.f32 %v1868, %v83
    %v1879 = vmul.f32 %v1870, %v84
    %v1880 = vmul.f32 %v1872, %v85
    %v1881 = vsel %vm1482, %v1873, 0.0
    %v1882 = vsel %vm1482, %v1874, 0.0
    %v1883 = vadd.f32 %v1881, %v1882
    %v1884 = vsel %vm1482, %v1875, 0.0
    %v1885 = vadd.f32 %v1883, %v1884
    %v1886 = vsel %vm1482, %v1876, 0.0
    %v1887 = vadd.f32 %v1885, %v1886
    %v1888 = vsel %vm1482, %v1877, 0.0
    %v1889 = vadd.f32 %v1887, %v1888
    %v1890 = vsel %vm1482, %v1878, 0.0
    %v1891 = vadd.f32 %v1889, %v1890
    %v1892 = vsel %vm1482, %v1879, 0.0
    %v1893 = vadd.f32 %v1891, %v1892
    %v1894 = vsel %vm1482, %v1880, 0.0
    %v1895 = vadd.f32 %v1893, %v1894
    %1897 = vset.pattern.permute.xlu0 0
    %1898 = vperm.xlu0 %1897, %v1873
    %v1899 = vpop.permute.xlu0 %1898
    %1902 = vset.pattern.permute.xlu0 0
    %1903 = vperm.xlu0 %1902, %v1874
    %v1904 = vpop.permute.xlu0 %1903
    %1907 = vset.pattern.permute.xlu0 0
    %1908 = vperm.xlu0 %1907, %v1875
    %v1909 = vpop.permute.xlu0 %1908
    %1912 = vset.pattern.permute.xlu0 0
    %1913 = vperm.xlu0 %1912, %v1876
    %v1914 = vpop.permute.xlu0 %1913
    %1917 = vset.pattern.permute.xlu0 0
    %1918 = vperm.xlu0 %1917, %v1877
    %v1919 = vpop.permute.xlu0 %1918
    %1922 = vset.pattern.permute.xlu0 0
    %1923 = vperm.xlu0 %1922, %v1878
    %v1924 = vpop.permute.xlu0 %1923
    %1927 = vset.pattern.permute.xlu0 0
    %1928 = vperm.xlu0 %1927, %v1879
    %v1929 = vpop.permute.xlu0 %1928
    %1932 = vset.pattern.permute.xlu0 0
    %1933 = vperm.xlu0 %1932, %v1880
    %v1934 = vpop.permute.xlu0 %1933
    %v1936 = vmul.f32 %v1899, %v1474
    %v1937 = vmul.f32 %v1904, %v1475
    %v1938 = vmul.f32 %v1909, %v1476
    %v1939 = vmul.f32 %v1914, %v1477
    %v1940 = vmul.f32 %v1919, %v1478
    %v1941 = vmul.f32 %v1924, %v1479
    %v1942 = vmul.f32 %v1929, %v1480
    %v1943 = vmul.f32 %v1934, %v1481
    %v1944 = vsel %vm168, %v1936, 0.0
    %v1945 = vsel %vm168, %v1937, 0.0
    %v1946 = vadd.f32 %v1944, %v1945
    %v1947 = vsel %vm168, %v1938, 0.0
    %v1948 = vadd.f32 %v1946, %v1947
    %v1949 = vsel %vm168, %v1939, 0.0
    %v1950 = vadd.f32 %v1948, %v1949
    %v1951 = vsel %vm168, %v1940, 0.0
    %v1952 = vadd.f32 %v1950, %v1951
    %v1953 = vsel %vm168, %v1941, 0.0
    %v1954 = vadd.f32 %v1952, %v1953
    %v1955 = vsel %vm168, %v1942, 0.0
    %v1956 = vadd.f32 %v1954, %v1955
    %v1957 = vsel %vm168, %v1943, 0.0
    %v1958 = vadd.f32 %v1956, %v1957
    %v1959 = vadd.f32 %v1895, 1e-15
    %v1960 = vrcp.pop %v1959
    %1962 = vset.pattern.permute.xlu0 0
    %1963 = vperm.xlu0 %1962, %v1960
    %v1964 = vpop.permute.xlu0 %1963
    %v1966 = vmul.f32 %v1958, %v1964
    %1967 = vrot.lane.b32.xlu0 %v1555, 64
    %v1968 = vpop.permute.xlu0 %1967
    %v1970 = vsel %vm168, %v1966, %v1968
    %vm1971 = vcmask 785408
    %v1973 = vsel %vm1971, %v1970, 0
    %1975 = vmatpush.msra.mxu0 0.0
    %1976 = vmatpush.msra.mxu0 0.0
    %1977 = vmatpush.msra.mxu0 0.0
    %1978 = vmatpush.msra.mxu0 0.0
    %1979 = vmatpush.msra.mxu0 %v1767
    %1980 = vmatpush.msra.mxu0 %v1766
    %1981 = vmatpush.msra.mxu0 %v1765
    %1982 = vmatpush.msra.mxu0 %v1764
    %1983 = vmatpush.msra.mxu0 %v1763
    %1984 = vmatpush.msra.mxu0 %v1762
    %1985 = vmatpush.msra.mxu0 %v1761
    %1986 = vmatpush.msra.mxu0 %v1760
    %1987 = vmatpush.msra.mxu0 %v1759
    %1988 = vmatpush.msra.mxu0 %v1758
    %1989 = vmatpush.msra.mxu0 %v1757
    %1990 = vmatpush.msra.mxu0 %v1756
    %1991 = vmatmul.f32.gmra.mxu0 %v1973
    %v1992 = vpop.f32.mrf.mxu0
    %v1993 = vadd.f32 %v1728, %v1992
    %1994 = vdwg.mxu0
    %v1995 = vxor.u32 %v1993, 2147483648
    %v1996 = vmul.f32 %v1995, 1.442695
    %v1997 = vpow.pop %v1996
    %v1998 = vadd.f32 %v1997, 1.0
    %v1999 = vrcp.pop %v1998
    %v2000 = vmul.f32 %v1998, %v1999
    %v2001 = vsub.f32 1.0, %v2000
    %v2002 = vmul.f32 %v1999, %v2001
    %v2003 = vadd.f32 %v1999, %v2002
    %vm2004 = vweird.f32 %v1998
    %vm2005 = vweird.f32 %v1999
    %vm2006 = vmor %vm2004, %vm2005
    %v2007 = vsel %vm2006, %v1999, %v2003
    %v2008 = vand.u32 2147483647, %v1998
    %vm2009 = vcmp.eq.f32.partialorder %v2008, 8.507059e+37
    %v2010 = vand.u32 %v1998, 2147483648
    %v2011 = vor.u32 1.1754944e-38, %v2010
    %v2012 = vsel %vm2009, %v2011, %v2007
    %v2013 = vmul.f32 1.0, %v2012
    %v2014 = vtanh.pop %v1993
    %v2015 = vmul.f32 %v2013, %v1555
    %2017 = vrot.lane.b32.xlu0 %v2014, 64
    %v2018 = vpop.permute.xlu0 %2017
    %v2020 = vmul.f32 %v2013, %v2018
    %2022 = vrot.lane.b32.xlu0 %v2020, 32
    %v2023 = vpop.permute.xlu0 %2022
    %v2025 = vadd.f32 %v2015, %v2023
    %v2026 = vtanh.pop %v2025
    %2028 = vrot.lane.b32.xlu0 %v2026, 64
    %v2029 = vpop.permute.xlu0 %2028
    %v2031 = vmul.f32 %v2013, %v2029
    %2033 = vrot.lane.b32.xlu0 %v2031, 32
    %v2034 = vpop.permute.xlu0 %2033
    %v2035 = vsel %vm430, %v2034, 0
    %2037 = vmatpush.msra.mxu0 0.0
    %2038 = vmatpush.msra.mxu0 0.0
    %2039 = vmatpush.msra.mxu0 0.0
    %2040 = vmatpush.msra.mxu0 0.0
    %2041 = vmatpush.msra.mxu0 0.0
    %2042 = vmatpush.msra.mxu0 0.0
    %2043 = vmatpush.msra.mxu0 0.0
    %2044 = vmatpush.msra.mxu0 0.0
    %2045 = vmatpush.msra.mxu0 0.0
    %2046 = vmatpush.msra.mxu0 0.0
    %2047 = vmatpush.msra.mxu0 0.0
    %2048 = vmatpush.msra.mxu0 0.0
    %2049 = vmatpush.msra.mxu0 %v1754
    %2050 = vmatpush.msra.mxu0 %v1753
    %2051 = vmatpush.msra.mxu0 %v1752
    %2052 = vmatpush.msra.mxu0 %v1751
    %2053 = vmatmul.f32.gmra.mxu0 %v2035
    %v2054 = vpop.f32.mrf.mxu0
    %v2055 = vadd.f32 %v1682, %v2054
    %2056 = vdwg.mxu0
    %v2057 = vadd.f32 %v1606, %v2055
    %v2058 = vadd.f32 %v1609, %v2055
    %v2059 = vadd.f32 %v1612, %v2055
    %v2060 = vadd.f32 %v1615, %v2055
    %v2061 = vadd.f32 %v1618, %v2055
    %v2062 = vadd.f32 %v1621, %v2055
    %v2063 = vadd.f32 %v1624, %v2055
    %v2064 = vadd.f32 %v1627, %v2055
    %v2065 = vtanh.pop %v2057
    %v2066 = vtanh.pop %v2058
    %v2067 = vtanh.pop %v2059
    %v2068 = vtanh.pop %v2060
    %v2069 = vtanh.pop %v2061
    %v2070 = vtanh.pop %v2062
    %v2071 = vtanh.pop %v2063
    %v2072 = vtanh.pop %v2064
    %v2073 = vmul.f32 %v2065, %v1808
    %v2074 = vmul.f32 %v2066, %v1808
    %v2075 = vmul.f32 %v2067, %v1808
    %v2076 = vmul.f32 %v2068, %v1808
    %v2077 = vmul.f32 %v2069, %v1808
    %v2078 = vmul.f32 %v2070, %v1808
    %v2079 = vmul.f32 %v2071, %v1808
    %v2080 = vmul.f32 %v2072, %v1808
    %v2081 = vsel %vm430, %v2073, 0.0
    %2082 = vadd.xlane.f32.xlu0 %v2081
    %v2083 = vpop.xlane.xlu0 %2082
    %v2084 = vsel %vm430, %v2074, 0.0
    %2085 = vadd.xlane.f32.xlu0 %v2084
    %v2086 = vpop.xlane.xlu0 %2085
    %v2087 = vsel %vm430, %v2075, 0.0
    %2088 = vadd.xlane.f32.xlu0 %v2087
    %v2089 = vpop.xlane.xlu0 %2088
    %v2090 = vsel %vm430, %v2076, 0.0
    %2091 = vadd.xlane.f32.xlu0 %v2090
    %v2092 = vpop.xlane.xlu0 %2091
    %v2093 = vsel %vm430, %v2077, 0.0
    %2094 = vadd.xlane.f32.xlu0 %v2093
    %v2095 = vpop.xlane.xlu0 %2094
    %v2096 = vsel %vm430, %v2078, 0.0
    %2097 = vadd.xlane.f32.xlu0 %v2096
    %v2098 = vpop.xlane.xlu0 %2097
    %v2099 = vsel %vm430, %v2079, 0.0
    %2100 = vadd.xlane.f32.xlu0 %v2099
    %v2101 = vpop.xlane.xlu0 %2100
    %v2102 = vsel %vm430, %v2080, 0.0
    %2103 = vadd.xlane.f32.xlu0 %v2102
    %v2104 = vpop.xlane.xlu0 %2103
    %v2105 = vmax.f32 %v2083, %v2095
    %v2106 = vmax.f32 %v2086, %v2098
    %v2107 = vmax.f32 %v2089, %v2101
    %v2108 = vmax.f32 %v2092, %v2104
    %v2109 = vmax.f32 %v2105, %v2106
    %v2110 = vmax.f32 %v2107, %v2108
    %v2111 = vmax.f32 %v2109, %v2110
    %v2112 = vsub.f32 %v2083, %v2111
    %v2113 = vsub.f32 %v2086, %v2111
    %v2114 = vsub.f32 %v2089, %v2111
    %v2115 = vsub.f32 %v2092, %v2111
    %v2116 = vsub.f32 %v2095, %v2111
    %v2117 = vsub.f32 %v2098, %v2111
    %v2118 = vsub.f32 %v2101, %v2111
    %v2119 = vsub.f32 %v2104, %v2111
    %v2120 = vmul.f32 %v2112, 1.442695
    %v2121 = vpow.pop %v2120
    %v2122 = vmul.f32 %v2113, 1.442695
    %v2123 = vpow.pop %v2122
    %v2124 = vmul.f32 %v2114, 1.442695
    %v2125 = vpow.pop %v2124
    %v2126 = vmul.f32 %v2115, 1.442695
    %v2127 = vpow.pop %v2126
    %v2128 = vmul.f32 %v2116, 1.442695
    %v2129 = vpow.pop %v2128
    %v2130 = vmul.f32 %v2117, 1.442695
    %v2131 = vpow.pop %v2130
    %v2132 = vmul.f32 %v2118, 1.442695
    %v2133 = vpow.pop %v2132
    %v2134 = vmul.f32 %v2119, 1.442695
    %v2135 = vpow.pop %v2134
    %v2136 = vmul.f32 %v2121, %v78
    %v2137 = vmul.f32 %v2123, %v79
    %v2138 = vmul.f32 %v2125, %v80
    %v2139 = vmul.f32 %v2127, %v81
    %v2140 = vmul.f32 %v2129, %v82
    %v2141 = vmul.f32 %v2131, %v83
    %v2142 = vmul.f32 %v2133, %v84
    %v2143 = vmul.f32 %v2135, %v85
    %v2144 = vsel %vm1482, %v2136, 0.0
    %v2145 = vsel %vm1482, %v2137, 0.0
    %v2146 = vadd.f32 %v2144, %v2145
    %v2147 = vsel %vm1482, %v2138, 0.0
    %v2148 = vadd.f32 %v2146, %v2147
    %v2149 = vsel %vm1482, %v2139, 0.0
    %v2150 = vadd.f32 %v2148, %v2149
    %v2151 = vsel %vm1482, %v2140, 0.0
    %v2152 = vadd.f32 %v2150, %v2151
    %v2153 = vsel %vm1482, %v2141, 0.0
    %v2154 = vadd.f32 %v2152, %v2153
    %v2155 = vsel %vm1482, %v2142, 0.0
    %v2156 = vadd.f32 %v2154, %v2155
    %v2157 = vsel %vm1482, %v2143, 0.0
    %v2158 = vadd.f32 %v2156, %v2157
    %2160 = vset.pattern.permute.xlu0 0
    %2161 = vperm.xlu0 %2160, %v2136
    %v2162 = vpop.permute.xlu0 %2161
    %2165 = vset.pattern.permute.xlu0 0
    %2166 = vperm.xlu0 %2165, %v2137
    %v2167 = vpop.permute.xlu0 %2166
    %2170 = vset.pattern.permute.xlu0 0
    %2171 = vperm.xlu0 %2170, %v2138
    %v2172 = vpop.permute.xlu0 %2171
    %2175 = vset.pattern.permute.xlu0 0
    %2176 = vperm.xlu0 %2175, %v2139
    %v2177 = vpop.permute.xlu0 %2176
    %2180 = vset.pattern.permute.xlu0 0
    %2181 = vperm.xlu0 %2180, %v2140
    %v2182 = vpop.permute.xlu0 %2181
    %2185 = vset.pattern.permute.xlu0 0
    %2186 = vperm.xlu0 %2185, %v2141
    %v2187 = vpop.permute.xlu0 %2186
    %2190 = vset.pattern.permute.xlu0 0
    %2191 = vperm.xlu0 %2190, %v2142
    %v2192 = vpop.permute.xlu0 %2191
    %2195 = vset.pattern.permute.xlu0 0
    %2196 = vperm.xlu0 %2195, %v2143
    %v2197 = vpop.permute.xlu0 %2196
    %v2199 = vmul.f32 %v2162, %v1474
    %v2200 = vmul.f32 %v2167, %v1475
    %v2201 = vmul.f32 %v2172, %v1476
    %v2202 = vmul.f32 %v2177, %v1477
    %v2203 = vmul.f32 %v2182, %v1478
    %v2204 = vmul.f32 %v2187, %v1479
    %v2205 = vmul.f32 %v2192, %v1480
    %v2206 = vmul.f32 %v2197, %v1481
    %v2207 = vsel %vm168, %v2199, 0.0
    %v2208 = vsel %vm168, %v2200, 0.0
    %v2209 = vadd.f32 %v2207, %v2208
    %v2210 = vsel %vm168, %v2201, 0.0
    %v2211 = vadd.f32 %v2209, %v2210
    %v2212 = vsel %vm168, %v2202, 0.0
    %v2213 = vadd.f32 %v2211, %v2212
    %v2214 = vsel %vm168, %v2203, 0.0
    %v2215 = vadd.f32 %v2213, %v2214
    %v2216 = vsel %vm168, %v2204, 0.0
    %v2217 = vadd.f32 %v2215, %v2216
    %v2218 = vsel %vm168, %v2205, 0.0
    %v2219 = vadd.f32 %v2217, %v2218
    %v2220 = vsel %vm168, %v2206, 0.0
    %v2221 = vadd.f32 %v2219, %v2220
    %v2222 = vadd.f32 %v2158, 1e-15
    %v2223 = vrcp.pop %v2222
    %2225 = vset.pattern.permute.xlu0 0
    %2226 = vperm.xlu0 %2225, %v2223
    %v2227 = vpop.permute.xlu0 %2226
    %v2229 = vmul.f32 %v2221, %v2227
    %2230 = vrot.lane.b32.xlu0 %v2031, 96
    %v2231 = vpop.permute.xlu0 %2230
    %v2233 = vsel %vm168, %v2229, %v2231
    %v2235 = vsel %vm1971, %v2233, 0
    %2237 = vmatpush.msra.mxu0 0.0
    %2238 = vmatpush.msra.mxu0 0.0
    %2239 = vmatpush.msra.mxu0 0.0
    %2240 = vmatpush.msra.mxu0 0.0
    %2241 = vmatpush.msra.mxu0 %v1767
    %2242 = vmatpush.msra.mxu0 %v1766
    %2243 = vmatpush.msra.mxu0 %v1765
    %2244 = vmatpush.msra.mxu0 %v1764
    %2245 = vmatpush.msra.mxu0 %v1763
    %2246 = vmatpush.msra.mxu0 %v1762
    %2247 = vmatpush.msra.mxu0 %v1761
    %2248 = vmatpush.msra.mxu0 %v1760
    %2249 = vmatpush.msra.mxu0 %v1759
    %2250 = vmatpush.msra.mxu0 %v1758
    %2251 = vmatpush.msra.mxu0 %v1757
    %2252 = vmatpush.msra.mxu0 %v1756
    %2253 = vmatmul.f32.gmra.mxu0 %v2235
    %v2254 = vpop.f32.mrf.mxu0
    %v2255 = vadd.f32 %v1731, %v2254
    %2256 = vdwg.mxu0
    %v2257 = vxor.u32 %v2255, 2147483648
    %v2258 = vmul.f32 %v2257, 1.442695
    %v2259 = vpow.pop %v2258
    %v2260 = vadd.f32 %v2259, 1.0
    %v2261 = vrcp.pop %v2260
    %v2262 = vmul.f32 %v2260, %v2261
    %v2263 = vsub.f32 1.0, %v2262
    %v2264 = vmul.f32 %v2261, %v2263
    %v2265 = vadd.f32 %v2261, %v2264
    %vm2266 = vweird.f32 %v2260
    %vm2267 = vweird.f32 %v2261
    %vm2268 = vmor %vm2266, %vm2267
    %v2269 = vsel %vm2268, %v2261, %v2265
    %v2270 = vand.u32 2147483647, %v2260
    %vm2271 = vcmp.eq.f32.partialorder %v2270, 8.507059e+37
    %v2272 = vand.u32 %v2260, 2147483648
    %v2273 = vor.u32 1.1754944e-38, %v2272
    %v2274 = vsel %vm2271, %v2273, %v2269
    %v2275 = vmul.f32 1.0, %v2274
    %v2276 = vtanh.pop %v2255
    %v2277 = vmul.f32 %v2275, %v2025
    %2279 = vrot.lane.b32.xlu0 %v2276, 64
    %v2280 = vpop.permute.xlu0 %2279
    %v2282 = vmul.f32 %v2275, %v2280
    %2284 = vrot.lane.b32.xlu0 %v2282, 32
    %v2285 = vpop.permute.xlu0 %2284
    %v2287 = vadd.f32 %v2277, %v2285
    %v2288 = vtanh.pop %v2287
    %2290 = vrot.lane.b32.xlu0 %v2288, 64
    %v2291 = vpop.permute.xlu0 %2290
    %v2293 = vmul.f32 %v2275, %v2291
    %2295 = vrot.lane.b32.xlu0 %v2293, 32
    %v2296 = vpop.permute.xlu0 %2295
    %v2297 = vsel %vm430, %v2296, 0
    %2299 = vmatpush.msra.mxu0 0.0
    %2300 = vmatpush.msra.mxu0 0.0
    %2301 = vmatpush.msra.mxu0 0.0
    %2302 = vmatpush.msra.mxu0 0.0
    %2303 = vmatpush.msra.mxu0 0.0
    %2304 = vmatpush.msra.mxu0 0.0
    %2305 = vmatpush.msra.mxu0 0.0
    %2306 = vmatpush.msra.mxu0 0.0
    %2307 = vmatpush.msra.mxu0 0.0
    %2308 = vmatpush.msra.mxu0 0.0
    %2309 = vmatpush.msra.mxu0 0.0
    %2310 = vmatpush.msra.mxu0 0.0
    %2311 = vmatpush.msra.mxu0 %v1754
    %2312 = vmatpush.msra.mxu0 %v1753
    %2313 = vmatpush.msra.mxu0 %v1752
    %2314 = vmatpush.msra.mxu0 %v1751
    %2315 = vmatmul.f32.gmra.mxu0 %v2297
    %v2316 = vpop.f32.mrf.mxu0
    %v2317 = vadd.f32 %v1685, %v2316
    %2318 = vdwg.mxu0
    %v2319 = vadd.f32 %v1606, %v2317
    %v2320 = vadd.f32 %v1609, %v2317
    %v2321 = vadd.f32 %v1612, %v2317
    %v2322 = vadd.f32 %v1615, %v2317
    %v2323 = vadd.f32 %v1618, %v2317
    %v2324 = vadd.f32 %v1621, %v2317
    %v2325 = vadd.f32 %v1624, %v2317
    %v2326 = vadd.f32 %v1627, %v2317
    %v2327 = vtanh.pop %v2319
    %v2328 = vtanh.pop %v2320
    %v2329 = vtanh.pop %v2321
    %v2330 = vtanh.pop %v2322
    %v2331 = vtanh.pop %v2323
    %v2332 = vtanh.pop %v2324
    %v2333 = vtanh.pop %v2325
    %v2334 = vtanh.pop %v2326
    %v2335 = vmul.f32 %v2327, %v1808
    %v2336 = vmul.f32 %v2328, %v1808
    %v2337 = vmul.f32 %v2329, %v1808
    %v2338 = vmul.f32 %v2330, %v1808
    %v2339 = vmul.f32 %v2331, %v1808
    %v2340 = vmul.f32 %v2332, %v1808
    %v2341 = vmul.f32 %v2333, %v1808
    %v2342 = vmul.f32 %v2334, %v1808
    %v2343 = vsel %vm430, %v2335, 0.0
    %2344 = vadd.xlane.f32.xlu0 %v2343
    %v2345 = vpop.xlane.xlu0 %2344
    %v2346 = vsel %vm430, %v2336, 0.0
    %2347 = vadd.xlane.f32.xlu0 %v2346
    %v2348 = vpop.xlane.xlu0 %2347
    %v2349 = vsel %vm430, %v2337, 0.0
    %2350 = vadd.xlane.f32.xlu0 %v2349
    %v2351 = vpop.xlane.xlu0 %2350
    %v2352 = vsel %vm430, %v2338, 0.0
    %2353 = vadd.xlane.f32.xlu0 %v2352
    %v2354 = vpop.xlane.xlu0 %2353
    %v2355 = vsel %vm430, %v2339, 0.0
    %2356 = vadd.xlane.f32.xlu0 %v2355
    %v2357 = vpop.xlane.xlu0 %2356
    %v2358 = vsel %vm430, %v2340, 0.0
    %2359 = vadd.xlane.f32.xlu0 %v2358
    %v2360 = vpop.xlane.xlu0 %2359
    %v2361 = vsel %vm430, %v2341, 0.0
    %2362 = vadd.xlane.f32.xlu0 %v2361
    %v2363 = vpop.xlane.xlu0 %2362
    %v2364 = vsel %vm430, %v2342, 0.0
    %2365 = vadd.xlane.f32.xlu0 %v2364
    %v2366 = vpop.xlane.xlu0 %2365
    %v2367 = vmax.f32 %v2345, %v2357
    %v2368 = vmax.f32 %v2348, %v2360
    %v2369 = vmax.f32 %v2351, %v2363
    %v2370 = vmax.f32 %v2354, %v2366
    %v2371 = vmax.f32 %v2367, %v2368
    %v2372 = vmax.f32 %v2369, %v2370
    %v2373 = vmax.f32 %v2371, %v2372
    %v2374 = vsub.f32 %v2345, %v2373
    %v2375 = vsub.f32 %v2348, %v2373
    %v2376 = vsub.f32 %v2351, %v2373
    %v2377 = vsub.f32 %v2354, %v2373
    %v2378 = vsub.f32 %v2357, %v2373
    %v2379 = vsub.f32 %v2360, %v2373
    %v2380 = vsub.f32 %v2363, %v2373
    %v2381 = vsub.f32 %v2366, %v2373
    %v2382 = vmul.f32 %v2374, 1.442695
    %v2383 = vpow.pop %v2382
    %v2384 = vmul.f32 %v2375, 1.442695
    %v2385 = vpow.pop %v2384
    %v2386 = vmul.f32 %v2376, 1.442695
    %v2387 = vpow.pop %v2386
    %v2388 = vmul.f32 %v2377, 1.442695
    %v2389 = vpow.pop %v2388
    %v2390 = vmul.f32 %v2378, 1.442695
    %v2391 = vpow.pop %v2390
    %v2392 = vmul.f32 %v2379, 1.442695
    %v2393 = vpow.pop %v2392
    %v2394 = vmul.f32 %v2380, 1.442695
    %v2395 = vpow.pop %v2394
    %v2396 = vmul.f32 %v2381, 1.442695
    %v2397 = vpow.pop %v2396
    %v2398 = vmul.f32 %v2383, %v78
    %v2399 = vmul.f32 %v2385, %v79
    %v2400 = vmul.f32 %v2387, %v80
    %v2401 = vmul.f32 %v2389, %v81
    %v2402 = vmul.f32 %v2391, %v82
    %v2403 = vmul.f32 %v2393, %v83
    %v2404 = vmul.f32 %v2395, %v84
    %v2405 = vmul.f32 %v2397, %v85
    %v2406 = vsel %vm1482, %v2398, 0.0
    %v2407 = vsel %vm1482, %v2399, 0.0
    %v2408 = vadd.f32 %v2406, %v2407
    %v2409 = vsel %vm1482, %v2400, 0.0
    %v2410 = vadd.f32 %v2408, %v2409
    %v2411 = vsel %vm1482, %v2401, 0.0
    %v2412 = vadd.f32 %v2410, %v2411
    %v2413 = vsel %vm1482, %v2402, 0.0
    %v2414 = vadd.f32 %v2412, %v2413
    %v2415 = vsel %vm1482, %v2403, 0.0
    %v2416 = vadd.f32 %v2414, %v2415
    %v2417 = vsel %vm1482, %v2404, 0.0
    %v2418 = vadd.f32 %v2416, %v2417
    %v2419 = vsel %vm1482, %v2405, 0.0
    %v2420 = vadd.f32 %v2418, %v2419
    %2422 = vset.pattern.permute.xlu0 0
    %2423 = vperm.xlu0 %2422, %v2398
    %v2424 = vpop.permute.xlu0 %2423
    %2427 = vset.pattern.permute.xlu0 0
    %2428 = vperm.xlu0 %2427, %v2399
    %v2429 = vpop.permute.xlu0 %2428
    %2432 = vset.pattern.permute.xlu0 0
    %2433 = vperm.xlu0 %2432, %v2400
    %v2434 = vpop.permute.xlu0 %2433
    %2437 = vset.pattern.permute.xlu0 0
    %2438 = vperm.xlu0 %2437, %v2401
    %v2439 = vpop.permute.xlu0 %2438
    %2442 = vset.pattern.permute.xlu0 0
    %2443 = vperm.xlu0 %2442, %v2402
    %v2444 = vpop.permute.xlu0 %2443
    %2447 = vset.pattern.permute.xlu0 0
    %2448 = vperm.xlu0 %2447, %v2403
    %v2449 = vpop.permute.xlu0 %2448
    %2452 = vset.pattern.permute.xlu0 0
    %2453 = vperm.xlu0 %2452, %v2404
    %v2454 = vpop.permute.xlu0 %2453
    %2457 = vset.pattern.permute.xlu0 0
    %2458 = vperm.xlu0 %2457, %v2405
    %v2459 = vpop.permute.xlu0 %2458
    %v2461 = vmul.f32 %v2424, %v1474
    %v2462 = vmul.f32 %v2429, %v1475
    %v2463 = vmul.f32 %v2434, %v1476
    %v2464 = vmul.f32 %v2439, %v1477
    %v2465 = vmul.f32 %v2444, %v1478
    %v2466 = vmul.f32 %v2449, %v1479
    %v2467 = vmul.f32 %v2454, %v1480
    %v2468 = vmul.f32 %v2459, %v1481
    %v2469 = vsel %vm168, %v2461, 0.0
    %v2470 = vsel %vm168, %v2462, 0.0
    %v2471 = vadd.f32 %v2469, %v2470
    %v2472 = vsel %vm168, %v2463, 0.0
    %v2473 = vadd.f32 %v2471, %v2472
    %v2474 = vsel %vm168, %v2464, 0.0
    %v2475 = vadd.f32 %v2473, %v2474
    %v2476 = vsel %vm168, %v2465, 0.0
    %v2477 = vadd.f32 %v2475, %v2476
    %v2478 = vsel %vm168, %v2466, 0.0
    %v2479 = vadd.f32 %v2477, %v2478
    %v2480 = vsel %vm168, %v2467, 0.0
    %v2481 = vadd.f32 %v2479, %v2480
    %v2482 = vsel %vm168, %v2468, 0.0
    %v2483 = vadd.f32 %v2481, %v2482
    %v2484 = vadd.f32 %v2420, 1e-15
    %v2485 = vrcp.pop %v2484
    %2487 = vset.pattern.permute.xlu0 0
    %2488 = vperm.xlu0 %2487, %v2485
    %v2489 = vpop.permute.xlu0 %2488
    %v2491 = vmul.f32 %v2483, %v2489
    %2492 = vrot.lane.b32.xlu0 %v2293, 96
    %v2493 = vpop.permute.xlu0 %2492
    %v2495 = vsel %vm168, %v2491, %v2493
    %v2497 = vsel %vm1971, %v2495, 0
    %2499 = vmatpush.msra.mxu0 0.0
    %2500 = vmatpush.msra.mxu0 0.0
    %2501 = vmatpush.msra.mxu0 0.0
    %2502 = vmatpush.msra.mxu0 0.0
    %2503 = vmatpush.msra.mxu0 %v1767
    %2504 = vmatpush.msra.mxu0 %v1766
    %2505 = vmatpush.msra.mxu0 %v1765
    %2506 = vmatpush.msra.mxu0 %v1764
    %2507 = vmatpush.msra.mxu0 %v1763
    %2508 = vmatpush.msra.mxu0 %v1762
    %2509 = vmatpush.msra.mxu0 %v1761
    %2510 = vmatpush.msra.mxu0 %v1760
    %2511 = vmatpush.msra.mxu0 %v1759
    %2512 = vmatpush.msra.mxu0 %v1758
    %2513 = vmatpush.msra.mxu0 %v1757
    %2514 = vmatpush.msra.mxu0 %v1756
    %2515 = vmatmul.f32.gmra.mxu0 %v2497
    %v2516 = vpop.f32.mrf.mxu0
    %v2517 = vadd.f32 %v1734, %v2516
    %2518 = vdwg.mxu0
    %v2519 = vxor.u32 %v2517, 2147483648
    %v2520 = vmul.f32 %v2519, 1.442695
    %v2521 = vpow.pop %v2520
    %v2522 = vadd.f32 %v2521, 1.0
    %v2523 = vrcp.pop %v2522
    %v2524 = vmul.f32 %v2522, %v2523
    %v2525 = vsub.f32 1.0, %v2524
    %v2526 = vmul.f32 %v2523, %v2525
    %v2527 = vadd.f32 %v2523, %v2526
    %vm2528 = vweird.f32 %v2522
    %vm2529 = vweird.f32 %v2523
    %vm2530 = vmor %vm2528, %vm2529
    %v2531 = vsel %vm2530, %v2523, %v2527
    %v2532 = vand.u32 2147483647, %v2522
    %vm2533 = vcmp.eq.f32.partialorder %v2532, 8.507059e+37
    %v2534 = vand.u32 %v2522, 2147483648
    %v2535 = vor.u32 1.1754944e-38, %v2534
    %v2536 = vsel %vm2533, %v2535, %v2531
    %v2537 = vmul.f32 1.0, %v2536
    %v2538 = vtanh.pop %v2517
    %v2539 = vmul.f32 %v2537, %v2287
    %2541 = vrot.lane.b32.xlu0 %v2538, 64
    %v2542 = vpop.permute.xlu0 %2541
    %v2544 = vmul.f32 %v2537, %v2542
    %2546 = vrot.lane.b32.xlu0 %v2544, 32
    %v2547 = vpop.permute.xlu0 %2546
    %v2549 = vadd.f32 %v2539, %v2547
    %v2550 = vtanh.pop %v2549
    %2552 = vrot.lane.b32.xlu0 %v2550, 64
    %v2553 = vpop.permute.xlu0 %2552
    %v2555 = vmul.f32 %v2537, %v2553
    %2557 = vrot.lane.b32.xlu0 %v2555, 32
    %v2558 = vpop.permute.xlu0 %2557
    %v2559 = vsel %vm430, %v2558, 0
    %2561 = vmatpush.msra.mxu0 0.0
    %2562 = vmatpush.msra.mxu0 0.0
    %2563 = vmatpush.msra.mxu0 0.0
    %2564 = vmatpush.msra.mxu0 0.0
    %2565 = vmatpush.msra.mxu0 0.0
    %2566 = vmatpush.msra.mxu0 0.0
    %2567 = vmatpush.msra.mxu0 0.0
    %2568 = vmatpush.msra.mxu0 0.0
    %2569 = vmatpush.msra.mxu0 0.0
    %2570 = vmatpush.msra.mxu0 0.0
    %2571 = vmatpush.msra.mxu0 0.0
    %2572 = vmatpush.msra.mxu0 0.0
    %2573 = vmatpush.msra.mxu0 %v1754
    %2574 = vmatpush.msra.mxu0 %v1753
    %2575 = vmatpush.msra.mxu0 %v1752
    %2576 = vmatpush.msra.mxu0 %v1751
    %2577 = vmatmul.f32.gmra.mxu0 %v2559
    %v2578 = vpop.f32.mrf.mxu0
    %v2579 = vadd.f32 %v1688, %v2578
    %2580 = vdwg.mxu0
    %v2581 = vadd.f32 %v1606, %v2579
    %v2582 = vadd.f32 %v1609, %v2579
    %v2583 = vadd.f32 %v1612, %v2579
    %v2584 = vadd.f32 %v1615, %v2579
    %v2585 = vadd.f32 %v1618, %v2579
    %v2586 = vadd.f32 %v1621, %v2579
    %v2587 = vadd.f32 %v1624, %v2579
    %v2588 = vadd.f32 %v1627, %v2579
    %v2589 = vtanh.pop %v2581
    %v2590 = vtanh.pop %v2582
    %v2591 = vtanh.pop %v2583
    %v2592 = vtanh.pop %v2584
    %v2593 = vtanh.pop %v2585
    %v2594 = vtanh.pop %v2586
    %v2595 = vtanh.pop %v2587
    %v2596 = vtanh.pop %v2588
    %v2597 = vmul.f32 %v2589, %v1808
    %v2598 = vmul.f32 %v2590, %v1808
    %v2599 = vmul.f32 %v2591, %v1808
    %v2600 = vmul.f32 %v2592, %v1808
    %v2601 = vmul.f32 %v2593, %v1808
    %v2602 = vmul.f32 %v2594, %v1808
    %v2603 = vmul.f32 %v2595, %v1808
    %v2604 = vmul.f32 %v2596, %v1808
    %v2605 = vsel %vm430, %v2597, 0.0
    %2606 = vadd.xlane.f32.xlu0 %v2605
    %v2607 = vpop.xlane.xlu0 %2606
    %v2608 = vsel %vm430, %v2598, 0.0
    %2609 = vadd.xlane.f32.xlu0 %v2608
    %v2610 = vpop.xlane.xlu0 %2609
    %v2611 = vsel %vm430, %v2599, 0.0
    %2612 = vadd.xlane.f32.xlu0 %v2611
    %v2613 = vpop.xlane.xlu0 %2612
    %v2614 = vsel %vm430, %v2600, 0.0
    %2615 = vadd.xlane.f32.xlu0 %v2614
    %v2616 = vpop.xlane.xlu0 %2615
    %v2617 = vsel %vm430, %v2601, 0.0
    %2618 = vadd.xlane.f32.xlu0 %v2617
    %v2619 = vpop.xlane.xlu0 %2618
    %v2620 = vsel %vm430, %v2602, 0.0
    %2621 = vadd.xlane.f32.xlu0 %v2620
    %v2622 = vpop.xlane.xlu0 %2621
    %v2623 = vsel %vm430, %v2603, 0.0
    %2624 = vadd.xlane.f32.xlu0 %v2623
    %v2625 = vpop.xlane.xlu0 %2624
    %v2626 = vsel %vm430, %v2604, 0.0
    %2627 = vadd.xlane.f32.xlu0 %v2626
    %v2628 = vpop.xlane.xlu0 %2627
    %v2629 = vmax.f32 %v2607, %v2619
    %v2630 = vmax.f32 %v2610, %v2622
    %v2631 = vmax.f32 %v2613, %v2625
    %v2632 = vmax.f32 %v2616, %v2628
    %v2633 = vmax.f32 %v2629, %v2630
    %v2634 = vmax.f32 %v2631, %v2632
    %v2635 = vmax.f32 %v2633, %v2634
    %v2636 = vsub.f32 %v2607, %v2635
    %v2637 = vsub.f32 %v2610, %v2635
    %v2638 = vsub.f32 %v2613, %v2635
    %v2639 = vsub.f32 %v2616, %v2635
    %v2640 = vsub.f32 %v2619, %v2635
    %v2641 = vsub.f32 %v2622, %v2635
    %v2642 = vsub.f32 %v2625, %v2635
    %v2643 = vsub.f32 %v2628, %v2635
    %v2644 = vmul.f32 %v2636, 1.442695
    %v2645 = vpow.pop %v2644
    %v2646 = vmul.f32 %v2637, 1.442695
    %v2647 = vpow.pop %v2646
    %v2648 = vmul.f32 %v2638, 1.442695
    %v2649 = vpow.pop %v2648
    %v2650 = vmul.f32 %v2639, 1.442695
    %v2651 = vpow.pop %v2650
    %v2652 = vmul.f32 %v2640, 1.442695
    %v2653 = vpow.pop %v2652
    %v2654 = vmul.f32 %v2641, 1.442695
    %v2655 = vpow.pop %v2654
    %v2656 = vmul.f32 %v2642, 1.442695
    %v2657 = vpow.pop %v2656
    %v2658 = vmul.f32 %v2643, 1.442695
    %v2659 = vpow.pop %v2658
    %v2660 = vmul.f32 %v2645, %v78
    %v2661 = vmul.f32 %v2647, %v79
    %v2662 = vmul.f32 %v2649, %v80
    %v2663 = vmul.f32 %v2651, %v81
    %v2664 = vmul.f32 %v2653, %v82
    %v2665 = vmul.f32 %v2655, %v83
    %v2666 = vmul.f32 %v2657, %v84
    %v2667 = vmul.f32 %v2659, %v85
    %v2668 = vsel %vm1482, %v2660, 0.0
    %v2669 = vsel %vm1482, %v2661, 0.0
    %v2670 = vadd.f32 %v2668, %v2669
    %v2671 = vsel %vm1482, %v2662, 0.0
    %v2672 = vadd.f32 %v2670, %v2671
    %v2673 = vsel %vm1482, %v2663, 0.0
    %v2674 = vadd.f32 %v2672, %v2673
    %v2675 = vsel %vm1482, %v2664, 0.0
    %v2676 = vadd.f32 %v2674, %v2675
    %v2677 = vsel %vm1482, %v2665, 0.0
    %v2678 = vadd.f32 %v2676, %v2677
    %v2679 = vsel %vm1482, %v2666, 0.0
    %v2680 = vadd.f32 %v2678, %v2679
    %v2681 = vsel %vm1482, %v2667, 0.0
    %v2682 = vadd.f32 %v2680, %v2681
    %2684 = vset.pattern.permute.xlu0 0
    %2685 = vperm.xlu0 %2684, %v2660
    %v2686 = vpop.permute.xlu0 %2685
    %2689 = vset.pattern.permute.xlu0 0
    %2690 = vperm.xlu0 %2689, %v2661
    %v2691 = vpop.permute.xlu0 %2690
    %2694 = vset.pattern.permute.xlu0 0
    %2695 = vperm.xlu0 %2694, %v2662
    %v2696 = vpop.permute.xlu0 %2695
    %2699 = vset.pattern.permute.xlu0 0
    %2700 = vperm.xlu0 %2699, %v2663
    %v2701 = vpop.permute.xlu0 %2700
    %2704 = vset.pattern.permute.xlu0 0
    %2705 = vperm.xlu0 %2704, %v2664
    %v2706 = vpop.permute.xlu0 %2705
    %2709 = vset.pattern.permute.xlu0 0
    %2710 = vperm.xlu0 %2709, %v2665
    %v2711 = vpop.permute.xlu0 %2710
    %2714 = vset.pattern.permute.xlu0 0
    %2715 = vperm.xlu0 %2714, %v2666
    %v2716 = vpop.permute.xlu0 %2715
    %2719 = vset.pattern.permute.xlu0 0
    %2720 = vperm.xlu0 %2719, %v2667
    %v2721 = vpop.permute.xlu0 %2720
    %v2723 = vmul.f32 %v2686, %v1474
    %v2724 = vmul.f32 %v2691, %v1475
    %v2725 = vmul.f32 %v2696, %v1476
    %v2726 = vmul.f32 %v2701, %v1477
    %v2727 = vmul.f32 %v2706, %v1478
    %v2728 = vmul.f32 %v2711, %v1479
    %v2729 = vmul.f32 %v2716, %v1480
    %v2730 = vmul.f32 %v2721, %v1481
    %v2731 = vsel %vm168, %v2723, 0.0
    %v2732 = vsel %vm168, %v2724, 0.0
    %v2733 = vadd.f32 %v2731, %v2732
    %v2734 = vsel %vm168, %v2725, 0.0
    %v2735 = vadd.f32 %v2733, %v2734
    %v2736 = vsel %vm168, %v2726, 0.0
    %v2737 = vadd.f32 %v2735, %v2736
    %v2738 = vsel %vm168, %v2727, 0.0
    %v2739 = vadd.f32 %v2737, %v2738
    %v2740 = vsel %vm168, %v2728, 0.0
    %v2741 = vadd.f32 %v2739, %v2740
    %v2742 = vsel %vm168, %v2729, 0.0
    %v2743 = vadd.f32 %v2741, %v2742
    %v2744 = vsel %vm168, %v2730, 0.0
    %v2745 = vadd.f32 %v2743, %v2744
    %v2746 = vadd.f32 %v2682, 1e-15
    %v2747 = vrcp.pop %v2746
    %2749 = vset.pattern.permute.xlu0 0
    %2750 = vperm.xlu0 %2749, %v2747
    %v2751 = vpop.permute.xlu0 %2750
    %v2753 = vmul.f32 %v2745, %v2751
    %2754 = vrot.lane.b32.xlu0 %v2555, 96
    %v2755 = vpop.permute.xlu0 %2754
    %v2757 = vsel %vm168, %v2753, %v2755
    %v2759 = vsel %vm1971, %v2757, 0
    %2761 = vmatpush.msra.mxu0 0.0
    %2762 = vmatpush.msra.mxu0 0.0
    %2763 = vmatpush.msra.mxu0 0.0
    %2764 = vmatpush.msra.mxu0 0.0
    %2765 = vmatpush.msra.mxu0 %v1767
    %2766 = vmatpush.msra.mxu0 %v1766
    %2767 = vmatpush.msra.mxu0 %v1765
    %2768 = vmatpush.msra.mxu0 %v1764
    %2769 = vmatpush.msra.mxu0 %v1763
    %2770 = vmatpush.msra.mxu0 %v1762
    %2771 = vmatpush.msra.mxu0 %v1761
    %2772 = vmatpush.msra.mxu0 %v1760
    %2773 = vmatpush.msra.mxu0 %v1759
    %2774 = vmatpush.msra.mxu0 %v1758
    %2775 = vmatpush.msra.mxu0 %v1757
    %2776 = vmatpush.msra.mxu0 %v1756
    %2777 = vmatmul.f32.gmra.mxu0 %v2759
    %v2778 = vpop.f32.mrf.mxu0
    %v2779 = vadd.f32 %v1737, %v2778
    %2780 = vdwg.mxu0
    %v2781 = vxor.u32 %v2779, 2147483648
    %v2782 = vmul.f32 %v2781, 1.442695
    %v2783 = vpow.pop %v2782
    %v2784 = vadd.f32 %v2783, 1.0
    %v2785 = vrcp.pop %v2784
    %v2786 = vmul.f32 %v2784, %v2785
    %v2787 = vsub.f32 1.0, %v2786
    %v2788 = vmul.f32 %v2785, %v2787
    %v2789 = vadd.f32 %v2785, %v2788
    %vm2790 = vweird.f32 %v2784
    %vm2791 = vweird.f32 %v2785
    %vm2792 = vmor %vm2790, %vm2791
    %v2793 = vsel %vm2792, %v2785, %v2789
    %v2794 = vand.u32 2147483647, %v2784
    %vm2795 = vcmp.eq.f32.partialorder %v2794, 8.507059e+37
    %v2796 = vand.u32 %v2784, 2147483648
    %v2797 = vor.u32 1.1754944e-38, %v2796
    %v2798 = vsel %vm2795, %v2797, %v2793
    %v2799 = vmul.f32 1.0, %v2798
    %v2800 = vtanh.pop %v2779
    %v2801 = vmul.f32 %v2799, %v2549
    %2803 = vrot.lane.b32.xlu0 %v2800, 64
    %v2804 = vpop.permute.xlu0 %2803
    %v2806 = vmul.f32 %v2799, %v2804
    %2808 = vrot.lane.b32.xlu0 %v2806, 32
    %v2809 = vpop.permute.xlu0 %2808
    %v2811 = vadd.f32 %v2801, %v2809
    %v2812 = vtanh.pop %v2811
    %2814 = vrot.lane.b32.xlu0 %v2812, 64
    %v2815 = vpop.permute.xlu0 %2814
    %v2817 = vmul.f32 %v2799, %v2815
    %2819 = vrot.lane.b32.xlu0 %v2817, 32
    %v2820 = vpop.permute.xlu0 %2819
    %v2821 = vsel %vm430, %v2820, 0
    %2823 = vmatpush.msra.mxu0 0.0
    %2824 = vmatpush.msra.mxu0 0.0
    %2825 = vmatpush.msra.mxu0 0.0
    %2826 = vmatpush.msra.mxu0 0.0
    %2827 = vmatpush.msra.mxu0 0.0
    %2828 = vmatpush.msra.mxu0 0.0
    %2829 = vmatpush.msra.mxu0 0.0
    %2830 = vmatpush.msra.mxu0 0.0
    %2831 = vmatpush.msra.mxu0 0.0
    %2832 = vmatpush.msra.mxu0 0.0
    %2833 = vmatpush.msra.mxu0 0.0
    %2834 = vmatpush.msra.mxu0 0.0
    %2835 = vmatpush.msra.mxu0 %v1754
    %2836 = vmatpush.msra.mxu0 %v1753
    %2837 = vmatpush.msra.mxu0 %v1752
    %2838 = vmatpush.msra.mxu0 %v1751
    %2839 = vmatmul.f32.gmra.mxu0 %v2821
    %v2840 = vpop.f32.mrf.mxu0
    %v2841 = vadd.f32 %v1691, %v2840
    %2842 = vdwg.mxu0
    %v2843 = vadd.f32 %v1606, %v2841
    %v2844 = vadd.f32 %v1609, %v2841
    %v2845 = vadd.f32 %v1612, %v2841
    %v2846 = vadd.f32 %v1615, %v2841
    %v2847 = vadd.f32 %v1618, %v2841
    %v2848 = vadd.f32 %v1621, %v2841
    %v2849 = vadd.f32 %v1624, %v2841
    %v2850 = vadd.f32 %v1627, %v2841
    %v2851 = vtanh.pop %v2843
    %v2852 = vtanh.pop %v2844
    %v2853 = vtanh.pop %v2845
    %v2854 = vtanh.pop %v2846
    %v2855 = vtanh.pop %v2847
    %v2856 = vtanh.pop %v2848
    %v2857 = vtanh.pop %v2849
    %v2858 = vtanh.pop %v2850
    %v2859 = vmul.f32 %v2851, %v1808
    %v2860 = vmul.f32 %v2852, %v1808
    %v2861 = vmul.f32 %v2853, %v1808
    %v2862 = vmul.f32 %v2854, %v1808
    %v2863 = vmul.f32 %v2855, %v1808
    %v2864 = vmul.f32 %v2856, %v1808
    %v2865 = vmul.f32 %v2857, %v1808
    %v2866 = vmul.f32 %v2858, %v1808
    %v2867 = vsel %vm430, %v2859, 0.0
    %2868 = vadd.xlane.f32.xlu0 %v2867
    %v2869 = vpop.xlane.xlu0 %2868
    %v2870 = vsel %vm430, %v2860, 0.0
    %2871 = vadd.xlane.f32.xlu0 %v2870
    %v2872 = vpop.xlane.xlu0 %2871
    %v2873 = vsel %vm430, %v2861, 0.0
    %2874 = vadd.xlane.f32.xlu0 %v2873
    %v2875 = vpop.xlane.xlu0 %2874
    %v2876 = vsel %vm430, %v2862, 0.0
    %2877 = vadd.xlane.f32.xlu0 %v2876
    %v2878 = vpop.xlane.xlu0 %2877
    %v2879 = vsel %vm430, %v2863, 0.0
    %2880 = vadd.xlane.f32.xlu0 %v2879
    %v2881 = vpop.xlane.xlu0 %2880
    %v2882 = vsel %vm430, %v2864, 0.0
    %2883 = vadd.xlane.f32.xlu0 %v2882
    %v2884 = vpop.xlane.xlu0 %2883
    %v2885 = vsel %vm430, %v2865, 0.0
    %2886 = vadd.xlane.f32.xlu0 %v2885
    %v2887 = vpop.xlane.xlu0 %2886
    %v2888 = vsel %vm430, %v2866, 0.0
    %2889 = vadd.xlane.f32.xlu0 %v2888
    %v2890 = vpop.xlane.xlu0 %2889
    %v2891 = vmax.f32 %v2869, %v2881
    %v2892 = vmax.f32 %v2872, %v2884
    %v2893 = vmax.f32 %v2875, %v2887
    %v2894 = vmax.f32 %v2878, %v2890
    %v2895 = vmax.f32 %v2891, %v2892
    %v2896 = vmax.f32 %v2893, %v2894
    %v2897 = vmax.f32 %v2895, %v2896
    %v2898 = vsub.f32 %v2869, %v2897
    %v2899 = vsub.f32 %v2872, %v2897
    %v2900 = vsub.f32 %v2875, %v2897
    %v2901 = vsub.f32 %v2878, %v2897
    %v2902 = vsub.f32 %v2881, %v2897
    %v2903 = vsub.f32 %v2884, %v2897
    %v2904 = vsub.f32 %v2887, %v2897
    %v2905 = vsub.f32 %v2890, %v2897
    %v2906 = vmul.f32 %v2898, 1.442695
    %v2907 = vpow.pop %v2906
    %v2908 = vmul.f32 %v2899, 1.442695
    %v2909 = vpow.pop %v2908
    %v2910 = vmul.f32 %v2900, 1.442695
    %v2911 = vpow.pop %v2910
    %v2912 = vmul.f32 %v2901, 1.442695
    %v2913 = vpow.pop %v2912
    %v2914 = vmul.f32 %v2902, 1.442695
    %v2915 = vpow.pop %v2914
    %v2916 = vmul.f32 %v2903, 1.442695
    %v2917 = vpow.pop %v2916
    %v2918 = vmul.f32 %v2904, 1.442695
    %v2919 = vpow.pop %v2918
    %v2920 = vmul.f32 %v2905, 1.442695
    %v2921 = vpow.pop %v2920
    %v2922 = vmul.f32 %v2907, %v78
    %v2923 = vmul.f32 %v2909, %v79
    %v2924 = vmul.f32 %v2911, %v80
    %v2925 = vmul.f32 %v2913, %v81
    %v2926 = vmul.f32 %v2915, %v82
    %v2927 = vmul.f32 %v2917, %v83
    %v2928 = vmul.f32 %v2919, %v84
    %v2929 = vmul.f32 %v2921, %v85
    %v2930 = vsel %vm1482, %v2922, 0.0
    %v2931 = vsel %vm1482, %v2923, 0.0
    %v2932 = vadd.f32 %v2930, %v2931
    %v2933 = vsel %vm1482, %v2924, 0.0
    %v2934 = vadd.f32 %v2932, %v2933
    %v2935 = vsel %vm1482, %v2925, 0.0
    %v2936 = vadd.f32 %v2934, %v2935
    %v2937 = vsel %vm1482, %v2926, 0.0
    %v2938 = vadd.f32 %v2936, %v2937
    %v2939 = vsel %vm1482, %v2927, 0.0
    %v2940 = vadd.f32 %v2938, %v2939
    %v2941 = vsel %vm1482, %v2928, 0.0
    %v2942 = vadd.f32 %v2940, %v2941
    %v2943 = vsel %vm1482, %v2929, 0.0
    %v2944 = vadd.f32 %v2942, %v2943
    %2946 = vset.pattern.permute.xlu0 0
    %2947 = vperm.xlu0 %2946, %v2922
    %v2948 = vpop.permute.xlu0 %2947
    %2951 = vset.pattern.permute.xlu0 0
    %2952 = vperm.xlu0 %2951, %v2923
    %v2953 = vpop.permute.xlu0 %2952
    %2956 = vset.pattern.permute.xlu0 0
    %2957 = vperm.xlu0 %2956, %v2924
    %v2958 = vpop.permute.xlu0 %2957
    %2961 = vset.pattern.permute.xlu0 0
    %2962 = vperm.xlu0 %2961, %v2925
    %v2963 = vpop.permute.xlu0 %2962
    %2966 = vset.pattern.permute.xlu0 0
    %2967 = vperm.xlu0 %2966, %v2926
    %v2968 = vpop.permute.xlu0 %2967
    %2971 = vset.pattern.permute.xlu0 0
    %2972 = vperm.xlu0 %2971, %v2927
    %v2973 = vpop.permute.xlu0 %2972
    %2976 = vset.pattern.permute.xlu0 0
    %2977 = vperm.xlu0 %2976, %v2928
    %v2978 = vpop.permute.xlu0 %2977
    %2981 = vset.pattern.permute.xlu0 0
    %2982 = vperm.xlu0 %2981, %v2929
    %v2983 = vpop.permute.xlu0 %2982
    %v2985 = vmul.f32 %v2948, %v1474
    %v2986 = vmul.f32 %v2953, %v1475
    %v2987 = vmul.f32 %v2958, %v1476
    %v2988 = vmul.f32 %v2963, %v1477
    %v2989 = vmul.f32 %v2968, %v1478
    %v2990 = vmul.f32 %v2973, %v1479
    %v2991 = vmul.f32 %v2978, %v1480
    %v2992 = vmul.f32 %v2983, %v1481
    %v2993 = vsel %vm168, %v2985, 0.0
    %v2994 = vsel %vm168, %v2986, 0.0
    %v2995 = vadd.f32 %v2993, %v2994
    %v2996 = vsel %vm168, %v2987, 0.0
    %v2997 = vadd.f32 %v2995, %v2996
    %v2998 = vsel %vm168, %v2988, 0.0
    %v2999 = vadd.f32 %v2997, %v2998
    %v3000 = vsel %vm168, %v2989, 0.0
    %v3001 = vadd.f32 %v2999, %v3000
    %v3002 = vsel %vm168, %v2990, 0.0
    %v3003 = vadd.f32 %v3001, %v3002
    %v3004 = vsel %vm168, %v2991, 0.0
    %v3005 = vadd.f32 %v3003, %v3004
    %v3006 = vsel %vm168, %v2992, 0.0
    %v3007 = vadd.f32 %v3005, %v3006
    %v3008 = vadd.f32 %v2944, 1e-15
    %v3009 = vrcp.pop %v3008
    %3011 = vset.pattern.permute.xlu0 0
    %3012 = vperm.xlu0 %3011, %v3009
    %v3013 = vpop.permute.xlu0 %3012
    %v3015 = vmul.f32 %v3007, %v3013
    %3016 = vrot.lane.b32.xlu0 %v2817, 96
    %v3017 = vpop.permute.xlu0 %3016
    %v3019 = vsel %vm168, %v3015, %v3017
    %v3021 = vsel %vm1971, %v3019, 0
    %3023 = vmatpush.msra.mxu0 0.0
    %3024 = vmatpush.msra.mxu0 0.0
    %3025 = vmatpush.msra.mxu0 0.0
    %3026 = vmatpush.msra.mxu0 0.0
    %3027 = vmatpush.msra.mxu0 %v1767
    %3028 = vmatpush.msra.mxu0 %v1766
    %3029 = vmatpush.msra.mxu0 %v1765
    %3030 = vmatpush.msra.mxu0 %v1764
    %3031 = vmatpush.msra.mxu0 %v1763
    %3032 = vmatpush.msra.mxu0 %v1762
    %3033 = vmatpush.msra.mxu0 %v1761
    %3034 = vmatpush.msra.mxu0 %v1760
    %3035 = vmatpush.msra.mxu0 %v1759
    %3036 = vmatpush.msra.mxu0 %v1758
    %3037 = vmatpush.msra.mxu0 %v1757
    %3038 = vmatpush.msra.mxu0 %v1756
    %3039 = vmatmul.f32.gmra.mxu0 %v3021
    %v3040 = vpop.f32.mrf.mxu0
    %v3041 = vadd.f32 %v1740, %v3040
    %3042 = vdwg.mxu0
    %v3043 = vxor.u32 %v3041, 2147483648
    %v3044 = vmul.f32 %v3043, 1.442695
    %v3045 = vpow.pop %v3044
    %v3046 = vadd.f32 %v3045, 1.0
    %v3047 = vrcp.pop %v3046
    %v3048 = vmul.f32 %v3046, %v3047
    %v3049 = vsub.f32 1.0, %v3048
    %v3050 = vmul.f32 %v3047, %v3049
    %v3051 = vadd.f32 %v3047, %v3050
    %vm3052 = vweird.f32 %v3046
    %vm3053 = vweird.f32 %v3047
    %vm3054 = vmor %vm3052, %vm3053
    %v3055 = vsel %vm3054, %v3047, %v3051
    %v3056 = vand.u32 2147483647, %v3046
    %vm3057 = vcmp.eq.f32.partialorder %v3056, 8.507059e+37
    %v3058 = vand.u32 %v3046, 2147483648
    %v3059 = vor.u32 1.1754944e-38, %v3058
    %v3060 = vsel %vm3057, %v3059, %v3055
    %v3061 = vmul.f32 1.0, %v3060
    %v3062 = vtanh.pop %v3041
    %v3063 = vmul.f32 %v3061, %v2811
    %3065 = vrot.lane.b32.xlu0 %v3062, 64
    %v3066 = vpop.permute.xlu0 %3065
    %v3068 = vmul.f32 %v3061, %v3066
    %3070 = vrot.lane.b32.xlu0 %v3068, 32
    %v3071 = vpop.permute.xlu0 %3070
    %v3073 = vadd.f32 %v3063, %v3071
    %v3074 = vtanh.pop %v3073
    %3076 = vrot.lane.b32.xlu0 %v3074, 64
    %v3077 = vpop.permute.xlu0 %3076
    %v3079 = vmul.f32 %v3061, %v3077
    %3081 = vrot.lane.b32.xlu0 %v3079, 32
    %v3082 = vpop.permute.xlu0 %3081
    %v3083 = vsel %vm430, %v3082, 0
    %3085 = vmatpush.msra.mxu0 0.0
    %3086 = vmatpush.msra.mxu0 0.0
    %3087 = vmatpush.msra.mxu0 0.0
    %3088 = vmatpush.msra.mxu0 0.0
    %3089 = vmatpush.msra.mxu0 0.0
    %3090 = vmatpush.msra.mxu0 0.0
    %3091 = vmatpush.msra.mxu0 0.0
    %3092 = vmatpush.msra.mxu0 0.0
    %3093 = vmatpush.msra.mxu0 0.0
    %3094 = vmatpush.msra.mxu0 0.0
    %3095 = vmatpush.msra.mxu0 0.0
    %3096 = vmatpush.msra.mxu0 0.0
    %3097 = vmatpush.msra.mxu0 %v1754
    %3098 = vmatpush.msra.mxu0 %v1753
    %3099 = vmatpush.msra.mxu0 %v1752
    %3100 = vmatpush.msra.mxu0 %v1751
    %3101 = vmatmul.f32.gmra.mxu0 %v3083
    %v3102 = vpop.f32.mrf.mxu0
    %v3103 = vadd.f32 %v1694, %v3102
    %3104 = vdwg.mxu0
    %v3105 = vadd.f32 %v1606, %v3103
    %v3106 = vadd.f32 %v1609, %v3103
    %v3107 = vadd.f32 %v1612, %v3103
    %v3108 = vadd.f32 %v1615, %v3103
    %v3109 = vadd.f32 %v1618, %v3103
    %v3110 = vadd.f32 %v1621, %v3103
    %v3111 = vadd.f32 %v1624, %v3103
    %v3112 = vadd.f32 %v1627, %v3103
    %v3113 = vtanh.pop %v3105
    %v3114 = vtanh.pop %v3106
    %v3115 = vtanh.pop %v3107
    %v3116 = vtanh.pop %v3108
    %v3117 = vtanh.pop %v3109
    %v3118 = vtanh.pop %v3110
    %v3119 = vtanh.pop %v3111
    %v3120 = vtanh.pop %v3112
    %v3121 = vmul.f32 %v3113, %v1808
    %v3122 = vmul.f32 %v3114, %v1808
    %v3123 = vmul.f32 %v3115, %v1808
    %v3124 = vmul.f32 %v3116, %v1808
    %v3125 = vmul.f32 %v3117, %v1808
    %v3126 = vmul.f32 %v3118, %v1808
    %v3127 = vmul.f32 %v3119, %v1808
    %v3128 = vmul.f32 %v3120, %v1808
    %v3129 = vsel %vm430, %v3121, 0.0
    %3130 = vadd.xlane.f32.xlu0 %v3129
    %v3131 = vpop.xlane.xlu0 %3130
    %v3132 = vsel %vm430, %v3122, 0.0
    %3133 = vadd.xlane.f32.xlu0 %v3132
    %v3134 = vpop.xlane.xlu0 %3133
    %v3135 = vsel %vm430, %v3123, 0.0
    %3136 = vadd.xlane.f32.xlu0 %v3135
    %v3137 = vpop.xlane.xlu0 %3136
    %v3138 = vsel %vm430, %v3124, 0.0
    %3139 = vadd.xlane.f32.xlu0 %v3138
    %v3140 = vpop.xlane.xlu0 %3139
    %v3141 = vsel %vm430, %v3125, 0.0
    %3142 = vadd.xlane.f32.xlu0 %v3141
    %v3143 = vpop.xlane.xlu0 %3142
    %v3144 = vsel %vm430, %v3126, 0.0
    %3145 = vadd.xlane.f32.xlu0 %v3144
    %v3146 = vpop.xlane.xlu0 %3145
    %v3147 = vsel %vm430, %v3127, 0.0
    %3148 = vadd.xlane.f32.xlu0 %v3147
    %v3149 = vpop.xlane.xlu0 %3148
    %v3150 = vsel %vm430, %v3128, 0.0
    %3151 = vadd.xlane.f32.xlu0 %v3150
    %v3152 = vpop.xlane.xlu0 %3151
    %v3153 = vmax.f32 %v3131, %v3143
    %v3154 = vmax.f32 %v3134, %v3146
    %v3155 = vmax.f32 %v3137, %v3149
    %v3156 = vmax.f32 %v3140, %v3152
    %v3157 = vmax.f32 %v3153, %v3154
    %v3158 = vmax.f32 %v3155, %v3156
    %v3159 = vmax.f32 %v3157, %v3158
    %v3160 = vsub.f32 %v3131, %v3159
    %v3161 = vsub.f32 %v3134, %v3159
    %v3162 = vsub.f32 %v3137, %v3159
    %v3163 = vsub.f32 %v3140, %v3159
    %v3164 = vsub.f32 %v3143, %v3159
    %v3165 = vsub.f32 %v3146, %v3159
    %v3166 = vsub.f32 %v3149, %v3159
    %v3167 = vsub.f32 %v3152, %v3159
    %v3168 = vmul.f32 %v3160, 1.442695
    %v3169 = vpow.pop %v3168
    %v3170 = vmul.f32 %v3161, 1.442695
    %v3171 = vpow.pop %v3170
    %v3172 = vmul.f32 %v3162, 1.442695
    %v3173 = vpow.pop %v3172
    %v3174 = vmul.f32 %v3163, 1.442695
    %v3175 = vpow.pop %v3174
    %v3176 = vmul.f32 %v3164, 1.442695
    %v3177 = vpow.pop %v3176
    %v3178 = vmul.f32 %v3165, 1.442695
    %v3179 = vpow.pop %v3178
    %v3180 = vmul.f32 %v3166, 1.442695
    %v3181 = vpow.pop %v3180
    %v3182 = vmul.f32 %v3167, 1.442695
    %v3183 = vpow.pop %v3182
    %v3184 = vmul.f32 %v3169, %v78
    %v3185 = vmul.f32 %v3171, %v79
    %v3186 = vmul.f32 %v3173, %v80
    %v3187 = vmul.f32 %v3175, %v81
    %v3188 = vmul.f32 %v3177, %v82
    %v3189 = vmul.f32 %v3179, %v83
    %v3190 = vmul.f32 %v3181, %v84
    %v3191 = vmul.f32 %v3183, %v85
    %v3192 = vsel %vm1482, %v3184, 0.0
    %v3193 = vsel %vm1482, %v3185, 0.0
    %v3194 = vadd.f32 %v3192, %v3193
    %v3195 = vsel %vm1482, %v3186, 0.0
    %v3196 = vadd.f32 %v3194, %v3195
    %v3197 = vsel %vm1482, %v3187, 0.0
    %v3198 = vadd.f32 %v3196, %v3197
    %v3199 = vsel %vm1482, %v3188, 0.0
    %v3200 = vadd.f32 %v3198, %v3199
    %v3201 = vsel %vm1482, %v3189, 0.0
    %v3202 = vadd.f32 %v3200, %v3201
    %v3203 = vsel %vm1482, %v3190, 0.0
    %v3204 = vadd.f32 %v3202, %v3203
    %v3205 = vsel %vm1482, %v3191, 0.0
    %v3206 = vadd.f32 %v3204, %v3205
    %3208 = vset.pattern.permute.xlu0 0
    %3209 = vperm.xlu0 %3208, %v3184
    %v3210 = vpop.permute.xlu0 %3209
    %3213 = vset.pattern.permute.xlu0 0
    %3214 = vperm.xlu0 %3213, %v3185
    %v3215 = vpop.permute.xlu0 %3214
    %3218 = vset.pattern.permute.xlu0 0
    %3219 = vperm.xlu0 %3218, %v3186
    %v3220 = vpop.permute.xlu0 %3219
    %3223 = vset.pattern.permute.xlu0 0
    %3224 = vperm.xlu0 %3223, %v3187
    %v3225 = vpop.permute.xlu0 %3224
    %3228 = vset.pattern.permute.xlu0 0
    %3229 = vperm.xlu0 %3228, %v3188
    %v3230 = vpop.permute.xlu0 %3229
    %3233 = vset.pattern.permute.xlu0 0
    %3234 = vperm.xlu0 %3233, %v3189
    %v3235 = vpop.permute.xlu0 %3234
    %3238 = vset.pattern.permute.xlu0 0
    %3239 = vperm.xlu0 %3238, %v3190
    %v3240 = vpop.permute.xlu0 %3239
    %3243 = vset.pattern.permute.xlu0 0
    %3244 = vperm.xlu0 %3243, %v3191
    %v3245 = vpop.permute.xlu0 %3244
    %v3247 = vmul.f32 %v3210, %v1474
    %v3248 = vmul.f32 %v3215, %v1475
    %v3249 = vmul.f32 %v3220, %v1476
    %v3250 = vmul.f32 %v3225, %v1477
    %v3251 = vmul.f32 %v3230, %v1478
    %v3252 = vmul.f32 %v3235, %v1479
    %v3253 = vmul.f32 %v3240, %v1480
    %v3254 = vmul.f32 %v3245, %v1481
    %v3255 = vsel %vm168, %v3247, 0.0
    %v3256 = vsel %vm168, %v3248, 0.0
    %v3257 = vadd.f32 %v3255, %v3256
    %v3258 = vsel %vm168, %v3249, 0.0
    %v3259 = vadd.f32 %v3257, %v3258
    %v3260 = vsel %vm168, %v3250, 0.0
    %v3261 = vadd.f32 %v3259, %v3260
    %v3262 = vsel %vm168, %v3251, 0.0
    %v3263 = vadd.f32 %v3261, %v3262
    %v3264 = vsel %vm168, %v3252, 0.0
    %v3265 = vadd.f32 %v3263, %v3264
    %v3266 = vsel %vm168, %v3253, 0.0
    %v3267 = vadd.f32 %v3265, %v3266
    %v3268 = vsel %vm168, %v3254, 0.0
    %v3269 = vadd.f32 %v3267, %v3268
    %v3270 = vadd.f32 %v3206, 1e-15
    %v3271 = vrcp.pop %v3270
    %3273 = vset.pattern.permute.xlu0 0
    %3274 = vperm.xlu0 %3273, %v3271
    %v3275 = vpop.permute.xlu0 %3274
    %v3277 = vmul.f32 %v3269, %v3275
    %3278 = vrot.lane.b32.xlu0 %v3079, 96
    %v3279 = vpop.permute.xlu0 %3278
    %v3281 = vsel %vm168, %v3277, %v3279
    %v3283 = vsel %vm1971, %v3281, 0
    %3285 = vmatpush.msra.mxu0 0.0
    %3286 = vmatpush.msra.mxu0 0.0
    %3287 = vmatpush.msra.mxu0 0.0
    %3288 = vmatpush.msra.mxu0 0.0
    %3289 = vmatpush.msra.mxu0 %v1767
    %3290 = vmatpush.msra.mxu0 %v1766
    %3291 = vmatpush.msra.mxu0 %v1765
    %3292 = vmatpush.msra.mxu0 %v1764
    %3293 = vmatpush.msra.mxu0 %v1763
    %3294 = vmatpush.msra.mxu0 %v1762
    %3295 = vmatpush.msra.mxu0 %v1761
    %3296 = vmatpush.msra.mxu0 %v1760
    %3297 = vmatpush.msra.mxu0 %v1759
    %3298 = vmatpush.msra.mxu0 %v1758
    %3299 = vmatpush.msra.mxu0 %v1757
    %3300 = vmatpush.msra.mxu0 %v1756
    %3301 = vmatmul.f32.gmra.mxu0 %v3283
    %v3302 = vpop.f32.mrf.mxu0
    %v3303 = vadd.f32 %v1743, %v3302
    %3304 = vdwg.mxu0
    %v3305 = vxor.u32 %v3303, 2147483648
    %v3306 = vmul.f32 %v3305, 1.442695
    %v3307 = vpow.pop %v3306
    %v3308 = vadd.f32 %v3307, 1.0
    %v3309 = vrcp.pop %v3308
    %v3310 = vmul.f32 %v3308, %v3309
    %v3311 = vsub.f32 1.0, %v3310
    %v3312 = vmul.f32 %v3309, %v3311
    %v3313 = vadd.f32 %v3309, %v3312
    %vm3314 = vweird.f32 %v3308
    %vm3315 = vweird.f32 %v3309
    %vm3316 = vmor %vm3314, %vm3315
    %v3317 = vsel %vm3316, %v3309, %v3313
    %v3318 = vand.u32 2147483647, %v3308
    %vm3319 = vcmp.eq.f32.partialorder %v3318, 8.507059e+37
    %v3320 = vand.u32 %v3308, 2147483648
    %v3321 = vor.u32 1.1754944e-38, %v3320
    %v3322 = vsel %vm3319, %v3321, %v3317
    %v3323 = vmul.f32 1.0, %v3322
    %v3324 = vtanh.pop %v3303
    %v3325 = vmul.f32 %v3323, %v3073
    %3327 = vrot.lane.b32.xlu0 %v3324, 64
    %v3328 = vpop.permute.xlu0 %3327
    %v3330 = vmul.f32 %v3323, %v3328
    %3332 = vrot.lane.b32.xlu0 %v3330, 32
    %v3333 = vpop.permute.xlu0 %3332
    %v3335 = vadd.f32 %v3325, %v3333
    %v3336 = vtanh.pop %v3335
    %3338 = vrot.lane.b32.xlu0 %v3336, 64
    %v3339 = vpop.permute.xlu0 %3338
    %v3341 = vmul.f32 %v3323, %v3339
    %3343 = vrot.lane.b32.xlu0 %v3341, 32
    %v3344 = vpop.permute.xlu0 %3343
    %v3345 = vsel %vm430, %v3344, 0
    %3347 = vmatpush.msra.mxu0 0.0
    %3348 = vmatpush.msra.mxu0 0.0
    %3349 = vmatpush.msra.mxu0 0.0
    %3350 = vmatpush.msra.mxu0 0.0
    %3351 = vmatpush.msra.mxu0 0.0
    %3352 = vmatpush.msra.mxu0 0.0
    %3353 = vmatpush.msra.mxu0 0.0
    %3354 = vmatpush.msra.mxu0 0.0
    %3355 = vmatpush.msra.mxu0 0.0
    %3356 = vmatpush.msra.mxu0 0.0
    %3357 = vmatpush.msra.mxu0 0.0
    %3358 = vmatpush.msra.mxu0 0.0
    %3359 = vmatpush.msra.mxu0 %v1754
    %3360 = vmatpush.msra.mxu0 %v1753
    %3361 = vmatpush.msra.mxu0 %v1752
    %3362 = vmatpush.msra.mxu0 %v1751
    %3363 = vmatmul.f32.gmra.mxu0 %v3345
    %v3364 = vpop.f32.mrf.mxu0
    %v3365 = vadd.f32 %v1697, %v3364
    %3366 = vdwg.mxu0
    %v3367 = vadd.f32 %v1606, %v3365
    %v3368 = vadd.f32 %v1609, %v3365
    %v3369 = vadd.f32 %v1612, %v3365
    %v3370 = vadd.f32 %v1615, %v3365
    %v3371 = vadd.f32 %v1618, %v3365
    %v3372 = vadd.f32 %v1621, %v3365
    %v3373 = vadd.f32 %v1624, %v3365
    %v3374 = vadd.f32 %v1627, %v3365
    %v3375 = vtanh.pop %v3367
    %v3376 = vtanh.pop %v3368
    %v3377 = vtanh.pop %v3369
    %v3378 = vtanh.pop %v3370
    %v3379 = vtanh.pop %v3371
    %v3380 = vtanh.pop %v3372
    %v3381 = vtanh.pop %v3373
    %v3382 = vtanh.pop %v3374
    %v3383 = vmul.f32 %v3375, %v1808
    %v3384 = vmul.f32 %v3376, %v1808
    %v3385 = vmul.f32 %v3377, %v1808
    %v3386 = vmul.f32 %v3378, %v1808
    %v3387 = vmul.f32 %v3379, %v1808
    %v3388 = vmul.f32 %v3380, %v1808
    %v3389 = vmul.f32 %v3381, %v1808
    %v3390 = vmul.f32 %v3382, %v1808
    %v3391 = vsel %vm430, %v3383, 0.0
    %3392 = vadd.xlane.f32.xlu0 %v3391
    %v3393 = vpop.xlane.xlu0 %3392
    %v3394 = vsel %vm430, %v3384, 0.0
    %3395 = vadd.xlane.f32.xlu0 %v3394
    %v3396 = vpop.xlane.xlu0 %3395
    %v3397 = vsel %vm430, %v3385, 0.0
    %3398 = vadd.xlane.f32.xlu0 %v3397
    %v3399 = vpop.xlane.xlu0 %3398
    %v3400 = vsel %vm430, %v3386, 0.0
    %3401 = vadd.xlane.f32.xlu0 %v3400
    %v3402 = vpop.xlane.xlu0 %3401
    %v3403 = vsel %vm430, %v3387, 0.0
    %3404 = vadd.xlane.f32.xlu0 %v3403
    %v3405 = vpop.xlane.xlu0 %3404
    %v3406 = vsel %vm430, %v3388, 0.0
    %3407 = vadd.xlane.f32.xlu0 %v3406
    %v3408 = vpop.xlane.xlu0 %3407
    %v3409 = vsel %vm430, %v3389, 0.0
    %3410 = vadd.xlane.f32.xlu0 %v3409
    %v3411 = vpop.xlane.xlu0 %3410
    %v3412 = vsel %vm430, %v3390, 0.0
    %3413 = vadd.xlane.f32.xlu0 %v3412
    %v3414 = vpop.xlane.xlu0 %3413
    %v3415 = vmax.f32 %v3393, %v3405
    %v3416 = vmax.f32 %v3396, %v3408
    %v3417 = vmax.f32 %v3399, %v3411
    %v3418 = vmax.f32 %v3402, %v3414
    %v3419 = vmax.f32 %v3415, %v3416
    %v3420 = vmax.f32 %v3417, %v3418
    %v3421 = vmax.f32 %v3419, %v3420
    %v3422 = vsub.f32 %v3393, %v3421
    %v3423 = vsub.f32 %v3396, %v3421
    %v3424 = vsub.f32 %v3399, %v3421
    %v3425 = vsub.f32 %v3402, %v3421
    %v3426 = vsub.f32 %v3405, %v3421
    %v3427 = vsub.f32 %v3408, %v3421
    %v3428 = vsub.f32 %v3411, %v3421
    %v3429 = vsub.f32 %v3414, %v3421
    %v3430 = vmul.f32 %v3422, 1.442695
    %v3431 = vpow.pop %v3430
    %v3432 = vmul.f32 %v3423, 1.442695
    %v3433 = vpow.pop %v3432
    %v3434 = vmul.f32 %v3424, 1.442695
    %v3435 = vpow.pop %v3434
    %v3436 = vmul.f32 %v3425, 1.442695
    %v3437 = vpow.pop %v3436
    %v3438 = vmul.f32 %v3426, 1.442695
    %v3439 = vpow.pop %v3438
    %v3440 = vmul.f32 %v3427, 1.442695
    %v3441 = vpow.pop %v3440
    %v3442 = vmul.f32 %v3428, 1.442695
    %v3443 = vpow.pop %v3442
    %v3444 = vmul.f32 %v3429, 1.442695
    %v3445 = vpow.pop %v3444
    %v3446 = vmul.f32 %v3431, %v78
    %v3447 = vmul.f32 %v3433, %v79
    %v3448 = vmul.f32 %v3435, %v80
    %v3449 = vmul.f32 %v3437, %v81
    %v3450 = vmul.f32 %v3439, %v82
    %v3451 = vmul.f32 %v3441, %v83
    %v3452 = vmul.f32 %v3443, %v84
    %v3453 = vmul.f32 %v3445, %v85
    %v3454 = vsel %vm1482, %v3446, 0.0
    %v3455 = vsel %vm1482, %v3447, 0.0
    %v3456 = vadd.f32 %v3454, %v3455
    %v3457 = vsel %vm1482, %v3448, 0.0
    %v3458 = vadd.f32 %v3456, %v3457
    %v3459 = vsel %vm1482, %v3449, 0.0
    %v3460 = vadd.f32 %v3458, %v3459
    %v3461 = vsel %vm1482, %v3450, 0.0
    %v3462 = vadd.f32 %v3460, %v3461
    %v3463 = vsel %vm1482, %v3451, 0.0
    %v3464 = vadd.f32 %v3462, %v3463
    %v3465 = vsel %vm1482, %v3452, 0.0
    %v3466 = vadd.f32 %v3464, %v3465
    %v3467 = vsel %vm1482, %v3453, 0.0
    %v3468 = vadd.f32 %v3466, %v3467
    %3470 = vset.pattern.permute.xlu0 0
    %3471 = vperm.xlu0 %3470, %v3446
    %v3472 = vpop.permute.xlu0 %3471
    %3475 = vset.pattern.permute.xlu0 0
    %3476 = vperm.xlu0 %3475, %v3447
    %v3477 = vpop.permute.xlu0 %3476
    %3480 = vset.pattern.permute.xlu0 0
    %3481 = vperm.xlu0 %3480, %v3448
    %v3482 = vpop.permute.xlu0 %3481
    %3485 = vset.pattern.permute.xlu0 0
    %3486 = vperm.xlu0 %3485, %v3449
    %v3487 = vpop.permute.xlu0 %3486
    %3490 = vset.pattern.permute.xlu0 0
    %3491 = vperm.xlu0 %3490, %v3450
    %v3492 = vpop.permute.xlu0 %3491
    %3495 = vset.pattern.permute.xlu0 0
    %3496 = vperm.xlu0 %3495, %v3451
    %v3497 = vpop.permute.xlu0 %3496
    %3500 = vset.pattern.permute.xlu0 0
    %3501 = vperm.xlu0 %3500, %v3452
    %v3502 = vpop.permute.xlu0 %3501
    %3505 = vset.pattern.permute.xlu0 0
    %3506 = vperm.xlu0 %3505, %v3453
    %v3507 = vpop.permute.xlu0 %3506
    %v3509 = vmul.f32 %v3472, %v1474
    %v3510 = vmul.f32 %v3477, %v1475
    %v3511 = vmul.f32 %v3482, %v1476
    %v3512 = vmul.f32 %v3487, %v1477
    %v3513 = vmul.f32 %v3492, %v1478
    %v3514 = vmul.f32 %v3497, %v1479
    %v3515 = vmul.f32 %v3502, %v1480
    %v3516 = vmul.f32 %v3507, %v1481
    %v3517 = vsel %vm168, %v3509, 0.0
    %v3518 = vsel %vm168, %v3510, 0.0
    %v3519 = vadd.f32 %v3517, %v3518
    %v3520 = vsel %vm168, %v3511, 0.0
    %v3521 = vadd.f32 %v3519, %v3520
    %v3522 = vsel %vm168, %v3512, 0.0
    %v3523 = vadd.f32 %v3521, %v3522
    %v3524 = vsel %vm168, %v3513, 0.0
    %v3525 = vadd.f32 %v3523, %v3524
    %v3526 = vsel %vm168, %v3514, 0.0
    %v3527 = vadd.f32 %v3525, %v3526
    %v3528 = vsel %vm168, %v3515, 0.0
    %v3529 = vadd.f32 %v3527, %v3528
    %v3530 = vsel %vm168, %v3516, 0.0
    %v3531 = vadd.f32 %v3529, %v3530
    %v3532 = vadd.f32 %v3468, 1e-15
    %v3533 = vrcp.pop %v3532
    %3535 = vset.pattern.permute.xlu0 0
    %3536 = vperm.xlu0 %3535, %v3533
    %v3537 = vpop.permute.xlu0 %3536
    %v3539 = vmul.f32 %v3531, %v3537
    %3540 = vrot.lane.b32.xlu0 %v3341, 96
    %v3541 = vpop.permute.xlu0 %3540
    %v3543 = vsel %vm168, %v3539, %v3541
    %v3545 = vsel %vm1971, %v3543, 0
    %3547 = vmatpush.msra.mxu0 0.0
    %3548 = vmatpush.msra.mxu0 0.0
    %3549 = vmatpush.msra.mxu0 0.0
    %3550 = vmatpush.msra.mxu0 0.0
    %3551 = vmatpush.msra.mxu0 %v1767
    %3552 = vmatpush.msra.mxu0 %v1766
    %3553 = vmatpush.msra.mxu0 %v1765
    %3554 = vmatpush.msra.mxu0 %v1764
    %3555 = vmatpush.msra.mxu0 %v1763
    %3556 = vmatpush.msra.mxu0 %v1762
    %3557 = vmatpush.msra.mxu0 %v1761
    %3558 = vmatpush.msra.mxu0 %v1760
    %3559 = vmatpush.msra.mxu0 %v1759
    %3560 = vmatpush.msra.mxu0 %v1758
    %3561 = vmatpush.msra.mxu0 %v1757
    %3562 = vmatpush.msra.mxu0 %v1756
    %3563 = vmatmul.f32.gmra.mxu0 %v3545
    %v3564 = vpop.f32.mrf.mxu0
    %v3565 = vadd.f32 %v1746, %v3564
    %3566 = vdwg.mxu0
    %v3567 = vxor.u32 %v3565, 2147483648
    %v3568 = vmul.f32 %v3567, 1.442695
    %v3569 = vpow.pop %v3568
    %v3570 = vadd.f32 %v3569, 1.0
    %v3571 = vrcp.pop %v3570
    %v3572 = vmul.f32 %v3570, %v3571
    %v3573 = vsub.f32 1.0, %v3572
    %v3574 = vmul.f32 %v3571, %v3573
    %v3575 = vadd.f32 %v3571, %v3574
    %vm3576 = vweird.f32 %v3570
    %vm3577 = vweird.f32 %v3571
    %vm3578 = vmor %vm3576, %vm3577
    %v3579 = vsel %vm3578, %v3571, %v3575
    %v3580 = vand.u32 2147483647, %v3570
    %vm3581 = vcmp.eq.f32.partialorder %v3580, 8.507059e+37
    %v3582 = vand.u32 %v3570, 2147483648
    %v3583 = vor.u32 1.1754944e-38, %v3582
    %v3584 = vsel %vm3581, %v3583, %v3579
    %v3585 = vmul.f32 1.0, %v3584
    %v3586 = vtanh.pop %v3565
    %v3587 = vmul.f32 %v3585, %v3335
    %3589 = vrot.lane.b32.xlu0 %v3586, 64
    %v3590 = vpop.permute.xlu0 %3589
    %v3592 = vmul.f32 %v3585, %v3590
    %3594 = vrot.lane.b32.xlu0 %v3592, 32
    %v3595 = vpop.permute.xlu0 %3594
    %v3597 = vadd.f32 %v3587, %v3595
    %v3598 = vtanh.pop %v3597
    %3600 = vrot.lane.b32.xlu0 %v3598, 64
    %v3601 = vpop.permute.xlu0 %3600
    %v3603 = vmul.f32 %v3585, %v3601
    %3605 = vrot.lane.b32.xlu0 %v3603, 32
    %v3606 = vpop.permute.xlu0 %3605
    %v3607 = vsel %vm430, %v3606, 0
    %3609 = vmatpush.msra.mxu0 0.0
    %3610 = vmatpush.msra.mxu0 0.0
    %3611 = vmatpush.msra.mxu0 0.0
    %3612 = vmatpush.msra.mxu0 0.0
    %3613 = vmatpush.msra.mxu0 0.0
    %3614 = vmatpush.msra.mxu0 0.0
    %3615 = vmatpush.msra.mxu0 0.0
    %3616 = vmatpush.msra.mxu0 0.0
    %3617 = vmatpush.msra.mxu0 0.0
    %3618 = vmatpush.msra.mxu0 0.0
    %3619 = vmatpush.msra.mxu0 0.0
    %3620 = vmatpush.msra.mxu0 0.0
    %3621 = vmatpush.msra.mxu0 %v1754
    %3622 = vmatpush.msra.mxu0 %v1753
    %3623 = vmatpush.msra.mxu0 %v1752
    %3624 = vmatpush.msra.mxu0 %v1751
    %3625 = vmatmul.f32.gmra.mxu0 %v3607
    %v3626 = vpop.f32.mrf.mxu0
    %v3627 = vadd.f32 %v1700, %v3626
    %3628 = vdwg.mxu0
    %v3629 = vadd.f32 %v1606, %v3627
    %v3630 = vadd.f32 %v1609, %v3627
    %v3631 = vadd.f32 %v1612, %v3627
    %v3632 = vadd.f32 %v1615, %v3627
    %v3633 = vadd.f32 %v1618, %v3627
    %v3634 = vadd.f32 %v1621, %v3627
    %v3635 = vadd.f32 %v1624, %v3627
    %v3636 = vadd.f32 %v1627, %v3627
    %v3637 = vtanh.pop %v3629
    %v3638 = vtanh.pop %v3630
    %v3639 = vtanh.pop %v3631
    %v3640 = vtanh.pop %v3632
    %v3641 = vtanh.pop %v3633
    %v3642 = vtanh.pop %v3634
    %v3643 = vtanh.pop %v3635
    %v3644 = vtanh.pop %v3636
    %v3645 = vmul.f32 %v3637, %v1808
    %v3646 = vmul.f32 %v3638, %v1808
    %v3647 = vmul.f32 %v3639, %v1808
    %v3648 = vmul.f32 %v3640, %v1808
    %v3649 = vmul.f32 %v3641, %v1808
    %v3650 = vmul.f32 %v3642, %v1808
    %v3651 = vmul.f32 %v3643, %v1808
    %v3652 = vmul.f32 %v3644, %v1808
    %v3653 = vsel %vm430, %v3645, 0.0
    %3654 = vadd.xlane.f32.xlu0 %v3653
    %v3655 = vpop.xlane.xlu0 %3654
    %v3656 = vsel %vm430, %v3646, 0.0
    %3657 = vadd.xlane.f32.xlu0 %v3656
    %v3658 = vpop.xlane.xlu0 %3657
    %v3659 = vsel %vm430, %v3647, 0.0
    %3660 = vadd.xlane.f32.xlu0 %v3659
    %v3661 = vpop.xlane.xlu0 %3660
    %v3662 = vsel %vm430, %v3648, 0.0
    %3663 = vadd.xlane.f32.xlu0 %v3662
    %v3664 = vpop.xlane.xlu0 %3663
    %v3665 = vsel %vm430, %v3649, 0.0
    %3666 = vadd.xlane.f32.xlu0 %v3665
    %v3667 = vpop.xlane.xlu0 %3666
    %v3668 = vsel %vm430, %v3650, 0.0
    %3669 = vadd.xlane.f32.xlu0 %v3668
    %v3670 = vpop.xlane.xlu0 %3669
    %v3671 = vsel %vm430, %v3651, 0.0
    %3672 = vadd.xlane.f32.xlu0 %v3671
    %v3673 = vpop.xlane.xlu0 %3672
    %v3674 = vsel %vm430, %v3652, 0.0
    %3675 = vadd.xlane.f32.xlu0 %v3674
    %v3676 = vpop.xlane.xlu0 %3675
    %v3677 = vmax.f32 %v3655, %v3667
    %v3678 = vmax.f32 %v3658, %v3670
    %v3679 = vmax.f32 %v3661, %v3673
    %v3680 = vmax.f32 %v3664, %v3676
    %v3681 = vmax.f32 %v3677, %v3678
    %v3682 = vmax.f32 %v3679, %v3680
    %v3683 = vmax.f32 %v3681, %v3682
    %v3684 = vsub.f32 %v3655, %v3683
    %v3685 = vsub.f32 %v3658, %v3683
    %v3686 = vsub.f32 %v3661, %v3683
    %v3687 = vsub.f32 %v3664, %v3683
    %v3688 = vsub.f32 %v3667, %v3683
    %v3689 = vsub.f32 %v3670, %v3683
    %v3690 = vsub.f32 %v3673, %v3683
    %v3691 = vsub.f32 %v3676, %v3683
    %v3692 = vmul.f32 %v3684, 1.442695
    %v3693 = vpow.pop %v3692
    %v3694 = vmul.f32 %v3685, 1.442695
    %v3695 = vpow.pop %v3694
    %v3696 = vmul.f32 %v3686, 1.442695
    %v3697 = vpow.pop %v3696
    %v3698 = vmul.f32 %v3687, 1.442695
    %v3699 = vpow.pop %v3698
    %v3700 = vmul.f32 %v3688, 1.442695
    %v3701 = vpow.pop %v3700
    %v3702 = vmul.f32 %v3689, 1.442695
    %v3703 = vpow.pop %v3702
    %v3704 = vmul.f32 %v3690, 1.442695
    %v3705 = vpow.pop %v3704
    %v3706 = vmul.f32 %v3691, 1.442695
    %v3707 = vpow.pop %v3706
    %v3708 = vmul.f32 %v3693, %v78
    %v3709 = vmul.f32 %v3695, %v79
    %v3710 = vmul.f32 %v3697, %v80
    %v3711 = vmul.f32 %v3699, %v81
    %v3712 = vmul.f32 %v3701, %v82
    %v3713 = vmul.f32 %v3703, %v83
    %v3714 = vmul.f32 %v3705, %v84
    %v3715 = vmul.f32 %v3707, %v85
    %v3716 = vsel %vm1482, %v3708, 0.0
    %v3717 = vsel %vm1482, %v3709, 0.0
    %v3718 = vadd.f32 %v3716, %v3717
    %v3719 = vsel %vm1482, %v3710, 0.0
    %v3720 = vadd.f32 %v3718, %v3719
    %v3721 = vsel %vm1482, %v3711, 0.0
    %v3722 = vadd.f32 %v3720, %v3721
    %v3723 = vsel %vm1482, %v3712, 0.0
    %v3724 = vadd.f32 %v3722, %v3723
    %v3725 = vsel %vm1482, %v3713, 0.0
    %v3726 = vadd.f32 %v3724, %v3725
    %v3727 = vsel %vm1482, %v3714, 0.0
    %v3728 = vadd.f32 %v3726, %v3727
    %v3729 = vsel %vm1482, %v3715, 0.0
    %v3730 = vadd.f32 %v3728, %v3729
    %3732 = vset.pattern.permute.xlu0 0
    %3733 = vperm.xlu0 %3732, %v3708
    %v3734 = vpop.permute.xlu0 %3733
    %3737 = vset.pattern.permute.xlu0 0
    %3738 = vperm.xlu0 %3737, %v3709
    %v3739 = vpop.permute.xlu0 %3738
    %3742 = vset.pattern.permute.xlu0 0
    %3743 = vperm.xlu0 %3742, %v3710
    %v3744 = vpop.permute.xlu0 %3743
    %3747 = vset.pattern.permute.xlu0 0
    %3748 = vperm.xlu0 %3747, %v3711
    %v3749 = vpop.permute.xlu0 %3748
    %3752 = vset.pattern.permute.xlu0 0
    %3753 = vperm.xlu0 %3752, %v3712
    %v3754 = vpop.permute.xlu0 %3753
    %3757 = vset.pattern.permute.xlu0 0
    %3758 = vperm.xlu0 %3757, %v3713
    %v3759 = vpop.permute.xlu0 %3758
    %3762 = vset.pattern.permute.xlu0 0
    %3763 = vperm.xlu0 %3762, %v3714
    %v3764 = vpop.permute.xlu0 %3763
    %3767 = vset.pattern.permute.xlu0 0
    %3768 = vperm.xlu0 %3767, %v3715
    %v3769 = vpop.permute.xlu0 %3768
    %v3771 = vmul.f32 %v3734, %v1474
    %v3772 = vmul.f32 %v3739, %v1475
    %v3773 = vmul.f32 %v3744, %v1476
    %v3774 = vmul.f32 %v3749, %v1477
    %v3775 = vmul.f32 %v3754, %v1478
    %v3776 = vmul.f32 %v3759, %v1479
    %v3777 = vmul.f32 %v3764, %v1480
    %v3778 = vmul.f32 %v3769, %v1481
    %v3779 = vsel %vm168, %v3771, 0.0
    %v3780 = vsel %vm168, %v3772, 0.0
    %v3781 = vadd.f32 %v3779, %v3780
    %v3782 = vsel %vm168, %v3773, 0.0
    %v3783 = vadd.f32 %v3781, %v3782
    %v3784 = vsel %vm168, %v3774, 0.0
    %v3785 = vadd.f32 %v3783, %v3784
    %v3786 = vsel %vm168, %v3775, 0.0
    %v3787 = vadd.f32 %v3785, %v3786
    %v3788 = vsel %vm168, %v3776, 0.0
    %v3789 = vadd.f32 %v3787, %v3788
    %v3790 = vsel %vm168, %v3777, 0.0
    %v3791 = vadd.f32 %v3789, %v3790
    %v3792 = vsel %vm168, %v3778, 0.0
    %v3793 = vadd.f32 %v3791, %v3792
    %v3794 = vadd.f32 %v3730, 1e-15
    %v3795 = vrcp.pop %v3794
    %3797 = vset.pattern.permute.xlu0 0
    %3798 = vperm.xlu0 %3797, %v3795
    %v3799 = vpop.permute.xlu0 %3798
    %v3801 = vmul.f32 %v3793, %v3799
    %3802 = vrot.lane.b32.xlu0 %v3603, 96
    %v3803 = vpop.permute.xlu0 %3802
    %v3805 = vsel %vm168, %v3801, %v3803
    %v3807 = vsel %vm1971, %v3805, 0
    %3809 = vmatpush.msra.mxu0 0.0
    %3810 = vmatpush.msra.mxu0 0.0
    %3811 = vmatpush.msra.mxu0 0.0
    %3812 = vmatpush.msra.mxu0 0.0
    %3813 = vmatpush.msra.mxu0 %v1767
    %3814 = vmatpush.msra.mxu0 %v1766
    %3815 = vmatpush.msra.mxu0 %v1765
    %3816 = vmatpush.msra.mxu0 %v1764
    %3817 = vmatpush.msra.mxu0 %v1763
    %3818 = vmatpush.msra.mxu0 %v1762
    %3819 = vmatpush.msra.mxu0 %v1761
    %3820 = vmatpush.msra.mxu0 %v1760
    %3821 = vmatpush.msra.mxu0 %v1759
    %3822 = vmatpush.msra.mxu0 %v1758
    %3823 = vmatpush.msra.mxu0 %v1757
    %3824 = vmatpush.msra.mxu0 %v1756
    %3825 = vmatmul.f32.gmra.mxu0 %v3807
    %v3826 = vpop.f32.mrf.mxu0
    %v3827 = vadd.f32 %v1749, %v3826
    %3828 = vdwg.mxu0
    %v3829 = vxor.u32 %v3827, 2147483648
    %v3830 = vmul.f32 %v3829, 1.442695
    %v3831 = vpow.pop %v3830
    %v3832 = vadd.f32 %v3831, 1.0
    %v3833 = vrcp.pop %v3832
    %v3834 = vmul.f32 %v3832, %v3833
    %v3835 = vsub.f32 1.0, %v3834
    %v3836 = vmul.f32 %v3833, %v3835
    %v3837 = vadd.f32 %v3833, %v3836
    %vm3838 = vweird.f32 %v3832
    %vm3839 = vweird.f32 %v3833
    %vm3840 = vmor %vm3838, %vm3839
    %v3841 = vsel %vm3840, %v3833, %v3837
    %v3842 = vand.u32 2147483647, %v3832
    %vm3843 = vcmp.eq.f32.partialorder %v3842, 8.507059e+37
    %v3844 = vand.u32 %v3832, 2147483648
    %v3845 = vor.u32 1.1754944e-38, %v3844
    %v3846 = vsel %vm3843, %v3845, %v3841
    %v3847 = vmul.f32 1.0, %v3846
    %v3848 = vtanh.pop %v3827
    %v3849 = vmul.f32 %v3847, %v3597
    %3851 = vrot.lane.b32.xlu0 %v3848, 64
    %v3852 = vpop.permute.xlu0 %3851
    %v3854 = vmul.f32 %v3847, %v3852
    %3856 = vrot.lane.b32.xlu0 %v3854, 32
    %v3857 = vpop.permute.xlu0 %3856
    %v3859 = vadd.f32 %v3849, %v3857
    %v3860 = vtanh.pop %v3859
    %3862 = vrot.lane.b32.xlu0 %v3860, 64
    %v3863 = vpop.permute.xlu0 %3862
    %v3865 = vmul.f32 %v3847, %v3863
    %3867 = vrot.lane.b32.xlu0 %v3865, 96
    %v3868 = vpop.permute.xlu0 %3867
    %3870 = vrot.lane.b32.xlu0 %v391, 96
    %v3871 = vpop.permute.xlu0 %3870
    %3872 = vrot.lane.b32.xlu0 %v394, 96
    %v3873 = vpop.permute.xlu0 %3872
    %3874 = vrot.lane.b32.xlu0 %v397, 96
    %v3875 = vpop.permute.xlu0 %3874
    %3876 = vrot.lane.b32.xlu0 %v400, 96
    %v3877 = vpop.permute.xlu0 %3876
    %3878 = vrot.lane.b32.xlu0 %v403, 96
    %v3879 = vpop.permute.xlu0 %3878
    %3880 = vrot.lane.b32.xlu0 %v406, 96
    %v3881 = vpop.permute.xlu0 %3880
    %3882 = vrot.lane.b32.xlu0 %v409, 96
    %v3883 = vpop.permute.xlu0 %3882
    %3884 = vrot.lane.b32.xlu0 %v412, 96
    %v3885 = vpop.permute.xlu0 %3884
    %v3894 = vsel %vm168, %v1966, %v2231
    %v3895 = vsel %vm168, %v2229, %v2493
    %v3896 = vsel %vm168, %v2491, %v2755
    %v3897 = vsel %vm168, %v2753, %v3017
    %v3898 = vsel %vm168, %v3015, %v3279
    %v3899 = vsel %vm168, %v3277, %v3541
    %v3900 = vsel %vm168, %v3539, %v3803
    %v3901 = vsel %vm168, %v3801, %v3868
    %v3902 = vsel %vm1971, %v3894, %v3871
    %v3903 = vsel %vm1971, %v3895, %v3873
    %v3904 = vsel %vm1971, %v3896, %v3875
    %v3905 = vsel %vm1971, %v3897, %v3877
    %v3906 = vsel %vm1971, %v3898, %v3879
    %v3907 = vsel %vm1971, %v3899, %v3881
    %v3908 = vsel %vm1971, %v3900, %v3883
    %v3909 = vsel %vm1971, %v3901, %v3885
    %v3910 = vld [vmem:[%s20] sm:$0xff]
    %v3911 = vld [vmem:[%s20 + $0x8] sm:$0xff]
    %v3912 = vld [vmem:[%s20 + $0x10] sm:$0xff]
    %v3913 = vld [vmem:[%s20 + $0x18] sm:$0xff]
    %v3914 = vld [vmem:[%s20 + $0x20] sm:$0xff]
    %v3915 = vld [vmem:[%s20 + $0x28] sm:$0xff]
    %v3916 = vld [vmem:[%s20 + $0x30] sm:$0xff]
    %v3917 = vld [vmem:[%s20 + $0x38] sm:$0xff]
    %v3918 = vld [vmem:[%s20 + $0x40] sm:$0xff]
    %v3919 = vld [vmem:[%s20 + $0x48] sm:$0xff]
    %v3920 = vld [vmem:[%s20 + $0x50] sm:$0xff]
    %v3921 = vld [vmem:[%s20 + $0x58] sm:$0xff]
    %v3922 = vld [vmem:[%s20 + $0x60] sm:$0xff]
    %v3923 = vld [vmem:[%s20 + $0x68] sm:$0xff]
    %v3924 = vld [vmem:[%s20 + $0x70] sm:$0xff]
    %v3925 = vld [vmem:[%s20 + $0x78] sm:$0xff]
    %v3926 = vld [vmem:[%s21] sm:$0x1]
    %v3928 = vperm.slane %v3926, 0
    %3930 = vmatpush.msra.mxu0 %v3925
    %3931 = vmatpush.msra.mxu0 %v3924
    %3932 = vmatpush.msra.mxu0 %v3923
    %3933 = vmatpush.msra.mxu0 %v3922
    %3934 = vmatpush.msra.mxu0 %v3921
    %3935 = vmatpush.msra.mxu0 %v3920
    %3936 = vmatpush.msra.mxu0 %v3919
    %3937 = vmatpush.msra.mxu0 %v3918
    %3938 = vmatpush.msra.mxu0 %v3917
    %3939 = vmatpush.msra.mxu0 %v3916
    %3940 = vmatpush.msra.mxu0 %v3915
    %3941 = vmatpush.msra.mxu0 %v3914
    %3942 = vmatpush.msra.mxu0 %v3913
    %3943 = vmatpush.msra.mxu0 %v3912
    %3944 = vmatpush.msra.mxu0 %v3911
    %3945 = vmatpush.msra.mxu0 %v3910
    %3946 = vmatmul.f32.gmra.mxu0 %v3902
    %v3947 = vpop.f32.mrf.mxu0
    %v3948 = vadd.f32 %v3928, %v3947
    %3949 = vmatmul.f32.gmra.mxu0 %v3903
    %v3950 = vpop.f32.mrf.mxu0
    %v3951 = vadd.f32 %v3928, %v3950
    %3952 = vmatmul.f32.gmra.mxu0 %v3904
    %v3953 = vpop.f32.mrf.mxu0
    %v3954 = vadd.f32 %v3928, %v3953
    %3955 = vmatmul.f32.gmra.mxu0 %v3905
    %v3956 = vpop.f32.mrf.mxu0
    %v3957 = vadd.f32 %v3928, %v3956
    %3958 = vmatmul.f32.gmra.mxu0 %v3906
    %v3959 = vpop.f32.mrf.mxu0
    %v3960 = vadd.f32 %v3928, %v3959
    %3961 = vmatmul.f32.gmra.mxu0 %v3907
    %v3962 = vpop.f32.mrf.mxu0
    %v3963 = vadd.f32 %v3928, %v3962
    %3964 = vmatmul.f32.gmra.mxu0 %v3908
    %v3965 = vpop.f32.mrf.mxu0
    %v3966 = vadd.f32 %v3928, %v3965
    %3967 = vmatmul.f32.gmra.mxu0 %v3909
    %v3968 = vpop.f32.mrf.mxu0
    %v3969 = vadd.f32 %v3928, %v3968
    %3970 = vdwg.mxu0
    %3979 = vrot.lane.b32.xlu0 %v3948, 96
    %v3980 = vpop.permute.xlu0 %3979
    %3981 = vrot.lane.b32.xlu0 %v3951, 96
    %v3982 = vpop.permute.xlu0 %3981
    %3983 = vrot.lane.b32.xlu0 %v3954, 96
    %v3984 = vpop.permute.xlu0 %3983
    %3985 = vrot.lane.b32.xlu0 %v3957, 96
    %v3986 = vpop.permute.xlu0 %3985
    %3987 = vrot.lane.b32.xlu0 %v3960, 96
    %v3988 = vpop.permute.xlu0 %3987
    %3989 = vrot.lane.b32.xlu0 %v3963, 96
    %v3990 = vpop.permute.xlu0 %3989
    %3991 = vrot.lane.b32.xlu0 %v3966, 96
    %v3992 = vpop.permute.xlu0 %3991
    %3993 = vrot.lane.b32.xlu0 %v3969, 96
    %v3994 = vpop.permute.xlu0 %3993
    %v4003 = vmax.f32 %v3948, %v3980
    %v4004 = vmax.f32 %v3951, %v3982
    %v4005 = vmax.f32 %v3954, %v3984
    %v4006 = vmax.f32 %v3957, %v3986
    %v4007 = vmax.f32 %v3960, %v3988
    %v4008 = vmax.f32 %v3963, %v3990
    %v4009 = vmax.f32 %v3966, %v3992
    %v4010 = vmax.f32 %v3969, %v3994
    %v4011 = vld [vmem:[%s22] sm:$0xff]
    %v4012 = vld [vmem:[%s22 + $0x8] sm:$0xff]
    %v4013 = vld [vmem:[%s22 + $0x10] sm:$0xff]
    %v4014 = vld [vmem:[%s22 + $0x18] sm:$0xff]
    %v4015 = vld [vmem:[%s23] sm:$0x1]
    %v4017 = vperm.slane %v4015, 0
    %v4020 = vsel %vm430, %v4003, 0
    %v4023 = vsel %vm430, %v4004, 0
    %v4026 = vsel %vm430, %v4005, 0
    %v4029 = vsel %vm430, %v4006, 0
    %v4032 = vsel %vm430, %v4007, 0
    %v4035 = vsel %vm430, %v4008, 0
    %v4038 = vsel %vm430, %v4009, 0
    %v4041 = vsel %vm430, %v4010, 0
    %4043 = vmatpush.msra.mxu0 0.0
    %4044 = vmatpush.msra.mxu0 0.0
    %4045 = vmatpush.msra.mxu0 0.0
    %4046 = vmatpush.msra.mxu0 0.0
    %4047 = vmatpush.msra.mxu0 0.0
    %4048 = vmatpush.msra.mxu0 0.0
    %4049 = vmatpush.msra.mxu0 0.0
    %4050 = vmatpush.msra.mxu0 0.0
    %4051 = vmatpush.msra.mxu0 0.0
    %4052 = vmatpush.msra.mxu0 0.0
    %4053 = vmatpush.msra.mxu0 0.0
    %4054 = vmatpush.msra.mxu0 0.0
    %4055 = vmatpush.msra.mxu0 %v4014
    %4056 = vmatpush.msra.mxu0 %v4013
    %4057 = vmatpush.msra.mxu0 %v4012
    %4058 = vmatpush.msra.mxu0 %v4011
    %4059 = vmatmul.f32.gmra.mxu0 %v4020
    %v4060 = vpop.f32.mrf.mxu0
    %v4061 = vadd.f32 %v4017, %v4060
    %4062 = vmatmul.f32.gmra.mxu0 %v4023
    %v4063 = vpop.f32.mrf.mxu0
    %v4064 = vadd.f32 %v4017, %v4063
    %4065 = vmatmul.f32.gmra.mxu0 %v4026
    %v4066 = vpop.f32.mrf.mxu0
    %v4067 = vadd.f32 %v4017, %v4066
    %4068 = vmatmul.f32.gmra.mxu0 %v4029
    %v4069 = vpop.f32.mrf.mxu0
    %v4070 = vadd.f32 %v4017, %v4069
    %4071 = vmatmul.f32.gmra.mxu0 %v4032
    %v4072 = vpop.f32.mrf.mxu0
    %v4073 = vadd.f32 %v4017, %v4072
    %4074 = vmatmul.f32.gmra.mxu0 %v4035
    %v4075 = vpop.f32.mrf.mxu0
    %v4076 = vadd.f32 %v4017, %v4075
    %4077 = vmatmul.f32.gmra.mxu0 %v4038
    %v4078 = vpop.f32.mrf.mxu0
    %v4079 = vadd.f32 %v4017, %v4078
    %4080 = vmatmul.f32.gmra.mxu0 %v4041
    %v4081 = vpop.f32.mrf.mxu0
    %v4082 = vadd.f32 %v4017, %v4081
    %4083 = vdwg.mxu0
    %v4084 = vsel %vm168, %v4061, -inf
    %4085 = vmax.xlane.f32.xlu0 %v4084
    %v4086 = vpop.xlane.xlu0 %4085
    %v4087 = vsel %vm168, %v4064, -inf
    %4088 = vmax.xlane.f32.xlu0 %v4087
    %v4089 = vpop.xlane.xlu0 %4088
    %v4090 = vsel %vm168, %v4067, -inf
    %4091 = vmax.xlane.f32.xlu0 %v4090
    %v4092 = vpop.xlane.xlu0 %4091
    %v4093 = vsel %vm168, %v4070, -inf
    %4094 = vmax.xlane.f32.xlu0 %v4093
    %v4095 = vpop.xlane.xlu0 %4094
    %v4096 = vsel %vm168, %v4073, -inf
    %4097 = vmax.xlane.f32.xlu0 %v4096
    %v4098 = vpop.xlane.xlu0 %4097
    %v4099 = vsel %vm168, %v4076, -inf
    %4100 = vmax.xlane.f32.xlu0 %v4099
    %v4101 = vpop.xlane.xlu0 %4100
    %v4102 = vsel %vm168, %v4079, -inf
    %4103 = vmax.xlane.f32.xlu0 %v4102
    %v4104 = vpop.xlane.xlu0 %4103
    %v4105 = vsel %vm168, %v4082, -inf
    %4106 = vmax.xlane.f32.xlu0 %v4105
    %v4107 = vpop.xlane.xlu0 %4106
    %v4108 = vsub.f32 %v4061, %v4086
    %v4109 = vsub.f32 %v4064, %v4089
    %v4110 = vsub.f32 %v4067, %v4092
    %v4111 = vsub.f32 %v4070, %v4095
    %v4112 = vsub.f32 %v4073, %v4098
    %v4113 = vsub.f32 %v4076, %v4101
    %v4114 = vsub.f32 %v4079, %v4104
    %v4115 = vsub.f32 %v4082, %v4107
    %v4116 = vmul.f32 %v4108, 1.442695
    %v4117 = vpow.pop %v4116
    %v4118 = vmul.f32 %v4109, 1.442695
    %v4119 = vpow.pop %v4118
    %v4120 = vmul.f32 %v4110, 1.442695
    %v4121 = vpow.pop %v4120
    %v4122 = vmul.f32 %v4111, 1.442695
    %v4123 = vpow.pop %v4122
    %v4124 = vmul.f32 %v4112, 1.442695
    %v4125 = vpow.pop %v4124
    %v4126 = vmul.f32 %v4113, 1.442695
    %v4127 = vpow.pop %v4126
    %v4128 = vmul.f32 %v4114, 1.442695
    %v4129 = vpow.pop %v4128
    %v4130 = vmul.f32 %v4115, 1.442695
    %v4131 = vpow.pop %v4130
    %v4132 = vsel %vm168, %v4117, 0.0
    %4133 = vadd.xlane.f32.xlu0 %v4132
    %v4134 = vpop.xlane.xlu0 %4133
    %v4135 = vsel %vm168, %v4119, 0.0
    %4136 = vadd.xlane.f32.xlu0 %v4135
    %v4137 = vpop.xlane.xlu0 %4136
    %v4138 = vsel %vm168, %v4121, 0.0
    %4139 = vadd.xlane.f32.xlu0 %v4138
    %v4140 = vpop.xlane.xlu0 %4139
    %v4141 = vsel %vm168, %v4123, 0.0
    %4142 = vadd.xlane.f32.xlu0 %v4141
    %v4143 = vpop.xlane.xlu0 %4142
    %v4144 = vsel %vm168, %v4125, 0.0
    %4145 = vadd.xlane.f32.xlu0 %v4144
    %v4146 = vpop.xlane.xlu0 %4145
    %v4147 = vsel %vm168, %v4127, 0.0
    %4148 = vadd.xlane.f32.xlu0 %v4147
    %v4149 = vpop.xlane.xlu0 %4148
    %v4150 = vsel %vm168, %v4129, 0.0
    %4151 = vadd.xlane.f32.xlu0 %v4150
    %v4152 = vpop.xlane.xlu0 %4151
    %v4153 = vsel %vm168, %v4131, 0.0
    %4154 = vadd.xlane.f32.xlu0 %v4153
    %v4155 = vpop.xlane.xlu0 %4154
    %v4156 = vlog2.pop %v4134
    %v4157 = vmul.f32 %v4156, 0.6931472
    %v4158 = vlog2.pop %v4137
    %v4159 = vmul.f32 %v4158, 0.6931472
    %v4160 = vlog2.pop %v4140
    %v4161 = vmul.f32 %v4160, 0.6931472
    %v4162 = vlog2.pop %v4143
    %v4163 = vmul.f32 %v4162, 0.6931472
    %v4164 = vlog2.pop %v4146
    %v4165 = vmul.f32 %v4164, 0.6931472
    %v4166 = vlog2.pop %v4149
    %v4167 = vmul.f32 %v4166, 0.6931472
    %v4168 = vlog2.pop %v4152
    %v4169 = vmul.f32 %v4168, 0.6931472
    %v4170 = vlog2.pop %v4155
    %v4171 = vmul.f32 %v4170, 0.6931472
    %v4172 = vadd.f32 %v4086, %v4157
    %v4173 = vadd.f32 %v4089, %v4159
    %v4174 = vadd.f32 %v4092, %v4161
    %v4175 = vadd.f32 %v4095, %v4163
    %v4176 = vadd.f32 %v4098, %v4165
    %v4177 = vadd.f32 %v4101, %v4167
    %v4178 = vadd.f32 %v4104, %v4169
    %v4179 = vadd.f32 %v4107, %v4171
    %v4180 = vsub.f32 %v4172, %v4061
    %v4181 = vsub.f32 %v4173, %v4064
    %v4182 = vsub.f32 %v4174, %v4067
    %v4183 = vsub.f32 %v4175, %v4070
    %v4184 = vsub.f32 %v4176, %v4073
    %v4185 = vsub.f32 %v4177, %v4076
    %v4186 = vsub.f32 %v4178, %v4079
    %v4187 = vsub.f32 %v4179, %v4082
    %v4188 = vmul.f32 %v330, %v4180
    %v4189 = vmul.f32 %v331, %v4181
    %v4190 = vmul.f32 %v332, %v4182
    %v4191 = vmul.f32 %v333, %v4183
    %v4192 = vmul.f32 %v334, %v4184
    %v4193 = vmul.f32 %v335, %v4185
    %v4194 = vmul.f32 %v336, %v4186
    %v4195 = vmul.f32 %v337, %v4187
    %v4196 = vsel %vm168, %v4188, 0.0
    %4197 = vadd.xlane.f32.xlu0 %v4196
    %v4198 = vpop.xlane.xlu0 %4197
    %v4199 = vsel %vm168, %v4189, 0.0
    %4200 = vadd.xlane.f32.xlu0 %v4199
    %v4201 = vpop.xlane.xlu0 %4200
    %v4202 = vsel %vm168, %v4190, 0.0
    %4203 = vadd.xlane.f32.xlu0 %v4202
    %v4204 = vpop.xlane.xlu0 %4203
    %v4205 = vsel %vm168, %v4191, 0.0
    %4206 = vadd.xlane.f32.xlu0 %v4205
    %v4207 = vpop.xlane.xlu0 %4206
    %v4208 = vsel %vm168, %v4192, 0.0
    %4209 = vadd.xlane.f32.xlu0 %v4208
    %v4210 = vpop.xlane.xlu0 %4209
    %v4211 = vsel %vm168, %v4193, 0.0
    %4212 = vadd.xlane.f32.xlu0 %v4211
    %v4213 = vpop.xlane.xlu0 %4212
    %v4214 = vsel %vm168, %v4194, 0.0
    %4215 = vadd.xlane.f32.xlu0 %v4214
    %v4216 = vpop.xlane.xlu0 %4215
    %v4217 = vsel %vm168, %v4195, 0.0
    %4218 = vadd.xlane.f32.xlu0 %v4217
    %v4219 = vpop.xlane.xlu0 %4218
    %v4220 = vmul.f32 %v4198, %v94
    %v4221 = vmul.f32 %v4201, %v95
    %v4222 = vmul.f32 %v4204, %v96
    %v4223 = vmul.f32 %v4207, %v97
    %v4224 = vmul.f32 %v4210, %v98
    %v4225 = vmul.f32 %v4213, %v99
    %v4226 = vmul.f32 %v4216, %v100
    %v4227 = vmul.f32 %v4219, %v101
    %v4228 = vsel %vm1482, %v4220, 0.0
    %v4229 = vsel %vm1482, %v4221, 0.0
    %v4230 = vadd.f32 %v4228, %v4229
    %v4231 = vsel %vm1482, %v4222, 0.0
    %v4232 = vadd.f32 %v4230, %v4231
    %v4233 = vsel %vm1482, %v4223, 0.0
    %v4234 = vadd.f32 %v4232, %v4233
    %v4235 = vsel %vm1482, %v4224, 0.0
    %v4236 = vadd.f32 %v4234, %v4235
    %v4237 = vsel %vm1482, %v4225, 0.0
    %v4238 = vadd.f32 %v4236, %v4237
    %v4239 = vsel %vm1482, %v4226, 0.0
    %v4240 = vadd.f32 %v4238, %v4239
    %v4241 = vsel %vm1482, %v4227, 0.0
    %v4242 = vadd.f32 %v4240, %v4241
    %v4243 = vrot.slane %v4242, 4
    %v4244 = vadd.f32 %v4242, %v4243
    %v4245 = vrot.slane %v4244, 2
    %v4246 = vadd.f32 %v4244, %v4245
    %v4247 = vrot.slane %v4246, 1
    %v4248 = vadd.f32 %v4246, %v4247
    %v4249 = vmul.f32 %v4248, 0.125
    %vm4250 = vcmask 0
    %4251 = vst.msk [vmem:[#allocation2] sm:$0x1] %vm4250, %v4249
    // Predicated region
    $region98: #{att_nmt_forward.1} parent=1 // pred_check
      _
    $region99: #{att_nmt_forward.1} parent=1 // pred_check_branch
      %4253 = sbr.rel (0) target = $region101
    $region100: #{att_nmt_forward.1} parent=1 // pred_region
      %4255 = vsyncadd [#allocation3], 0
      %s4257 = sshll.u32 [#allocation2], 4
      %s4258 = int_to_ptr.vmem [resolvable:$true] %s4257
      %s4259 = sshll.u32 %s24, 4
      %s4260 = int_to_ptr.hbm [resolvable:$true] %s4259
      %4262 = dma.vmem_to_hbm [thread:$0]  %s4258, 16, %s4260, [#allocation3]
    $region101: #{att_nmt_forward.1} parent=1 // pred_fallthru
      _
    // Predicated region
    $region102: #{att_nmt_forward.1} parent=1 // pred_check
      _
    $region103: #{att_nmt_forward.1} parent=1 // pred_check_branch
      %4264 = sbr.rel (0) target = $region105
    $region104: #{att_nmt_forward.1} parent=1 // pred_region
      %4266 = dma.done [#allocation3], 16
    $region105: #{att_nmt_forward.1} parent=1 // pred_fallthru
      _
    %4267 = vsyncpa [#allocation3], 1

</llo_original>
